<compile_context>
chip_gen: v7x
topology: tpu7x:2x2x1
jax: 0.10.0
libtpu: 0.0.40
codegen_flags: <defaults>
</compile_context>

<pallas_src>
import functools

import jax
import jax.numpy as jnp
from jax.experimental import pallas as pl
from jax.experimental.pallas import tpu as pltpu


def drop_sdpa_kernel(q_ref, k_ref, v_ref, d0_ref, d1_ref, mask_ref,
                     w1a_ref, w1b_ref, b1_ref, w2d_ref, b2d_ref,
                     out_ref, attn_ref, dec_ref, *, inv_temp):
    q = q_ref[0]          # [n, tq, dk]
    k = k_ref[0]          # [n, lk, dk]
    v = v_ref[0]          # [n, lk, dv]
    d0 = d0_ref[0]        # [tq, dd]
    d1 = d1_ref[0]        # [lk, dd]
    mask = mask_ref[0]    # [tq, lk] int32 (0 => masked out)

    # ---- decision network (kept in f32: boolean outcome must match reference) ----
    a = jnp.dot(d0, w1a_ref[...], preferred_element_type=jnp.float32)   # [tq, H]
    c = jnp.dot(d1, w1b_ref[...], preferred_element_type=jnp.float32)   # [lk, H]
    h = jax.nn.relu(a[:, None, :] + c[None, :, :] + b1_ref[...][None])  # [tq, lk, H]
    # delta = logit(class1) - logit(class0); hard argmax==1  <=>  delta > 0
    delta = jnp.sum(h * w2d_ref[...][None], axis=-1) + b2d_ref[...]     # [tq, lk]
    decision = jnp.logical_and(delta > 0.0, mask != 0)                  # [tq, lk] bool
    dec_ref[0, 0] = decision.astype(jnp.int32)

    # ---- attention: head-batched bf16 matmuls with f32 accumulation ----
    scores = jnp.einsum('nqd,nkd->nqk',
                        q.astype(jnp.bfloat16), k.astype(jnp.bfloat16),
                        preferred_element_type=jnp.float32) * inv_temp  # [n, tq, lk]
    scores = jnp.where(decision[None, :, :], scores, jnp.float32(-1e9))

    m = jnp.max(scores, axis=-1, keepdims=True)
    e = jnp.exp(scores - m)
    s = jnp.sum(e, axis=-1, keepdims=True)
    attn = e * pl.reciprocal(s, approx=True)                            # [n, tq, lk]
    attn_ref[0] = attn.astype(attn_ref.dtype)

    out = jnp.einsum('nqk,nkd->nqd',
                     attn.astype(jnp.bfloat16), v.astype(jnp.bfloat16),
                     preferred_element_type=jnp.float32)                # [n, tq, dv]
    out_ref[0] = out.astype(out_ref.dtype)


def _choose_tq(lq):
    if lq <= 256:
        return lq
    for t in (256, 128, 64, 32, 16, 8):
        if lq % t == 0:
            return t
    return lq


def drop_scaled_dot_product_attention(q, k, v, d0, d1, mask, params, temperature):
    """q,k: [b,n,lq,dk]; v: [b,n,lq,dv]; d0,d1: [b,lq,dd]; mask: [b,lq,lq]."""
    b, n, lq, dk = q.shape
    lk = k.shape[2]
    dv = v.shape[3]
    dd = d0.shape[2]
    hidden = 2 * dd

    w1, b1, w2, b2 = params            # torch layouts: [H,H], [H], [2,H], [2]
    w1t = w1.T                         # [in=H, out=H]
    w1a = w1t[:dd, :]                  # acts on d0 features
    w1b = w1t[dd:, :]                  # acts on d1 features
    b1_2d = b1.reshape(1, hidden)
    w2d = (w2[1, :] - w2[0, :]).reshape(1, hidden)
    b2d = (b2[1] - b2[0]).astype(jnp.float32).reshape(1, 1)
    mask_i32 = mask.astype(jnp.int32)

    tq = _choose_tq(lq)
    nq = lq // tq
    grid = (b, nq)

    kernel = functools.partial(drop_sdpa_kernel, inv_temp=float(1.0 / temperature))

    out_shapes = (
        jax.ShapeDtypeStruct((b, n, lq, dv), jnp.float32),
        jax.ShapeDtypeStruct((b, n, lq, lk), jnp.float32),
        jax.ShapeDtypeStruct((b, 1, lq, lk), jnp.int32),
    )

    in_specs = [
        pl.BlockSpec((1, n, tq, dk), lambda bi, qi: (bi, 0, qi, 0)),   # q
        pl.BlockSpec((1, n, lk, dk), lambda bi, qi: (bi, 0, 0, 0)),    # k
        pl.BlockSpec((1, n, lk, dv), lambda bi, qi: (bi, 0, 0, 0)),    # v
        pl.BlockSpec((1, tq, dd), lambda bi, qi: (bi, qi, 0)),         # d0 (q rows)
        pl.BlockSpec((1, lk, dd), lambda bi, qi: (bi, 0, 0)),          # d1 (k rows)
        pl.BlockSpec((1, tq, lk), lambda bi, qi: (bi, qi, 0)),         # mask
        pl.BlockSpec((dd, hidden), lambda bi, qi: (0, 0)),             # w1a
        pl.BlockSpec((dd, hidden), lambda bi, qi: (0, 0)),             # w1b
        pl.BlockSpec((1, hidden), lambda bi, qi: (0, 0)),              # b1
        pl.BlockSpec((1, hidden), lambda bi, qi: (0, 0)),              # w2 delta
        pl.BlockSpec((1, 1), lambda bi, qi: (0, 0)),                   # b2 delta
    ]
    out_specs = [
        pl.BlockSpec((1, n, tq, dv), lambda bi, qi: (bi, 0, qi, 0)),   # output
        pl.BlockSpec((1, n, tq, lk), lambda bi, qi: (bi, 0, qi, 0)),   # attn
        pl.BlockSpec((1, 1, tq, lk), lambda bi, qi: (bi, 0, qi, 0)),   # decisions
    ]

    # per-step working-set estimate (bytes) -> explicit VMEM limit with headroom,
    # capped at 64 MiB so the same choice is valid on v7x (64 MiB per TC).
    est = 4 * (n * tq * dk + n * lk * dk + n * lk * dv + tq * dd + lk * dd
               + tq * lk + 2 * n * tq * lk + n * tq * dv + tq * lk * hidden)
    vmem_limit = int(max(32 * 2**20, min(64 * 2**20, 8 * est)))

    out, attn, dec = pl.pallas_call(
        kernel,
        out_shape=out_shapes,
        grid_spec=pltpu.PrefetchScalarGridSpec(
            num_scalar_prefetch=0,
            grid=grid,
            in_specs=in_specs,
            out_specs=out_specs,
        ),
        compiler_params=pltpu.CompilerParams(
            dimension_semantics=("parallel", "parallel"),
            vmem_limit_bytes=vmem_limit),
    )(q, k, v, d0, d1, mask_i32, w1a, w1b, b1_2d, w2d, b2d)
    return out, attn, dec.astype(jnp.bool_)


def reference_drop_sdpa(q, k, v, d0, d1, mask, params, temperature):
    """Pure-JAX f32 reference mirroring the PyTorch forward (eval mode)."""
    w1, b1, w2, b2 = params
    b, n, lq, dk = q.shape
    dd = d0.shape[2]

    f = jnp.concatenate([
        jnp.broadcast_to(d0[:, :, None, :], (b, lq, lq, dd)),   # d0[b,i] over j
        jnp.broadcast_to(d1[:, None, :, :], (b, lq, lq, dd)),   # d1[b,j] over i
    ], axis=-1)
    h = jax.nn.relu(f @ w1.T + b1)
    logits = h @ w2.T + b2                                      # [b, lq, lq, 2]
    y_soft = jax.nn.softmax(logits, axis=-1)                    # hard one-hot = argmax
    decisions = (jnp.argmax(y_soft, axis=-1) == 1)[:, None, :, :]
    decisions = jnp.logical_and(mask[:, None, :, :] != 0, decisions)

    attn = jnp.einsum('bnqd,bnkd->bnqk', q / temperature, k)
    attn = jnp.where(decisions, attn, -1e9)
    attn = jax.nn.softmax(attn, axis=-1)
    out = jnp.einsum('bnqk,bnkd->bnqd', attn, v)
    return out, attn, decisions


if __name__ == "__main__":
    b, n, lq = 2, 4, 8
    dk = dv = 8
    dd = 16
    hidden = 2 * dd
    temperature = dk ** 0.5

    key = jax.random.PRNGKey(0)
    keys = jax.random.split(key, 9)
    q = jax.random.normal(keys[0], (b, n, lq, dk), dtype=jnp.float32)
    k = jax.random.normal(keys[1], (b, n, lq, dk), dtype=jnp.float32)
    v = jax.random.normal(keys[2], (b, n, lq, dv), dtype=jnp.float32)
    d0 = jax.random.normal(keys[3], (b, lq, dd), dtype=jnp.float32)
    d1 = jax.random.normal(keys[4], (b, lq, dd), dtype=jnp.float32)

    # Padding-style key mask: last 2 keys of batch 1 masked out.
    mask = jnp.ones((b, lq, lq), dtype=jnp.int32)
    mask = mask.at[1, :, -2:].set(0)

    s = 0.3
    w1 = s * jax.random.normal(keys[5], (hidden, hidden), dtype=jnp.float32)
    b1 = s * jax.random.normal(keys[6], (hidden,), dtype=jnp.float32)
    w2 = s * jax.random.normal(keys[7], (2, hidden), dtype=jnp.float32)
    b2 = s * jax.random.normal(keys[8], (2,), dtype=jnp.float32)
    params = (w1, b1, w2, b2)

    out, attn, dec = drop_scaled_dot_product_attention(
        q, k, v, d0, d1, mask, params, temperature)
    out = jax.block_until_ready(out)
    attn = jax.block_until_ready(attn)
    dec = jax.block_until_ready(dec)

    ref_out, ref_attn, ref_dec = reference_drop_sdpa(
        q, k, v, d0, d1, mask, params, temperature)

    assert out.shape == (b, n, lq, dv)
    assert attn.shape == (b, n, lq, lq)
    assert dec.shape == (b, 1, lq, lq)
    assert bool(jnp.array_equal(dec, ref_dec))
    # bf16 matmuls + approx reciprocal => slightly looser tolerance vs f32 reference.
    assert jnp.allclose(attn, ref_attn, atol=3e-2, rtol=3e-2)
    assert jnp.allclose(out, ref_out, atol=3e-2, rtol=3e-2)

    print("KERNEL_OK")
</pallas_src>

<mosaic_0001>
module attributes {stable_mosaic.version = 11 : i64} {
  func.func @drop_sdpa_kernel(%arg0: i32, %arg1: i32, %arg2: memref<1x4x8x8xf32, #tpu.memory_space<vmem>>, %arg3: memref<1x4x8x8xf32, #tpu.memory_space<vmem>>, %arg4: memref<1x4x8x8xf32, #tpu.memory_space<vmem>>, %arg5: memref<1x8x16xf32, #tpu.memory_space<vmem>>, %arg6: memref<1x8x16xf32, #tpu.memory_space<vmem>>, %arg7: memref<1x8x8xi32, #tpu.memory_space<vmem>>, %arg8: memref<16x32xf32, #tpu.memory_space<vmem>>, %arg9: memref<16x32xf32, #tpu.memory_space<vmem>>, %arg10: memref<1x32xf32, #tpu.memory_space<vmem>>, %arg11: memref<1x32xf32, #tpu.memory_space<vmem>>, %arg12: memref<1x1xf32, #tpu.memory_space<vmem>>, %arg13: memref<1x4x8x8xf32, #tpu.memory_space<vmem>>, %arg14: memref<1x4x8x8xf32, #tpu.memory_space<vmem>>, %arg15: memref<1x1x8x8xi32, #tpu.memory_space<vmem>>) attributes {dimension_semantics = [#tpu.dimension_semantics<parallel>, #tpu.dimension_semantics<parallel>], iteration_bounds = array<i64: 2, 1>, scalar_prefetch = 0 : i64, scratch_operands = 0 : i64, tpu.core_type = #tpu.core_type<tc>, window_params = [{transform_indices = @transform_0, window_bounds = array<i64: 1, 4, 8, 8>}, {transform_indices = @transform_1, window_bounds = array<i64: 1, 4, 8, 8>}, {transform_indices = @transform_2, window_bounds = array<i64: 1, 4, 8, 8>}, {transform_indices = @transform_3, window_bounds = array<i64: 1, 8, 16>}, {transform_indices = @transform_4, window_bounds = array<i64: 1, 8, 16>}, {transform_indices = @transform_5, window_bounds = array<i64: 1, 8, 8>}, {pipeline_mode = #tpu.pipeline_mode<synchronous>, transform_indices = @transform_6, window_bounds = array<i64: 16, 32>}, {pipeline_mode = #tpu.pipeline_mode<synchronous>, transform_indices = @transform_7, window_bounds = array<i64: 16, 32>}, {pipeline_mode = #tpu.pipeline_mode<synchronous>, transform_indices = @transform_8, window_bounds = array<i64: 1, 32>}, {pipeline_mode = #tpu.pipeline_mode<synchronous>, transform_indices = @transform_9, window_bounds = array<i64: 1, 32>}, {pipeline_mode = #tpu.pipeline_mode<synchronous>, transform_indices = @transform_10, window_bounds = array<i64: 1, 1>}, {transform_indices = @transform_11, window_bounds = array<i64: 1, 4, 8, 8>}, {transform_indices = @transform_12, window_bounds = array<i64: 1, 4, 8, 8>}, {transform_indices = @transform_13, window_bounds = array<i64: 1, 1, 8, 8>}]} {
    %c0 = arith.constant 0 : index
    %c0_0 = arith.constant 0 : index
    %c0_1 = arith.constant 0 : index
    %c0_2 = arith.constant 0 : index
    %0 = vector.load %arg2[%c0, %c0_0, %c0_1, %c0_2] : memref<1x4x8x8xf32, #tpu.memory_space<vmem>>, vector<1x4x8x8xf32>
    %1 = vector.shape_cast %0 : vector<1x4x8x8xf32> to vector<4x8x8xf32>
    %c0_3 = arith.constant 0 : index
    %c0_4 = arith.constant 0 : index
    %c0_5 = arith.constant 0 : index
    %c0_6 = arith.constant 0 : index
    %2 = vector.load %arg3[%c0_3, %c0_4, %c0_5, %c0_6] : memref<1x4x8x8xf32, #tpu.memory_space<vmem>>, vector<1x4x8x8xf32>
    %3 = vector.shape_cast %2 : vector<1x4x8x8xf32> to vector<4x8x8xf32>
    %c0_7 = arith.constant 0 : index
    %c0_8 = arith.constant 0 : index
    %c0_9 = arith.constant 0 : index
    %c0_10 = arith.constant 0 : index
    %4 = vector.load %arg4[%c0_7, %c0_8, %c0_9, %c0_10] : memref<1x4x8x8xf32, #tpu.memory_space<vmem>>, vector<1x4x8x8xf32>
    %5 = vector.shape_cast %4 : vector<1x4x8x8xf32> to vector<4x8x8xf32>
    %c0_11 = arith.constant 0 : index
    %c0_12 = arith.constant 0 : index
    %c0_13 = arith.constant 0 : index
    %6 = vector.load %arg5[%c0_11, %c0_12, %c0_13] : memref<1x8x16xf32, #tpu.memory_space<vmem>>, vector<1x8x16xf32>
    %7 = vector.shape_cast %6 : vector<1x8x16xf32> to vector<8x16xf32>
    %c0_14 = arith.constant 0 : index
    %c0_15 = arith.constant 0 : index
    %c0_16 = arith.constant 0 : index
    %8 = vector.load %arg6[%c0_14, %c0_15, %c0_16] : memref<1x8x16xf32, #tpu.memory_space<vmem>>, vector<1x8x16xf32>
    %9 = vector.shape_cast %8 : vector<1x8x16xf32> to vector<8x16xf32>
    %c0_17 = arith.constant 0 : index
    %c0_18 = arith.constant 0 : index
    %c0_19 = arith.constant 0 : index
    %10 = vector.load %arg7[%c0_17, %c0_18, %c0_19] : memref<1x8x8xi32, #tpu.memory_space<vmem>>, vector<1x8x8xi32>
    %11 = vector.shape_cast %10 : vector<1x8x8xi32> to vector<8x8xi32>
    %c0_20 = arith.constant 0 : index
    %c0_21 = arith.constant 0 : index
    %12 = vector.load %arg8[%c0_20, %c0_21] : memref<16x32xf32, #tpu.memory_space<vmem>>, vector<16x32xf32>
    %cst = arith.constant dense<0.000000e+00> : vector<8x32xf32>
    %13 = tpu.matmul %7, %12, %cst {dimension_numbers = #tpu.dot_dimension_numbers<[1], [0], [0], [1], [0, 0, 1, 1], [], []>} : vector<8x16xf32>, vector<16x32xf32>, vector<8x32xf32> -> vector<8x32xf32>
    %c0_22 = arith.constant 0 : index
    %c0_23 = arith.constant 0 : index
    %14 = vector.load %arg9[%c0_22, %c0_23] : memref<16x32xf32, #tpu.memory_space<vmem>>, vector<16x32xf32>
    %cst_24 = arith.constant dense<0.000000e+00> : vector<8x32xf32>
    %15 = tpu.matmul %9, %14, %cst_24 {dimension_numbers = #tpu.dot_dimension_numbers<[1], [0], [0], [1], [0, 0, 1, 1], [], []>} : vector<8x16xf32>, vector<16x32xf32>, vector<8x32xf32> -> vector<8x32xf32>
    %16 = vector.shape_cast %13 : vector<8x32xf32> to vector<8x1x32xf32>
    %17 = vector.shape_cast %15 : vector<8x32xf32> to vector<1x8x32xf32>
    %18 = vector.broadcast %16 : vector<8x1x32xf32> to vector<8x8x32xf32>
    %19 = vector.broadcast %17 : vector<1x8x32xf32> to vector<8x8x32xf32>
    %20 = arith.addf %18, %19 : vector<8x8x32xf32>
    %c0_25 = arith.constant 0 : index
    %c0_26 = arith.constant 0 : index
    %21 = vector.load %arg10[%c0_25, %c0_26] : memref<1x32xf32, #tpu.memory_space<vmem>>, vector<1x32xf32>
    %22 = vector.shape_cast %21 : vector<1x32xf32> to vector<1x1x32xf32>
    %23 = vector.broadcast %22 : vector<1x1x32xf32> to vector<8x8x32xf32>
    %24 = arith.addf %20, %23 : vector<8x8x32xf32>
    %cst_27 = arith.constant 0.000000e+00 : f32
    %25 = vector.broadcast %cst_27 : f32 to vector<8x8x32xf32>
    %26 = arith.maximumf %24, %25 : vector<8x8x32xf32>
    %c0_28 = arith.constant 0 : index
    %c0_29 = arith.constant 0 : index
    %27 = vector.load %arg11[%c0_28, %c0_29] : memref<1x32xf32, #tpu.memory_space<vmem>>, vector<1x32xf32>
    %28 = vector.shape_cast %27 : vector<1x32xf32> to vector<1x1x32xf32>
    %29 = vector.broadcast %28 : vector<1x1x32xf32> to vector<8x8x32xf32>
    %30 = arith.mulf %26, %29 : vector<8x8x32xf32>
    %cst_30 = arith.constant dense<0.000000e+00> : vector<8x8xf32>
    %31 = vector.multi_reduction <add>, %30, %cst_30 [2] : vector<8x8x32xf32> to vector<8x8xf32>
    %c0_31 = arith.constant 0 : index
    %c0_32 = arith.constant 0 : index
    %32 = vector.load %arg12[%c0_31, %c0_32] : memref<1x1xf32, #tpu.memory_space<vmem>>, vector<1x1xf32>
    %33 = vector.broadcast %32 : vector<1x1xf32> to vector<8x8xf32>
    %34 = arith.addf %31, %33 : vector<8x8xf32>
    %cst_33 = arith.constant 0.000000e+00 : f32
    %35 = vector.broadcast %cst_33 : f32 to vector<8x8xf32>
    %36 = arith.cmpf ogt, %34, %35 : vector<8x8xf32>
    %c0_i32 = arith.constant 0 : i32
    %37 = vector.broadcast %c0_i32 : i32 to vector<8x8xi32>
    %38 = arith.cmpi ne, %11, %37 : vector<8x8xi32>
    %39 = arith.andi %36, %38 : vector<8x8xi1>
    %40 = arith.extui %39 : vector<8x8xi1> to vector<8x8xi32>
    %c0_34 = arith.constant 0 : index
    %c0_35 = arith.constant 0 : index
    %c0_36 = arith.constant 0 : index
    %c0_37 = arith.constant 0 : index
    %41 = vector.load %arg15[%c0_34, %c0_35, %c0_36, %c0_37] : memref<1x1x8x8xi32, #tpu.memory_space<vmem>>, vector<1x1x8x8xi32>
    %42 = vector.shape_cast %41 : vector<1x1x8x8xi32> to vector<8x8xi32>
    %43 = vector.shape_cast %40 : vector<8x8xi32> to vector<1x1x8x8xi32>
    tpu.vector_store %arg15[%c0_34, %c0_35, %c0_36, %c0_37], %43 {strides = array<i32>} : memref<1x1x8x8xi32, #tpu.memory_space<vmem>>, vector<1x1x8x8xi32>,
    %44 = arith.truncf %1 : vector<4x8x8xf32> to vector<4x8x8xbf16>
    %45 = arith.truncf %3 : vector<4x8x8xf32> to vector<4x8x8xbf16>
    "tpu.trace_start"() <{level = 10 : i32, message = "nqd,nkd->nqk"}> : () -> ()
    %cst_38 = arith.constant dense<0.000000e+00> : vector<4x8x8xf32>
    %46 = tpu.matmul %44, %45, %cst_38 {dimension_numbers = #tpu.dot_dimension_numbers<[2], [2], [1], [1], [0, 0, 0, 1, 1, 1], [0], [0]>} : vector<4x8x8xbf16>, vector<4x8x8xbf16>, vector<4x8x8xf32> -> vector<4x8x8xf32>
    "tpu.trace_stop"() : () -> ()
    %cst_39 = arith.constant 0.353553385 : f32
    %47 = vector.broadcast %cst_39 : f32 to vector<4x8x8xf32>
    %48 = arith.mulf %46, %47 : vector<4x8x8xf32>
    %49 = vector.shape_cast %39 : vector<8x8xi1> to vector<1x8x8xi1>
    %cst_40 = arith.constant -1.000000e+09 : f32
    %50 = vector.shape_cast %49 : vector<1x8x8xi1> to vector<1x8x8xi1>
    %51 = vector.broadcast %50 : vector<1x8x8xi1> to vector<4x8x8xi1>
    %52 = vector.broadcast %cst_40 : f32 to vector<4x8x8xf32>
    %53 = arith.select %51, %48, %52 : vector<4x8x8xi1>, vector<4x8x8xf32>
    %cst_41 = arith.constant dense<0xFF800000> : vector<4x8xf32>
    %54 = vector.multi_reduction <maximumf>, %53, %cst_41 [2] : vector<4x8x8xf32> to vector<4x8xf32>
    %55 = vector.shape_cast %54 : vector<4x8xf32> to vector<4x8x1xf32>
    %56 = vector.broadcast %55 : vector<4x8x1xf32> to vector<4x8x8xf32>
    %57 = arith.subf %53, %56 : vector<4x8x8xf32>
    %58 = math.exp %57 : vector<4x8x8xf32>
    %cst_42 = arith.constant dense<0.000000e+00> : vector<4x8xf32>
    %59 = vector.multi_reduction <add>, %58, %cst_42 [2] : vector<4x8x8xf32> to vector<4x8xf32>
    %60 = vector.shape_cast %59 : vector<4x8xf32> to vector<4x8x1xf32>
    %61 = tpu.reciprocal %60 {approx = true} : vector<4x8x1xf32> -> vector<4x8x1xf32>
    %62 = vector.broadcast %61 : vector<4x8x1xf32> to vector<4x8x8xf32>
    %63 = arith.mulf %58, %62 : vector<4x8x8xf32>
    %c0_43 = arith.constant 0 : index
    %c0_44 = arith.constant 0 : index
    %c0_45 = arith.constant 0 : index
    %c0_46 = arith.constant 0 : index
    %64 = vector.load %arg14[%c0_43, %c0_44, %c0_45, %c0_46] : memref<1x4x8x8xf32, #tpu.memory_space<vmem>>, vector<1x4x8x8xf32>
    %65 = vector.shape_cast %64 : vector<1x4x8x8xf32> to vector<4x8x8xf32>
    %66 = vector.shape_cast %63 : vector<4x8x8xf32> to vector<1x4x8x8xf32>
    tpu.vector_store %arg14[%c0_43, %c0_44, %c0_45, %c0_46], %66 {strides = array<i32>} : memref<1x4x8x8xf32, #tpu.memory_space<vmem>>, vector<1x4x8x8xf32>,
    %67 = arith.truncf %63 : vector<4x8x8xf32> to vector<4x8x8xbf16>
    %68 = arith.truncf %5 : vector<4x8x8xf32> to vector<4x8x8xbf16>
    "tpu.trace_start"() <{level = 10 : i32, message = "nqk,nkd->nqd"}> : () -> ()
    %cst_47 = arith.constant dense<0.000000e+00> : vector<4x8x8xf32>
    %69 = tpu.matmul %67, %68, %cst_47 {dimension_numbers = #tpu.dot_dimension_numbers<[2], [1], [1], [2], [0, 0, 0, 1, 1, 2], [0], [0]>} : vector<4x8x8xbf16>, vector<4x8x8xbf16>, vector<4x8x8xf32> -> vector<4x8x8xf32>
    "tpu.trace_stop"() : () -> ()
    %c0_48 = arith.constant 0 : index
    %c0_49 = arith.constant 0 : index
    %c0_50 = arith.constant 0 : index
    %c0_51 = arith.constant 0 : index
    %70 = vector.load %arg13[%c0_48, %c0_49, %c0_50, %c0_51] : memref<1x4x8x8xf32, #tpu.memory_space<vmem>>, vector<1x4x8x8xf32>
    %71 = vector.shape_cast %70 : vector<1x4x8x8xf32> to vector<4x8x8xf32>
    %72 = vector.shape_cast %69 : vector<4x8x8xf32> to vector<1x4x8x8xf32>
    tpu.vector_store %arg13[%c0_48, %c0_49, %c0_50, %c0_51], %72 {strides = array<i32>} : memref<1x4x8x8xf32, #tpu.memory_space<vmem>>, vector<1x4x8x8xf32>,
    return
  }
  func.func @transform_0(%arg0: i32, %arg1: i32) -> (i32, i32, i32, i32) {
    %c0_i32 = arith.constant 0 : i32
    %c0_i32_0 = arith.constant 0 : i32
    %c0_i32_1 = arith.constant 0 : i32
    return %arg0, %c0_i32, %arg1, %c0_i32_0 : i32, i32, i32, i32
  }
  func.func @transform_1(%arg0: i32, %arg1: i32) -> (i32, i32, i32, i32) {
    %c0_i32 = arith.constant 0 : i32
    %c0_i32_0 = arith.constant 0 : i32
    %c0_i32_1 = arith.constant 0 : i32
    %c0_i32_2 = arith.constant 0 : i32
    return %arg0, %c0_i32, %c0_i32_0, %c0_i32_1 : i32, i32, i32, i32
  }
  func.func @transform_2(%arg0: i32, %arg1: i32) -> (i32, i32, i32, i32) {
    %c0_i32 = arith.constant 0 : i32
    %c0_i32_0 = arith.constant 0 : i32
    %c0_i32_1 = arith.constant 0 : i32
    %c0_i32_2 = arith.constant 0 : i32
    return %arg0, %c0_i32, %c0_i32_0, %c0_i32_1 : i32, i32, i32, i32
  }
  func.func @transform_3(%arg0: i32, %arg1: i32) -> (i32, i32, i32) {
    %c0_i32 = arith.constant 0 : i32
    %c0_i32_0 = arith.constant 0 : i32
    return %arg0, %arg1, %c0_i32 : i32, i32, i32
  }
  func.func @transform_4(%arg0: i32, %arg1: i32) -> (i32, i32, i32) {
    %c0_i32 = arith.constant 0 : i32
    %c0_i32_0 = arith.constant 0 : i32
    %c0_i32_1 = arith.constant 0 : i32
    return %arg0, %c0_i32, %c0_i32_0 : i32, i32, i32
  }
  func.func @transform_5(%arg0: i32, %arg1: i32) -> (i32, i32, i32) {
    %c0_i32 = arith.constant 0 : i32
    %c0_i32_0 = arith.constant 0 : i32
    return %arg0, %arg1, %c0_i32 : i32, i32, i32
  }
  func.func @transform_6(%arg0: i32, %arg1: i32) -> (i32, i32) {
    %c0_i32 = arith.constant 0 : i32
    %c0_i32_0 = arith.constant 0 : i32
    %c0_i32_1 = arith.constant 0 : i32
    return %c0_i32, %c0_i32_0 : i32, i32
  }
  func.func @transform_7(%arg0: i32, %arg1: i32) -> (i32, i32) {
    %c0_i32 = arith.constant 0 : i32
    %c0_i32_0 = arith.constant 0 : i32
    %c0_i32_1 = arith.constant 0 : i32
    return %c0_i32, %c0_i32_0 : i32, i32
  }
  func.func @transform_8(%arg0: i32, %arg1: i32) -> (i32, i32) {
    %c0_i32 = arith.constant 0 : i32
    %c0_i32_0 = arith.constant 0 : i32
    %c0_i32_1 = arith.constant 0 : i32
    return %c0_i32, %c0_i32_0 : i32, i32
  }
  func.func @transform_9(%arg0: i32, %arg1: i32) -> (i32, i32) {
    %c0_i32 = arith.constant 0 : i32
    %c0_i32_0 = arith.constant 0 : i32
    %c0_i32_1 = arith.constant 0 : i32
    return %c0_i32, %c0_i32_0 : i32, i32
  }
  func.func @transform_10(%arg0: i32, %arg1: i32) -> (i32, i32) {
    %c0_i32 = arith.constant 0 : i32
    %c0_i32_0 = arith.constant 0 : i32
    %c0_i32_1 = arith.constant 0 : i32
    return %c0_i32, %c0_i32_0 : i32, i32
  }
  func.func @transform_11(%arg0: i32, %arg1: i32) -> (i32, i32, i32, i32) {
    %c0_i32 = arith.constant 0 : i32
    %c0_i32_0 = arith.constant 0 : i32
    %c0_i32_1 = arith.constant 0 : i32
    return %arg0, %c0_i32, %arg1, %c0_i32_0 : i32, i32, i32, i32
  }
  func.func @transform_12(%arg0: i32, %arg1: i32) -> (i32, i32, i32, i32) {
    %c0_i32 = arith.constant 0 : i32
    %c0_i32_0 = arith.constant 0 : i32
    %c0_i32_1 = arith.constant 0 : i32
    return %arg0, %c0_i32, %arg1, %c0_i32_0 : i32, i32, i32, i32
  }
  func.func @transform_13(%arg0: i32, %arg1: i32) -> (i32, i32, i32, i32) {
    %c0_i32 = arith.constant 0 : i32
    %c0_i32_0 = arith.constant 0 : i32
    %c0_i32_1 = arith.constant 0 : i32
    return %arg0, %c0_i32, %arg1, %c0_i32_0 : i32, i32, i32, i32
  }
}

</mosaic_0001>

<llo_original>
// kernel: tpu_custom_call.1
$region0: #{tpu_custom_call.1}
  #allocation0 [shape = 'u32[]', space=smem, size = 0x4, offset = 0x4, fixed_abs, tag = 'smem constant byte address 0x4 - core index']
  #allocation1 [shape = 'u32[144,128]{1,0:T(1,128)}', space=vmem, size = 0x12000, scoped, tag = 'internal scratch']
  #allocation2 [shape = 'f32[1,1]{1,0:T(1,128)S(1)}', space=vmem, size = 0x200, scoped, tag = 'scoped memory for tpu_custom_call.1']
  %s0 = inlined_call_operand.hbm [shape: f32[2,4,8,8], index: 0, kind: input, shape index: {}]
  %s1 = inlined_call_operand.hbm [shape: f32[2,4,8,8], index: 1, kind: input, shape index: {}]
  %s2 = inlined_call_operand.hbm [shape: f32[2,4,8,8], index: 2, kind: input, shape index: {}]
  %s3 = inlined_call_operand.hbm [shape: f32[2,8,16], index: 3, kind: input, shape index: {}]
  %s4 = inlined_call_operand.vmem [shape: f32[2,8,16], index: 4, kind: input, shape index: {}]
  %s5 = inlined_call_operand.hbm [shape: s32[2,8,8], index: 5, kind: input, shape index: {}]
  %s6 = inlined_call_operand.hbm [shape: f32[16,32], index: 6, kind: input, shape index: {}]
  %s7 = inlined_call_operand.hbm [shape: f32[16,32], index: 7, kind: input, shape index: {}]
  %s8 = inlined_call_operand.vmem [shape: f32[1,32], index: 8, kind: input, shape index: {}]
  %s9 = inlined_call_operand.vmem [shape: f32[1,32], index: 9, kind: input, shape index: {}]
  %s10 = inlined_call_operand.<no memory space> [shape: f32[1,1], index: 10, kind: input, shape index: {}]
  %s11 = inlined_call_operand.hbm [shape: f32[2,4,8,8], index: 11, kind: output, shape index: {0}]
  %s12 = inlined_call_operand.hbm [shape: f32[2,4,8,8], index: 12, kind: output, shape index: {1}]
  %s13 = inlined_call_operand.hbm [shape: s32[2,1,8,8], index: 13, kind: output, shape index: {2}]
  %14 = xla_tuple %s11, %s12, %s13
  %s15 = sld [smem:[#allocation0]]
  $region121: #{tpu_custom_call.1} parent=0
    _
  %s17 = ssub.s32 1, %s15
  %s18 = scalar_select 0, %s17, %s15
  %v19 = vstv %s10
  %20 = vst [vmem:[#allocation2] sm:$0x1] %v19
  $region1: #{tpu_custom_call.1} parent=0
    #allocation3 [shape = 'u8[32768]{0}', space=vmem, size = 0x8000, scoped, tag = 'input window, operand 0']
    #allocation4 [shape = 's32[2]{0}', space=sflag, size = 0x8, scoped, tag = 'scoped memory for tpu_custom_call.1']
    #allocation5 [shape = 's32[2]{0}', space=sflag, size = 0x8, scoped, tag = 'scoped memory for tpu_custom_call.1']
    #allocation6 [shape = 'u8[32768]{0}', space=vmem, size = 0x8000, scoped, tag = 'input window, operand 1']
    #allocation7 [shape = 's32[2]{0}', space=sflag, size = 0x8, scoped, tag = 'scoped memory for tpu_custom_call.1']
    #allocation8 [shape = 'u8[32768]{0}', space=vmem, size = 0x8000, scoped, tag = 'input window, operand 2']
    #allocation9 [shape = 'u8[8192]{0}', space=vmem, size = 0x2000, scoped, tag = 'input window, operand 3']
    #allocation10 [shape = 's32[2]{0}', space=sflag, size = 0x8, scoped, tag = 'scoped memory for tpu_custom_call.1']
    #allocation11 [shape = 'u8[8192]{0}', space=vmem, size = 0x2000, scoped, tag = 'input window, operand 5']
    #allocation12 [shape = 'u8[8192]{0}', space=vmem, size = 0x2000, scoped, tag = 'input window, operand 6, single buffered']
    #allocation13 [shape = 's32[1]{0}', space=sflag, size = 0x4, scoped, tag = 'scoped memory for tpu_custom_call.1']
    #allocation14 [shape = 'u8[8192]{0}', space=vmem, size = 0x2000, scoped, tag = 'input window, operand 7, single buffered']
    #allocation15 [shape = 'u8[32768]{0}', space=vmem, size = 0x8000, scoped, tag = 'output window, operand 0']
    #allocation16 [shape = 'u8[32768]{0}', space=vmem, size = 0x8000, scoped, tag = 'output window, operand 1']
    #allocation17 [shape = 's32[2]{0}', space=sflag, size = 0x8, scoped, tag = 'scoped memory for tpu_custom_call.1']
    #allocation18 [shape = 'u8[8192]{0}', space=vmem, size = 0x2000, scoped, tag = 'output window, operand 2']
    %21 = vsyncpa [#allocation4], 0
    %s22 = scalar_lea.sflag [#allocation4], 1
    %23 = vsyncpa %s22, 0
    %24 = vsyncpa [#allocation7], 0
    %s25 = scalar_lea.sflag [#allocation7], 1
    %26 = vsyncpa %s25, 0
    %27 = vsyncpa [#allocation10], 0
    %s28 = scalar_lea.sflag [#allocation10], 1
    %29 = vsyncpa %s28, 0
    %30 = vsyncpa [#allocation13], 0
    %31 = vsyncpa [#allocation5], 0
    %s32 = scalar_lea.sflag [#allocation5], 1
    %33 = vsyncpa %s32, 0
    %34 = vsyncpa [#allocation17], 0
    %s35 = scalar_lea.sflag [#allocation17], 1
    %36 = vsyncpa %s35, 0
    loop: start=0, step=1, limit=4
    $region2: #{tpu_custom_call.1} parent=1 // loop_pre_header
      _
    $region3: #{tpu_custom_call.1} parent=1 // loop_header
      %s38 = sphi 0, %s42
      %p39 = scmp.ge.s32.totalorder %s38, 4
      %s45 = sphi 0, %s57
      %s46 = sphi 0, %s53
      %s47 = sphi 0, %s45
      %s48 = sphi 0, %s46
      %s49 = sphi 0, %s47
      %s50 = sphi 0, %s48
      %s62 = sphi 0, %s64
      %s65 = sphi 0, %s62
      %s66 = sphi 0, %s65
      %s82 = sphi 0, %s66
      %s88 = sphi 0, %s90
      %s91 = sphi 0, %s88
      %s92 = sphi 0, %s91
      %s108 = sphi 0, %s92
      %s114 = sphi 0, %s116
      %s117 = sphi 0, %s114
      %s118 = sphi 0, %s117
      %s134 = sphi 0, %s118
      %s142 = sphi 0, %s144
      %s145 = sphi 0, %s142
      %s146 = sphi 0, %s145
      %s162 = sphi 0, %s146
      %s168 = sphi 0, %s170
      %s171 = sphi 0, %s168
      %s172 = sphi 0, %s171
      %s188 = sphi 0, %s172
      %s196 = sphi 0, %s198
      %s199 = sphi 0, %s196
      %s200 = sphi 0, %s199
      %s216 = sphi 0, %s200
      %s220 = sphi 0, %s220
      %s222 = sphi 0, %s220
      %s223 = sphi 0, %s222
      %s237 = sphi 0, %s223
      %s241 = sphi 0, %s241
      %s243 = sphi 0, %s241
      %s244 = sphi 0, %s243
      %s258 = sphi 0, %s244
      %s262 = sphi 0, %s262
      %s264 = sphi 0, %s262
      %s265 = sphi 0, %s264
      %s279 = sphi 0, %s265
      %s283 = sphi 0, %s283
      %s285 = sphi 0, %s283
      %s286 = sphi 0, %s285
      %s300 = sphi 0, %s286
      %s304 = sphi 0, %s304
      %s306 = sphi 0, %s304
      %s307 = sphi 0, %s306
      %s321 = sphi 0, %s307
      %s329 = sphi 0, %s331
      %s332 = sphi 0, %s329
      %s333 = sphi 0, %s332
      %s349 = sphi 0, %s333
      %s357 = sphi 0, %s359
      %s360 = sphi 0, %s357
      %s361 = sphi 0, %s360
      %s377 = sphi 0, %s361
      %s385 = sphi 0, %s387
      %s388 = sphi 0, %s385
      %s389 = sphi 0, %s388
      %s405 = sphi 0, %s389
    $region4: #{tpu_custom_call.1} parent=1 // loop_header_branch
      %41 = sbr.rel (%p39) target = $region8
    $region5: #{tpu_custom_call.1} parent=1 // loop_body
      %s43 = ssub.s32 %s38, 1
      %s44 = ssub.s32 %s38, 2
      %s51 = sadd.s32 1, %s46
      %p52 = scmp.ge.s32.totalorder %s51, 1
      %s53 = scalar_select %p52, 0, %s51
      %s54 = sadd.s32 1, %s45
      %s55 = scalar_select %p52, %s54, %s45
      %p56 = scmp.ge.s32.totalorder %s55, 2
      %s57 = scalar_select %p56, 0, %s55
      %s58 = ssub.s32 %s45, %s57
      %s59 = ssub.s32 %s46, %s53
      %s60 = sor.u32 %s58, %s59
      %p61 = scmp.eq.s32.totalorder %s60, 0
      %s63 = sadd.s32 %s62, 1
      %s64 = scalar_select %p61, %s62, %s63
      %p67 = pneg %p61
      %p68 = scmp.eq.s32.totalorder %s38, 1
      %p69 = por %p67, %p68
      %p70 = scmp.ne.s32.totalorder %s62, %s65
      %p71 = scmp.eq.s32.totalorder %s38, 0
      %p72 = por %p70, %p71
      %p73 = scmp.ne.s32.totalorder %s62, %s65
      %p74 = scmp.eq.s32.totalorder %s43, 1
      %p75 = por %p73, %p74
      %p76 = scmp.ne.s32.totalorder %s65, %s66
      %p77 = scmp.eq.s32.totalorder %s43, 0
      %p78 = por %p76, %p77
      %p79 = scmp.ne.s32.totalorder %s65, %s66
      %p80 = scmp.eq.s32.totalorder %s44, 1
      %p81 = por %p79, %p80
      %p83 = scmp.ne.s32.totalorder %s66, %s82
      %p84 = scmp.eq.s32.totalorder %s44, 0
      %p85 = por %p83, %p84
      %s86 = ssub.s32 %s45, %s57
      %p87 = scmp.eq.s32.totalorder %s86, 0
      %s89 = sadd.s32 %s88, 1
      %s90 = scalar_select %p87, %s88, %s89
      %p93 = pneg %p87
      %p94 = scmp.eq.s32.totalorder %s38, 1
      %p95 = por %p93, %p94
      %p96 = scmp.ne.s32.totalorder %s88, %s91
      %p97 = scmp.eq.s32.totalorder %s38, 0
      %p98 = por %p96, %p97
      %p99 = scmp.ne.s32.totalorder %s88, %s91
      %p100 = scmp.eq.s32.totalorder %s43, 1
      %p101 = por %p99, %p100
      %p102 = scmp.ne.s32.totalorder %s91, %s92
      %p103 = scmp.eq.s32.totalorder %s43, 0
      %p104 = por %p102, %p103
      %p105 = scmp.ne.s32.totalorder %s91, %s92
      %p106 = scmp.eq.s32.totalorder %s44, 1
      %p107 = por %p105, %p106
      %p109 = scmp.ne.s32.totalorder %s92, %s108
      %p110 = scmp.eq.s32.totalorder %s44, 0
      %p111 = por %p109, %p110
      %s112 = ssub.s32 %s45, %s57
      %p113 = scmp.eq.s32.totalorder %s112, 0
      %s115 = sadd.s32 %s114, 1
      %s116 = scalar_select %p113, %s114, %s115
      %p119 = pneg %p113
      %p120 = scmp.eq.s32.totalorder %s38, 1
      %p121 = por %p119, %p120
      %p122 = scmp.ne.s32.totalorder %s114, %s117
      %p123 = scmp.eq.s32.totalorder %s38, 0
      %p124 = por %p122, %p123
      %p125 = scmp.ne.s32.totalorder %s114, %s117
      %p126 = scmp.eq.s32.totalorder %s43, 1
      %p127 = por %p125, %p126
      %p128 = scmp.ne.s32.totalorder %s117, %s118
      %p129 = scmp.eq.s32.totalorder %s43, 0
      %p130 = por %p128, %p129
      %p131 = scmp.ne.s32.totalorder %s117, %s118
      %p132 = scmp.eq.s32.totalorder %s44, 1
      %p133 = por %p131, %p132
      %p135 = scmp.ne.s32.totalorder %s118, %s134
      %p136 = scmp.eq.s32.totalorder %s44, 0
      %p137 = por %p135, %p136
      %s138 = ssub.s32 %s45, %s57
      %s139 = ssub.s32 %s46, %s53
      %s140 = sor.u32 %s138, %s139
      %p141 = scmp.eq.s32.totalorder %s140, 0
      %s143 = sadd.s32 %s142, 1
      %s144 = scalar_select %p141, %s142, %s143
      %p147 = pneg %p141
      %p148 = scmp.eq.s32.totalorder %s38, 1
      %p149 = por %p147, %p148
      %p150 = scmp.ne.s32.totalorder %s142, %s145
      %p151 = scmp.eq.s32.totalorder %s38, 0
      %p152 = por %p150, %p151
      %p153 = scmp.ne.s32.totalorder %s142, %s145
      %p154 = scmp.eq.s32.totalorder %s43, 1
      %p155 = por %p153, %p154
      %p156 = scmp.ne.s32.totalorder %s145, %s146
      %p157 = scmp.eq.s32.totalorder %s43, 0
      %p158 = por %p156, %p157
      %p159 = scmp.ne.s32.totalorder %s145, %s146
      %p160 = scmp.eq.s32.totalorder %s44, 1
      %p161 = por %p159, %p160
      %p163 = scmp.ne.s32.totalorder %s146, %s162
      %p164 = scmp.eq.s32.totalorder %s44, 0
      %p165 = por %p163, %p164
      %s166 = ssub.s32 %s45, %s57
      %p167 = scmp.eq.s32.totalorder %s166, 0
      %s169 = sadd.s32 %s168, 1
      %s170 = scalar_select %p167, %s168, %s169
      %p173 = pneg %p167
      %p174 = scmp.eq.s32.totalorder %s38, 1
      %p175 = por %p173, %p174
      %p176 = scmp.ne.s32.totalorder %s168, %s171
      %p177 = scmp.eq.s32.totalorder %s38, 0
      %p178 = por %p176, %p177
      %p179 = scmp.ne.s32.totalorder %s168, %s171
      %p180 = scmp.eq.s32.totalorder %s43, 1
      %p181 = por %p179, %p180
      %p182 = scmp.ne.s32.totalorder %s171, %s172
      %p183 = scmp.eq.s32.totalorder %s43, 0
      %p184 = por %p182, %p183
      %p185 = scmp.ne.s32.totalorder %s171, %s172
      %p186 = scmp.eq.s32.totalorder %s44, 1
      %p187 = por %p185, %p186
      %p189 = scmp.ne.s32.totalorder %s172, %s188
      %p190 = scmp.eq.s32.totalorder %s44, 0
      %p191 = por %p189, %p190
      %s192 = ssub.s32 %s45, %s57
      %s193 = ssub.s32 %s46, %s53
      %s194 = sor.u32 %s192, %s193
      %p195 = scmp.eq.s32.totalorder %s194, 0
      %s197 = sadd.s32 %s196, 1
      %s198 = scalar_select %p195, %s196, %s197
      %p201 = pneg %p195
      %p202 = scmp.eq.s32.totalorder %s38, 1
      %p203 = por %p201, %p202
      %p204 = scmp.ne.s32.totalorder %s196, %s199
      %p205 = scmp.eq.s32.totalorder %s38, 0
      %p206 = por %p204, %p205
      %p207 = scmp.ne.s32.totalorder %s196, %s199
      %p208 = scmp.eq.s32.totalorder %s43, 1
      %p209 = por %p207, %p208
      %p210 = scmp.ne.s32.totalorder %s199, %s200
      %p211 = scmp.eq.s32.totalorder %s43, 0
      %p212 = por %p210, %p211
      %p213 = scmp.ne.s32.totalorder %s199, %s200
      %p214 = scmp.eq.s32.totalorder %s44, 1
      %p215 = por %p213, %p214
      %p217 = scmp.ne.s32.totalorder %s200, %s216
      %p218 = scmp.eq.s32.totalorder %s44, 0
      %p219 = por %p217, %p218
      %s221 = sadd.s32 %s220, 1
      %p224 = scmp.eq.s32.totalorder %s38, 1
      %p225 = scmp.ne.s32.totalorder %s220, %s222
      %p226 = scmp.eq.s32.totalorder %s38, 0
      %p227 = por %p225, %p226
      %p228 = scmp.ne.s32.totalorder %s220, %s222
      %p229 = scmp.eq.s32.totalorder %s43, 1
      %p230 = por %p228, %p229
      %p231 = scmp.ne.s32.totalorder %s222, %s223
      %p232 = scmp.eq.s32.totalorder %s43, 0
      %p233 = por %p231, %p232
      %p234 = scmp.ne.s32.totalorder %s222, %s223
      %p235 = scmp.eq.s32.totalorder %s44, 1
      %p236 = por %p234, %p235
      %p238 = scmp.ne.s32.totalorder %s223, %s237
      %p239 = scmp.eq.s32.totalorder %s44, 0
      %p240 = por %p238, %p239
      %s242 = sadd.s32 %s241, 1
      %p245 = scmp.eq.s32.totalorder %s38, 1
      %p246 = scmp.ne.s32.totalorder %s241, %s243
      %p247 = scmp.eq.s32.totalorder %s38, 0
      %p248 = por %p246, %p247
      %p249 = scmp.ne.s32.totalorder %s241, %s243
      %p250 = scmp.eq.s32.totalorder %s43, 1
      %p251 = por %p249, %p250
      %p252 = scmp.ne.s32.totalorder %s243, %s244
      %p253 = scmp.eq.s32.totalorder %s43, 0
      %p254 = por %p252, %p253
      %p255 = scmp.ne.s32.totalorder %s243, %s244
      %p256 = scmp.eq.s32.totalorder %s44, 1
      %p257 = por %p255, %p256
      %p259 = scmp.ne.s32.totalorder %s244, %s258
      %p260 = scmp.eq.s32.totalorder %s44, 0
      %p261 = por %p259, %p260
      %s263 = sadd.s32 %s262, 1
      %p266 = scmp.eq.s32.totalorder %s38, 1
      %p267 = scmp.ne.s32.totalorder %s262, %s264
      %p268 = scmp.eq.s32.totalorder %s38, 0
      %p269 = por %p267, %p268
      %p270 = scmp.ne.s32.totalorder %s262, %s264
      %p271 = scmp.eq.s32.totalorder %s43, 1
      %p272 = por %p270, %p271
      %p273 = scmp.ne.s32.totalorder %s264, %s265
      %p274 = scmp.eq.s32.totalorder %s43, 0
      %p275 = por %p273, %p274
      %p276 = scmp.ne.s32.totalorder %s264, %s265
      %p277 = scmp.eq.s32.totalorder %s44, 1
      %p278 = por %p276, %p277
      %p280 = scmp.ne.s32.totalorder %s265, %s279
      %p281 = scmp.eq.s32.totalorder %s44, 0
      %p282 = por %p280, %p281
      %s284 = sadd.s32 %s283, 1
      %p287 = scmp.eq.s32.totalorder %s38, 1
      %p288 = scmp.ne.s32.totalorder %s283, %s285
      %p289 = scmp.eq.s32.totalorder %s38, 0
      %p290 = por %p288, %p289
      %p291 = scmp.ne.s32.totalorder %s283, %s285
      %p292 = scmp.eq.s32.totalorder %s43, 1
      %p293 = por %p291, %p292
      %p294 = scmp.ne.s32.totalorder %s285, %s286
      %p295 = scmp.eq.s32.totalorder %s43, 0
      %p296 = por %p294, %p295
      %p297 = scmp.ne.s32.totalorder %s285, %s286
      %p298 = scmp.eq.s32.totalorder %s44, 1
      %p299 = por %p297, %p298
      %p301 = scmp.ne.s32.totalorder %s286, %s300
      %p302 = scmp.eq.s32.totalorder %s44, 0
      %p303 = por %p301, %p302
      %s305 = sadd.s32 %s304, 1
      %p308 = scmp.eq.s32.totalorder %s38, 1
      %p309 = scmp.ne.s32.totalorder %s304, %s306
      %p310 = scmp.eq.s32.totalorder %s38, 0
      %p311 = por %p309, %p310
      %p312 = scmp.ne.s32.totalorder %s304, %s306
      %p313 = scmp.eq.s32.totalorder %s43, 1
      %p314 = por %p312, %p313
      %p315 = scmp.ne.s32.totalorder %s306, %s307
      %p316 = scmp.eq.s32.totalorder %s43, 0
      %p317 = por %p315, %p316
      %p318 = scmp.ne.s32.totalorder %s306, %s307
      %p319 = scmp.eq.s32.totalorder %s44, 1
      %p320 = por %p318, %p319
      %p322 = scmp.ne.s32.totalorder %s307, %s321
      %p323 = scmp.eq.s32.totalorder %s44, 0
      %p324 = por %p322, %p323
      %s325 = ssub.s32 %s45, %s57
      %s326 = ssub.s32 %s46, %s53
      %s327 = sor.u32 %s325, %s326
      %p328 = scmp.eq.s32.totalorder %s327, 0
      %s330 = sadd.s32 %s329, 1
      %s331 = scalar_select %p328, %s329, %s330
      %p334 = pneg %p328
      %p335 = scmp.eq.s32.totalorder %s38, 1
      %p336 = por %p334, %p335
      %p337 = scmp.ne.s32.totalorder %s329, %s332
      %p338 = scmp.eq.s32.totalorder %s38, 0
      %p339 = por %p337, %p338
      %p340 = scmp.ne.s32.totalorder %s329, %s332
      %p341 = scmp.eq.s32.totalorder %s43, 1
      %p342 = por %p340, %p341
      %p343 = scmp.ne.s32.totalorder %s332, %s333
      %p344 = scmp.eq.s32.totalorder %s43, 0
      %p345 = por %p343, %p344
      %p346 = scmp.ne.s32.totalorder %s332, %s333
      %p347 = scmp.eq.s32.totalorder %s44, 1
      %p348 = por %p346, %p347
      %p350 = scmp.ne.s32.totalorder %s333, %s349
      %p351 = scmp.eq.s32.totalorder %s44, 0
      %p352 = por %p350, %p351
      %s353 = ssub.s32 %s45, %s57
      %s354 = ssub.s32 %s46, %s53
      %s355 = sor.u32 %s353, %s354
      %p356 = scmp.eq.s32.totalorder %s355, 0
      %s358 = sadd.s32 %s357, 1
      %s359 = scalar_select %p356, %s357, %s358
      %p362 = pneg %p356
      %p363 = scmp.eq.s32.totalorder %s38, 1
      %p364 = por %p362, %p363
      %p365 = scmp.ne.s32.totalorder %s357, %s360
      %p366 = scmp.eq.s32.totalorder %s38, 0
      %p367 = por %p365, %p366
      %p368 = scmp.ne.s32.totalorder %s357, %s360
      %p369 = scmp.eq.s32.totalorder %s43, 1
      %p370 = por %p368, %p369
      %p371 = scmp.ne.s32.totalorder %s360, %s361
      %p372 = scmp.eq.s32.totalorder %s43, 0
      %p373 = por %p371, %p372
      %p374 = scmp.ne.s32.totalorder %s360, %s361
      %p375 = scmp.eq.s32.totalorder %s44, 1
      %p376 = por %p374, %p375
      %p378 = scmp.ne.s32.totalorder %s361, %s377
      %p379 = scmp.eq.s32.totalorder %s44, 0
      %p380 = por %p378, %p379
      %s381 = ssub.s32 %s45, %s57
      %s382 = ssub.s32 %s46, %s53
      %s383 = sor.u32 %s381, %s382
      %p384 = scmp.eq.s32.totalorder %s383, 0
      %s386 = sadd.s32 %s385, 1
      %s387 = scalar_select %p384, %s385, %s386
      %p390 = pneg %p384
      %p391 = scmp.eq.s32.totalorder %s38, 1
      %p392 = por %p390, %p391
      %p393 = scmp.ne.s32.totalorder %s385, %s388
      %p394 = scmp.eq.s32.totalorder %s38, 0
      %p395 = por %p393, %p394
      %p396 = scmp.ne.s32.totalorder %s385, %s388
      %p397 = scmp.eq.s32.totalorder %s43, 1
      %p398 = por %p396, %p397
      %p399 = scmp.ne.s32.totalorder %s388, %s389
      %p400 = scmp.eq.s32.totalorder %s43, 0
      %p401 = por %p399, %p400
      %p402 = scmp.ne.s32.totalorder %s388, %s389
      %p403 = scmp.eq.s32.totalorder %s44, 1
      %p404 = por %p402, %p403
      %p406 = scmp.ne.s32.totalorder %s389, %s405
      %p407 = scmp.eq.s32.totalorder %s44, 0
      %p408 = por %p406, %p407
      %p409 = scmp.le.s32.totalorder 1, %s38
      %p410 = scmp.lt.s32.totalorder %s38, 3
      %p411 = pnand %p409, %p410
      %p412 = pneg %p411
      // Predicated region
      $region9: #{tpu_custom_call.1} parent=5 // pred_check
        _
      $region10: #{tpu_custom_call.1} parent=5 // pred_check_branch
        %414 = sbr.rel (%p411) target = $region12
      $region11: #{tpu_custom_call.1} parent=5 // pred_region
        %s415 = ssub.s32 %s38, 1
        // Predicated region
        $region13: #{tpu_custom_call.1} parent=11 // pred_check
          %p416 = pneg %p233
        $region14: #{tpu_custom_call.1} parent=11 // pred_check_branch
          %418 = sbr.rel (%p416) target = $region16
        $region15: #{tpu_custom_call.1} parent=11 // pred_region
          %s420 = ssub.s32 256, 256
          %421 = vsyncadd [#allocation13], %s420
          %s422 = sshll.u32 [#allocation12], 4
          %s423 = int_to_ptr.vmem [resolvable:$true] %s422
          %428 = dma.hbm_to_vmem [thread:$0]  %s6, 256, %s423, [#allocation13], 128, 128, 8
        $region16: #{tpu_custom_call.1} parent=11 // pred_fallthru
          _
        // Predicated region
        $region17: #{tpu_custom_call.1} parent=11 // pred_check
          %p429 = pneg %p254
        $region18: #{tpu_custom_call.1} parent=11 // pred_check_branch
          %431 = sbr.rel (%p429) target = $region20
        $region19: #{tpu_custom_call.1} parent=11 // pred_region
          %s433 = ssub.s32 256, 256
          %434 = vsyncadd [#allocation13], %s433
          %s435 = sshll.u32 [#allocation14], 4
          %s436 = int_to_ptr.vmem [resolvable:$true] %s435
          %441 = dma.hbm_to_vmem [thread:$0]  %s7, 256, %s436, [#allocation13], 128, 128, 8
        $region20: #{tpu_custom_call.1} parent=11 // pred_fallthru
          _
        // Predicated region
        $region21: #{tpu_custom_call.1} parent=11 // pred_check
          %p442 = pneg %p275
        $region22: #{tpu_custom_call.1} parent=11 // pred_check_branch
          %444 = sbr.rel (%p442) target = $region24
        $region23: #{tpu_custom_call.1} parent=11 // pred_region
          _
        $region24: #{tpu_custom_call.1} parent=11 // pred_fallthru
          _
        // Predicated region
        $region25: #{tpu_custom_call.1} parent=11 // pred_check
          %p445 = pneg %p296
        $region26: #{tpu_custom_call.1} parent=11 // pred_check_branch
          %447 = sbr.rel (%p445) target = $region28
        $region27: #{tpu_custom_call.1} parent=11 // pred_region
          _
        $region28: #{tpu_custom_call.1} parent=11 // pred_fallthru
          _
        // Predicated region
        $region29: #{tpu_custom_call.1} parent=11 // pred_check
          %p448 = pneg %p317
        $region30: #{tpu_custom_call.1} parent=11 // pred_check_branch
          %450 = sbr.rel (%p448) target = $region32
        $region31: #{tpu_custom_call.1} parent=11 // pred_region
          _
        $region32: #{tpu_custom_call.1} parent=11 // pred_fallthru
          _
      $region12: #{tpu_custom_call.1} parent=5 // pred_fallthru
        _
      %p451 = scmp.lt.s32.totalorder %s38, 2
      // Predicated region
      $region33: #{tpu_custom_call.1} parent=5 // pred_check
        %p452 = pneg %p451
      $region34: #{tpu_custom_call.1} parent=5 // pred_check_branch
        %454 = sbr.rel (%p452) target = $region36
      $region35: #{tpu_custom_call.1} parent=5 // pred_region
        // Predicated region
        $region37: #{tpu_custom_call.1} parent=35 // pred_check
          %p455 = pneg %p72
        $region38: #{tpu_custom_call.1} parent=35 // pred_check_branch
          %457 = sbr.rel (%p455) target = $region40
        $region39: #{tpu_custom_call.1} parent=35 // pred_region
          %s458 = sand.u32 %s62, 1
          %s459 = scalar_lea.sflag [#allocation4], %s458
          %s460 = sand.u32 %s62, 1
          %s461 = smul.addr %s460, 32
          %s462 = scalar_lea.vmem [#allocation3], %s461
          %s464 = ssub.s32 512, 512
          %465 = vsyncadd %s459, %s464
          %s466 = smul.addr %s45, 4
          %s467 = sadd.s32 %s46, %s466
          %s468 = smul.addr %s467, 128
          %s469 = scalar_lea.hbm %s0, %s468
          %s470 = sshll.u32 %s462, 4
          %s471 = int_to_ptr.vmem [resolvable:$true] %s470
          %476 = dma.hbm_to_vmem [thread:$0]  %s469, 512, %s471, %s459, 128, 128, 8
        $region40: #{tpu_custom_call.1} parent=35 // pred_fallthru
          _
        // Predicated region
        $region41: #{tpu_custom_call.1} parent=35 // pred_check
          %p477 = pneg %p98
        $region42: #{tpu_custom_call.1} parent=35 // pred_check_branch
          %479 = sbr.rel (%p477) target = $region44
        $region43: #{tpu_custom_call.1} parent=35 // pred_region
          %s480 = sand.u32 %s38, 1
          %s481 = scalar_lea.sflag [#allocation7], %s480
          %s482 = sand.u32 %s88, 1
          %s483 = smul.addr %s482, 32
          %s484 = scalar_lea.vmem [#allocation6], %s483
          %s486 = ssub.s32 512, 512
          %487 = vsyncadd %s481, %s486
          %s488 = smul.addr %s45, 4
          %s489 = smul.addr %s488, 128
          %s490 = scalar_lea.hbm %s1, %s489
          %s491 = sshll.u32 %s484, 4
          %s492 = int_to_ptr.vmem [resolvable:$true] %s491
          %497 = dma.hbm_to_vmem [thread:$0]  %s490, 512, %s492, %s481, 128, 128, 8
        $region44: #{tpu_custom_call.1} parent=35 // pred_fallthru
          _
        // Predicated region
        $region45: #{tpu_custom_call.1} parent=35 // pred_check
          %p498 = pneg %p124
        $region46: #{tpu_custom_call.1} parent=35 // pred_check_branch
          %500 = sbr.rel (%p498) target = $region48
        $region47: #{tpu_custom_call.1} parent=35 // pred_region
          %s501 = sand.u32 %s38, 1
          %s502 = scalar_lea.sflag [#allocation7], %s501
          %s503 = sand.u32 %s114, 1
          %s504 = smul.addr %s503, 32
          %s505 = scalar_lea.vmem [#allocation8], %s504
          %s507 = ssub.s32 512, 512
          %508 = vsyncadd %s502, %s507
          %s509 = smul.addr %s45, 4
          %s510 = smul.addr %s509, 128
          %s511 = scalar_lea.hbm %s2, %s510
          %s512 = sshll.u32 %s505, 4
          %s513 = int_to_ptr.vmem [resolvable:$true] %s512
          %518 = dma.hbm_to_vmem [thread:$0]  %s511, 512, %s513, %s502, 128, 128, 8
        $region48: #{tpu_custom_call.1} parent=35 // pred_fallthru
          _
        // Predicated region
        $region49: #{tpu_custom_call.1} parent=35 // pred_check
          %p519 = pneg %p152
        $region50: #{tpu_custom_call.1} parent=35 // pred_check_branch
          %521 = sbr.rel (%p519) target = $region52
        $region51: #{tpu_custom_call.1} parent=35 // pred_region
          %s522 = sand.u32 %s38, 1
          %s523 = scalar_lea.sflag [#allocation10], %s522
          %s524 = sand.u32 %s142, 1
          %s525 = smul.addr %s524, 8
          %s526 = scalar_lea.vmem [#allocation9], %s525
          %s528 = ssub.s32 128, 128
          %529 = vsyncadd %s523, %s528
          %s530 = sadd.s32 %s46, %s45
          %s531 = smul.addr %s530, 128
          %s532 = scalar_lea.hbm %s3, %s531
          %s534 = sshll.u32 %s526, 4
          %s535 = int_to_ptr.vmem [resolvable:$true] %s534
          %537 = dma.hbm_to_vmem [thread:$0]  %s532, 128, %s535, %s523
        $region52: #{tpu_custom_call.1} parent=35 // pred_fallthru
          _
        // Predicated region
        $region53: #{tpu_custom_call.1} parent=35 // pred_check
          %p538 = pneg %p178
        $region54: #{tpu_custom_call.1} parent=35 // pred_check_branch
          %540 = sbr.rel (%p538) target = $region56
        $region55: #{tpu_custom_call.1} parent=35 // pred_region
          %p541 = scmp.lt.s32.totalorder %s45, 1
          %s542 = scalar_select %p541, %s45, 1
          %s543 = smul.addr %s542, 8
          %s544 = scalar_lea.vmem %s4, %s543
        $region56: #{tpu_custom_call.1} parent=35 // pred_fallthru
          _
        // Predicated region
        $region57: #{tpu_custom_call.1} parent=35 // pred_check
          %p545 = pneg %p206
        $region58: #{tpu_custom_call.1} parent=35 // pred_check_branch
          %547 = sbr.rel (%p545) target = $region60
        $region59: #{tpu_custom_call.1} parent=35 // pred_region
          %s548 = sand.u32 %s38, 1
          %s549 = scalar_lea.sflag [#allocation10], %s548
          %s550 = sand.u32 %s196, 1
          %s551 = smul.addr %s550, 8
          %s552 = scalar_lea.vmem [#allocation11], %s551
          %s554 = ssub.s32 128, 128
          %555 = vsyncadd %s549, %s554
          %s556 = sadd.s32 %s46, %s45
          %s557 = smul.addr %s556, 128
          %s558 = scalar_lea.hbm %s5, %s557
          %s560 = sshll.u32 %s552, 4
          %s561 = int_to_ptr.vmem [resolvable:$true] %s560
          %563 = dma.hbm_to_vmem [thread:$0]  %s558, 128, %s561, %s549
        $region60: #{tpu_custom_call.1} parent=35 // pred_fallthru
          _
      $region36: #{tpu_custom_call.1} parent=5 // pred_fallthru
        _
      %p564 = scmp.le.s32.totalorder 1, %s38
      %p565 = scmp.lt.s32.totalorder %s38, 3
      %p566 = pnand %p564, %p565
      %p567 = pneg %p566
      // Predicated region
      $region61: #{tpu_custom_call.1} parent=5 // pred_check
        _
      $region62: #{tpu_custom_call.1} parent=5 // pred_check_branch
        %569 = sbr.rel (%p566) target = $region64
      $region63: #{tpu_custom_call.1} parent=5 // pred_region
        %s570 = ssub.s32 %s38, 1
        %s571 = sand.u32 %s65, 1
        %s572 = scalar_lea.sflag [#allocation4], %s571
        %s573 = sand.u32 %s65, 1
        %s574 = smul.addr %s573, 32
        %s575 = scalar_lea.vmem [#allocation3], %s574
        // Predicated region
        $region65: #{tpu_custom_call.1} parent=63 // pred_check
          %p576 = pneg %p78
        $region66: #{tpu_custom_call.1} parent=63 // pred_check_branch
          %578 = sbr.rel (%p576) target = $region68
        $region67: #{tpu_custom_call.1} parent=63 // pred_region
          %579 = dma.done %s572, 512
        $region68: #{tpu_custom_call.1} parent=63 // pred_fallthru
          _
        %s580 = sand.u32 %s43, 1
        %s581 = scalar_lea.sflag [#allocation7], %s580
        %s582 = sand.u32 %s91, 1
        %s583 = smul.addr %s582, 32
        %s584 = scalar_lea.vmem [#allocation6], %s583
        // Predicated region
        $region69: #{tpu_custom_call.1} parent=63 // pred_check
          %p585 = pneg %p104
        $region70: #{tpu_custom_call.1} parent=63 // pred_check_branch
          %587 = sbr.rel (%p585) target = $region72
        $region71: #{tpu_custom_call.1} parent=63 // pred_region
          %588 = dma.done %s581, 512
        $region72: #{tpu_custom_call.1} parent=63 // pred_fallthru
          _
        %s589 = sand.u32 %s43, 1
        %s590 = scalar_lea.sflag [#allocation7], %s589
        %s591 = sand.u32 %s117, 1
        %s592 = smul.addr %s591, 32
        %s593 = scalar_lea.vmem [#allocation8], %s592
        // Predicated region
        $region73: #{tpu_custom_call.1} parent=63 // pred_check
          %p594 = pneg %p130
        $region74: #{tpu_custom_call.1} parent=63 // pred_check_branch
          %596 = sbr.rel (%p594) target = $region76
        $region75: #{tpu_custom_call.1} parent=63 // pred_region
          %597 = dma.done %s590, 512
        $region76: #{tpu_custom_call.1} parent=63 // pred_fallthru
          _
        %s598 = sand.u32 %s43, 1
        %s599 = scalar_lea.sflag [#allocation10], %s598
        %s600 = sand.u32 %s145, 1
        %s601 = smul.addr %s600, 8
        %s602 = scalar_lea.vmem [#allocation9], %s601
        // Predicated region
        $region77: #{tpu_custom_call.1} parent=63 // pred_check
          %p603 = pneg %p158
        $region78: #{tpu_custom_call.1} parent=63 // pred_check_branch
          %605 = sbr.rel (%p603) target = $region80
        $region79: #{tpu_custom_call.1} parent=63 // pred_region
          %606 = dma.done %s599, 128
        $region80: #{tpu_custom_call.1} parent=63 // pred_fallthru
          _
        %s607 = sand.u32 %s43, 1
        %s608 = scalar_lea.sflag [#allocation10], %s607
        %s609 = sand.u32 %s199, 1
        %s610 = smul.addr %s609, 8
        %s611 = scalar_lea.vmem [#allocation11], %s610
        // Predicated region
        $region81: #{tpu_custom_call.1} parent=63 // pred_check
          %p612 = pneg %p212
        $region82: #{tpu_custom_call.1} parent=63 // pred_check_branch
          %614 = sbr.rel (%p612) target = $region84
        $region83: #{tpu_custom_call.1} parent=63 // pred_region
          %615 = dma.done %s608, 128
        $region84: #{tpu_custom_call.1} parent=63 // pred_fallthru
          _
        // Predicated region
        $region85: #{tpu_custom_call.1} parent=63 // pred_check
          %p616 = pneg %p233
        $region86: #{tpu_custom_call.1} parent=63 // pred_check_branch
          %618 = sbr.rel (%p616) target = $region88
        $region87: #{tpu_custom_call.1} parent=63 // pred_region
          %619 = dma.done [#allocation13], 256
        $region88: #{tpu_custom_call.1} parent=63 // pred_fallthru
          _
        // Predicated region
        $region89: #{tpu_custom_call.1} parent=63 // pred_check
          %p620 = pneg %p254
        $region90: #{tpu_custom_call.1} parent=63 // pred_check_branch
          %622 = sbr.rel (%p620) target = $region92
        $region91: #{tpu_custom_call.1} parent=63 // pred_region
          %623 = dma.done [#allocation13], 256
        $region92: #{tpu_custom_call.1} parent=63 // pred_fallthru
          _
        %s624 = sand.u32 %s65, 1
        %s625 = scalar_lea.sflag [#allocation4], %s624
        %s626 = sand.u32 %s65, 1
        %s627 = smul.addr %s626, 32
        %s628 = scalar_lea.vmem [#allocation3], %s627
        %p629 = pneg %p78
        %p630 = pneg %p75
        %s631 = sand.u32 %s43, 1
        %s632 = scalar_lea.sflag [#allocation7], %s631
        %s633 = sand.u32 %s91, 1
        %s634 = smul.addr %s633, 32
        %s635 = scalar_lea.vmem [#allocation6], %s634
        %p636 = pneg %p104
        %p637 = pneg %p101
        %s638 = sand.u32 %s43, 1
        %s639 = scalar_lea.sflag [#allocation7], %s638
        %s640 = sand.u32 %s117, 1
        %s641 = smul.addr %s640, 32
        %s642 = scalar_lea.vmem [#allocation8], %s641
        %p643 = pneg %p130
        %p644 = pneg %p127
        %s645 = sand.u32 %s43, 1
        %s646 = scalar_lea.sflag [#allocation10], %s645
        %s647 = sand.u32 %s145, 1
        %s648 = smul.addr %s647, 8
        %s649 = scalar_lea.vmem [#allocation9], %s648
        %p650 = pneg %p158
        %p651 = pneg %p155
        %p652 = scmp.lt.s32.totalorder %s47, 1
        %s653 = scalar_select %p652, %s47, 1
        %s654 = smul.addr %s653, 8
        %s655 = scalar_lea.vmem %s4, %s654
        %p656 = pneg %p184
        %p657 = pneg %p181
        %s658 = sand.u32 %s43, 1
        %s659 = scalar_lea.sflag [#allocation10], %s658
        %s660 = sand.u32 %s199, 1
        %s661 = smul.addr %s660, 8
        %s662 = scalar_lea.vmem [#allocation11], %s661
        %p663 = pneg %p212
        %p664 = pneg %p209
        %p665 = pneg %p233
        %p666 = pneg %p230
        %p667 = pneg %p254
        %p668 = pneg %p251
        %p669 = pneg %p275
        %p670 = pneg %p272
        %p671 = pneg %p296
        %p672 = pneg %p293
        %p673 = pneg %p317
        %p674 = pneg %p314
        %p675 = pneg %p345
        %p676 = pneg %p342
        %s677 = sand.u32 %s332, 1
        %s678 = scalar_lea.sflag [#allocation5], %s677
        %s679 = sand.u32 %s332, 1
        %s680 = smul.addr %s679, 32
        %s681 = scalar_lea.vmem [#allocation15], %s680
        %p682 = pneg %p373
        %p683 = pneg %p370
        %s684 = sand.u32 %s43, 1
        %s685 = scalar_lea.sflag [#allocation17], %s684
        %s686 = sand.u32 %s360, 1
        %s687 = smul.addr %s686, 32
        %s688 = scalar_lea.vmem [#allocation16], %s687
        %p689 = pneg %p401
        %p690 = pneg %p398
        %s691 = sand.u32 %s43, 1
        %s692 = scalar_lea.sflag [#allocation17], %s691
        %s693 = sand.u32 %s388, 1
        %s694 = smul.addr %s693, 8
        %s695 = scalar_lea.vmem [#allocation18], %s694
        %p696 = scmp.lt.s32.totalorder %s47, 1
        %s697 = scalar_select %p696, %s47, 1
        %s698 = smul.addr %s697, 8
        %s699 = scalar_lea.vmem %s4, %s698
        %v701 = vld [vmem:[%s575] sm:$0xff]
        %v702 = vld [vmem:[%s575 + $0x8] sm:$0xff]
        %v703 = vld [vmem:[%s575 + $0x10] sm:$0xff]
        %v704 = vld [vmem:[%s575 + $0x18] sm:$0xff]
        %v705 = vld [vmem:[%s584] sm:$0xff]
        %v706 = vld [vmem:[%s584 + $0x8] sm:$0xff]
        %v707 = vld [vmem:[%s584 + $0x10] sm:$0xff]
        %v708 = vld [vmem:[%s584 + $0x18] sm:$0xff]
        %v709 = vld [vmem:[%s593] sm:$0xff]
        %v710 = vld [vmem:[%s593 + $0x8] sm:$0xff]
        %v711 = vld [vmem:[%s593 + $0x10] sm:$0xff]
        %v712 = vld [vmem:[%s593 + $0x18] sm:$0xff]
        %v713 = vld [vmem:[%s602] sm:$0xff]
        %v714 = vld [vmem:[%s699] sm:$0xff]
        %v715 = vld [vmem:[%s611] sm:$0xff]
        %v716 = vld [vmem:[#allocation12] sm:$0xff]
        %v717 = vld [vmem:[#allocation12 + $0x8] sm:$0xff]
        %vm718 = vcmask 130048
        %v720 = vsel %vm718, %v713, 0
        %722 = vmatprep.subr.mxu0 0.0
        %723 = vmatpush1.msra.mxu0 %v716
        %724 = vmatprep.subr.mxu0 0.0
        %725 = vmatpush1.msra.mxu0 %v717
        %726 = vmatprep.subr.mxu0 0.0
        %727 = vmatpush1.msra.mxu0 0.0
        %728 = vmatprep.subr.mxu0 0.0
        %729 = vmatpush1.msra.mxu0 0.0
        %730 = vmatprep.subr.mxu0 0.0
        %731 = vmatpush1.msra.mxu0 0.0
        %732 = vmatprep.subr.mxu0 0.0
        %733 = vmatpush1.msra.mxu0 0.0
        %734 = vmatprep.subr.mxu0 0.0
        %735 = vmatpush1.msra.mxu0 0.0
        %736 = vmatprep.subr.mxu0 0.0
        %737 = vmatpush1.msra.mxu0 0.0
        %738 = vmatprep.subr.mxu0 0.0
        %739 = vmatpush1.msra.mxu0 0.0
        %740 = vmatprep.subr.mxu0 0.0
        %741 = vmatpush1.msra.mxu0 0.0
        %742 = vmatprep.subr.mxu0 0.0
        %743 = vmatpush1.msra.mxu0 0.0
        %744 = vmatprep.subr.mxu0 0.0
        %745 = vmatpush1.msra.mxu0 0.0
        %746 = vmatprep.subr.mxu0 0.0
        %747 = vmatpush1.msra.mxu0 0.0
        %748 = vmatprep.subr.mxu0 0.0
        %749 = vmatpush1.msra.mxu0 0.0
        %750 = vmatprep.subr.mxu0 0.0
        %751 = vmatpush1.msra.mxu0 0.0
        %752 = vmatprep.subr.mxu0 0.0
        %753 = vmatpush1.msra.mxu0 0.0
        %754 = vmatprep.subr.mxu0 0.0
        %755 = vmatpush1.msra.mxu0 0.0
        %756 = vmatprep.subr.mxu0 0.0
        %757 = vmatpush1.msra.mxu0 0.0
        %758 = vmatprep.subr.mxu0 0.0
        %759 = vmatpush1.msra.mxu0 0.0
        %760 = vmatprep.subr.mxu0 0.0
        %761 = vmatpush1.msra.mxu0 0.0
        %762 = vmatprep.subr.mxu0 0.0
        %763 = vmatpush1.msra.mxu0 0.0
        %764 = vmatprep.subr.mxu0 0.0
        %765 = vmatpush1.msra.mxu0 0.0
        %766 = vmatprep.subr.mxu0 0.0
        %767 = vmatpush1.msra.mxu0 0.0
        %768 = vmatprep.subr.mxu0 0.0
        %769 = vmatpush1.msra.mxu0 0.0
        %770 = vmatprep.subr.mxu0 0.0
        %771 = vmatpush1.msra.mxu0 0.0
        %772 = vmatprep.subr.mxu0 0.0
        %773 = vmatpush1.msra.mxu0 0.0
        %774 = vmatprep.subr.mxu0 0.0
        %775 = vmatpush1.msra.mxu0 0.0
        %776 = vmatprep.subr.mxu0 0.0
        %777 = vmatpush1.msra.mxu0 0.0
        %778 = vmatprep.subr.mxu0 0.0
        %779 = vmatpush1.msra.mxu0 0.0
        %780 = vmatprep.subr.mxu0 0.0
        %781 = vmatpush1.msra.mxu0 0.0
        %782 = vmatprep.subr.mxu0 0.0
        %783 = vmatpush1.msra.mxu0 0.0
        %784 = vmatprep.subr.mxu0 0.0
        %785 = vmatpush1.msra.mxu0 0.0
        %786 = vmatprep.mubr.f32.mxu0 0.0
        %787 = vmatmul.mubr.f32.gmra.mrb[0].mxu0 %v720
        %v788 = vpop.f32.mrb[0].mxu0
        %v789 = vadd.f32 0.0, %v788
        %v790 = vpop.f32.mrb[0].mxu0
        %791 = vdwg.mxu0
        %v792 = vld [vmem:[#allocation14] sm:$0xff]
        %v793 = vld [vmem:[#allocation14 + $0x8] sm:$0xff]
        %v795 = vsel %vm718, %v714, 0
        %797 = vmatprep.subr.mxu0 0.0
        %798 = vmatpush1.msra.mxu0 %v792
        %799 = vmatprep.subr.mxu0 0.0
        %800 = vmatpush1.msra.mxu0 %v793
        %801 = vmatprep.subr.mxu0 0.0
        %802 = vmatpush1.msra.mxu0 0.0
        %803 = vmatprep.subr.mxu0 0.0
        %804 = vmatpush1.msra.mxu0 0.0
        %805 = vmatprep.subr.mxu0 0.0
        %806 = vmatpush1.msra.mxu0 0.0
        %807 = vmatprep.subr.mxu0 0.0
        %808 = vmatpush1.msra.mxu0 0.0
        %809 = vmatprep.subr.mxu0 0.0
        %810 = vmatpush1.msra.mxu0 0.0
        %811 = vmatprep.subr.mxu0 0.0
        %812 = vmatpush1.msra.mxu0 0.0
        %813 = vmatprep.subr.mxu0 0.0
        %814 = vmatpush1.msra.mxu0 0.0
        %815 = vmatprep.subr.mxu0 0.0
        %816 = vmatpush1.msra.mxu0 0.0
        %817 = vmatprep.subr.mxu0 0.0
        %818 = vmatpush1.msra.mxu0 0.0
        %819 = vmatprep.subr.mxu0 0.0
        %820 = vmatpush1.msra.mxu0 0.0
        %821 = vmatprep.subr.mxu0 0.0
        %822 = vmatpush1.msra.mxu0 0.0
        %823 = vmatprep.subr.mxu0 0.0
        %824 = vmatpush1.msra.mxu0 0.0
        %825 = vmatprep.subr.mxu0 0.0
        %826 = vmatpush1.msra.mxu0 0.0
        %827 = vmatprep.subr.mxu0 0.0
        %828 = vmatpush1.msra.mxu0 0.0
        %829 = vmatprep.subr.mxu0 0.0
        %830 = vmatpush1.msra.mxu0 0.0
        %831 = vmatprep.subr.mxu0 0.0
        %832 = vmatpush1.msra.mxu0 0.0
        %833 = vmatprep.subr.mxu0 0.0
        %834 = vmatpush1.msra.mxu0 0.0
        %835 = vmatprep.subr.mxu0 0.0
        %836 = vmatpush1.msra.mxu0 0.0
        %837 = vmatprep.subr.mxu0 0.0
        %838 = vmatpush1.msra.mxu0 0.0
        %839 = vmatprep.subr.mxu0 0.0
        %840 = vmatpush1.msra.mxu0 0.0
        %841 = vmatprep.subr.mxu0 0.0
        %842 = vmatpush1.msra.mxu0 0.0
        %843 = vmatprep.subr.mxu0 0.0
        %844 = vmatpush1.msra.mxu0 0.0
        %845 = vmatprep.subr.mxu0 0.0
        %846 = vmatpush1.msra.mxu0 0.0
        %847 = vmatprep.subr.mxu0 0.0
        %848 = vmatpush1.msra.mxu0 0.0
        %849 = vmatprep.subr.mxu0 0.0
        %850 = vmatpush1.msra.mxu0 0.0
        %851 = vmatprep.subr.mxu0 0.0
        %852 = vmatpush1.msra.mxu0 0.0
        %853 = vmatprep.subr.mxu0 0.0
        %854 = vmatpush1.msra.mxu0 0.0
        %855 = vmatprep.subr.mxu0 0.0
        %856 = vmatpush1.msra.mxu0 0.0
        %857 = vmatprep.subr.mxu0 0.0
        %858 = vmatpush1.msra.mxu0 0.0
        %859 = vmatprep.subr.mxu0 0.0
        %860 = vmatpush1.msra.mxu0 0.0
        %861 = vmatprep.mubr.f32.mxu0 0.0
        %862 = vmatmul.mubr.f32.gmra.mrb[0].mxu0 %v795
        %v863 = vpop.f32.mrb[0].mxu0
        %v864 = vadd.f32 0.0, %v863
        %v865 = vpop.f32.mrb[0].mxu0
        %866 = vdwg.mxu0
        %v868 = vcombine.high %v789, %v789
        %v870 = vunpack.c.l.s4 1966171168
        %v871 = vunpack.c.0.s8 %v870
        %v872 = vlaneseq
        %v873 = vshrl.u32 %v872, 7
        %v874 = vsub.s32 %v871, %v873
        %v875 = vrot.slane %v789, %v874
        %v877 = vunpack.c.l.s4 1966171168
        %v878 = vunpack.c.0.s8 %v877
        %v879 = vlaneseq
        %v880 = vshrl.u32 %v879, 7
        %v881 = vsub.s32 %v878, %v880
        %v882 = vrot.slane %v868, %v881
        %v883 = vcombine.high %v875, %v875
        %v884 = vcombine.high %v882, %v882
        %v886 = vunpack.c.l.s4 1966171168
        %v887 = vunpack.c.0.s8 %v886
        %v888 = vlaneseq
        %v889 = vshrl.u32 %v888, 7
        %v890 = vsub.s32 %v887, %v889
        %v891 = vrot.slane %v875, %v890
        %v893 = vunpack.c.l.s4 1966171168
        %v894 = vunpack.c.0.s8 %v893
        %v895 = vlaneseq
        %v896 = vshrl.u32 %v895, 7
        %v897 = vsub.s32 %v894, %v896
        %v898 = vrot.slane %v882, %v897
        %v900 = vunpack.c.l.s4 1966171168
        %v901 = vunpack.c.0.s8 %v900
        %v902 = vlaneseq
        %v903 = vshrl.u32 %v902, 7
        %v904 = vsub.s32 %v901, %v903
        %v905 = vrot.slane %v883, %v904
        %v907 = vunpack.c.l.s4 1966171168
        %v908 = vunpack.c.0.s8 %v907
        %v909 = vlaneseq
        %v910 = vshrl.u32 %v909, 7
        %v911 = vsub.s32 %v908, %v910
        %v912 = vrot.slane %v884, %v911
        %v913 = vcombine.high %v891, %v891
        %v914 = vcombine.high %v898, %v898
        %v915 = vcombine.high %v905, %v905
        %v916 = vcombine.high %v912, %v912
        %v917 = vlaneseq
        %v918 = vshrl.u32 %v917, 7
        %v919 = vsub.s32 0, %v918
        %v920 = vrot.slane %v891, %v919
        %v921 = vlaneseq
        %v922 = vshrl.u32 %v921, 7
        %v923 = vsub.s32 0, %v922
        %v924 = vrot.slane %v905, %v923
        %v925 = vlaneseq
        %v926 = vshrl.u32 %v925, 7
        %v927 = vsub.s32 0, %v926
        %v928 = vrot.slane %v913, %v927
        %v929 = vlaneseq
        %v930 = vshrl.u32 %v929, 7
        %v931 = vsub.s32 0, %v930
        %v932 = vrot.slane %v915, %v931
        %v933 = vlaneseq
        %v934 = vshrl.u32 %v933, 7
        %v935 = vsub.s32 0, %v934
        %v936 = vrot.slane %v898, %v935
        %v937 = vlaneseq
        %v938 = vshrl.u32 %v937, 7
        %v939 = vsub.s32 0, %v938
        %v940 = vrot.slane %v912, %v939
        %v941 = vlaneseq
        %v942 = vshrl.u32 %v941, 7
        %v943 = vsub.s32 0, %v942
        %v944 = vrot.slane %v914, %v943
        %v945 = vlaneseq
        %v946 = vshrl.u32 %v945, 7
        %v947 = vsub.s32 0, %v946
        %v948 = vrot.slane %v916, %v947
        %v957 = vadd.f32 %v920, %v864
        %v958 = vadd.f32 %v924, %v864
        %v959 = vadd.f32 %v928, %v864
        %v960 = vadd.f32 %v932, %v864
        %v961 = vadd.f32 %v936, %v864
        %v962 = vadd.f32 %v940, %v864
        %v963 = vadd.f32 %v944, %v864
        %v964 = vadd.f32 %v948, %v864
        %v965 = vld [vmem:[%s8] sm:$0x1]
        %v967 = vlaneseq
        %v968 = vshrl.u32 %v967, 7
        %v969 = vsub.s32 0, %v968
        %v970 = vrot.slane %v965, %v969
        %v972 = vadd.f32 %v957, %v970
        %v973 = vadd.f32 %v958, %v970
        %v974 = vadd.f32 %v959, %v970
        %v975 = vadd.f32 %v960, %v970
        %v976 = vadd.f32 %v961, %v970
        %v977 = vadd.f32 %v962, %v970
        %v978 = vadd.f32 %v963, %v970
        %v979 = vadd.f32 %v964, %v970
        %v980 = vmax.f32 %v972, 0.0
        %v981 = vmax.f32 %v973, 0.0
        %v982 = vmax.f32 %v974, 0.0
        %v983 = vmax.f32 %v975, 0.0
        %v984 = vmax.f32 %v976, 0.0
        %v985 = vmax.f32 %v977, 0.0
        %v986 = vmax.f32 %v978, 0.0
        %v987 = vmax.f32 %v979, 0.0
        %v988 = vld [vmem:[%s9] sm:$0x1]
        %v990 = vlaneseq
        %v991 = vshrl.u32 %v990, 7
        %v992 = vsub.s32 0, %v991
        %v993 = vrot.slane %v988, %v992
        %v995 = vmul.f32 %v980, %v993
        %v996 = vmul.f32 %v981, %v993
        %v997 = vmul.f32 %v982, %v993
        %v998 = vmul.f32 %v983, %v993
        %v999 = vmul.f32 %v984, %v993
        %v1000 = vmul.f32 %v985, %v993
        %v1001 = vmul.f32 %v986, %v993
        %v1002 = vmul.f32 %v987, %v993
        %vm1003 = vcmask 261120
        %v1004 = vsel %vm1003, %v995, 0.0
        %1005 = vadd.xlane.f32.xlu0 %v1004
        %v1006 = vpop.xlane.xlu0 %1005
        %v1007 = vsel %vm1003, %v996, 0.0
        %1008 = vadd.xlane.f32.xlu0 %v1007
        %v1009 = vpop.xlane.xlu0 %1008
        %v1010 = vsel %vm1003, %v997, 0.0
        %1011 = vadd.xlane.f32.xlu0 %v1010
        %v1012 = vpop.xlane.xlu0 %1011
        %v1013 = vsel %vm1003, %v998, 0.0
        %1014 = vadd.xlane.f32.xlu0 %v1013
        %v1015 = vpop.xlane.xlu0 %1014
        %v1016 = vsel %vm1003, %v999, 0.0
        %1017 = vadd.xlane.f32.xlu0 %v1016
        %v1018 = vpop.xlane.xlu0 %1017
        %v1019 = vsel %vm1003, %v1000, 0.0
        %1020 = vadd.xlane.f32.xlu0 %v1019
        %v1021 = vpop.xlane.xlu0 %1020
        %v1022 = vsel %vm1003, %v1001, 0.0
        %1023 = vadd.xlane.f32.xlu0 %v1022
        %v1024 = vpop.xlane.xlu0 %1023
        %v1025 = vsel %vm1003, %v1002, 0.0
        %1026 = vadd.xlane.f32.xlu0 %v1025
        %v1027 = vpop.xlane.xlu0 %1026
        %v1028 = vld [vmem:[#allocation2] sm:$0x1]
        %v1030 = vlaneseq
        %v1031 = vshrl.u32 %v1030, 7
        %v1032 = vsub.s32 0, %v1031
        %v1033 = vrot.slane %v1028, %v1032
        %1034 = vset.pattern.permute.xlu0 0
        %1035 = vperm.xlu0 %1034, %v1033
        %v1036 = vpop.permute.xlu0 %1035
        %v1038 = vadd.f32 %v1006, %v1036
        %v1039 = vadd.f32 %v1009, %v1036
        %v1040 = vadd.f32 %v1012, %v1036
        %v1041 = vadd.f32 %v1015, %v1036
        %v1042 = vadd.f32 %v1018, %v1036
        %v1043 = vadd.f32 %v1021, %v1036
        %v1044 = vadd.f32 %v1024, %v1036
        %v1045 = vadd.f32 %v1027, %v1036
        %vm1046 = vcmp.gt.f32.partialorder %v1038, 0.0
        %vm1047 = vcmp.gt.f32.partialorder %v1039, 0.0
        %vm1048 = vcmp.gt.f32.partialorder %v1040, 0.0
        %vm1049 = vcmp.gt.f32.partialorder %v1041, 0.0
        %vm1050 = vcmp.gt.f32.partialorder %v1042, 0.0
        %vm1051 = vcmp.gt.f32.partialorder %v1043, 0.0
        %vm1052 = vcmp.gt.f32.partialorder %v1044, 0.0
        %vm1053 = vcmp.gt.f32.partialorder %v1045, 0.0
        %vm1054 = vcmp.ne.s32.totalorder %v715, 0
        %v1055 = vsel %vm1054, 1, 0
        %v1056 = vlaneseq
        %v1057 = vshrl.u32 %v1056, 7
        %v1058 = vsub.s32 0, %v1057
        %v1059 = vrot.slane %v1055, %v1058
        %1061 = vbcast.lane.b32.xlu0 %v1059, 256
        %v1062 = vpop.permute.xlu0 %1061
        %v1063 = vlaneseq
        %v1064 = vshrl.u32 %v1063, 7
        %v1065 = vsub.s32 1, %v1064
        %v1066 = vrot.slane %v1055, %v1065
        %1068 = vbcast.lane.b32.xlu0 %v1066, 256
        %v1069 = vpop.permute.xlu0 %1068
        %v1070 = vlaneseq
        %v1071 = vshrl.u32 %v1070, 7
        %v1072 = vsub.s32 2, %v1071
        %v1073 = vrot.slane %v1055, %v1072
        %1075 = vbcast.lane.b32.xlu0 %v1073, 256
        %v1076 = vpop.permute.xlu0 %1075
        %v1077 = vlaneseq
        %v1078 = vshrl.u32 %v1077, 7
        %v1079 = vsub.s32 3, %v1078
        %v1080 = vrot.slane %v1055, %v1079
        %1082 = vbcast.lane.b32.xlu0 %v1080, 256
        %v1083 = vpop.permute.xlu0 %1082
        %v1084 = vlaneseq
        %v1085 = vshrl.u32 %v1084, 7
        %v1086 = vsub.s32 4, %v1085
        %v1087 = vrot.slane %v1055, %v1086
        %1089 = vbcast.lane.b32.xlu0 %v1087, 256
        %v1090 = vpop.permute.xlu0 %1089
        %v1091 = vlaneseq
        %v1092 = vshrl.u32 %v1091, 7
        %v1093 = vsub.s32 5, %v1092
        %v1094 = vrot.slane %v1055, %v1093
        %1096 = vbcast.lane.b32.xlu0 %v1094, 256
        %v1097 = vpop.permute.xlu0 %1096
        %v1098 = vlaneseq
        %v1099 = vshrl.u32 %v1098, 7
        %v1100 = vsub.s32 6, %v1099
        %v1101 = vrot.slane %v1055, %v1100
        %1103 = vbcast.lane.b32.xlu0 %v1101, 256
        %v1104 = vpop.permute.xlu0 %1103
        %v1105 = vlaneseq
        %v1106 = vshrl.u32 %v1105, 7
        %v1107 = vsub.s32 7, %v1106
        %v1108 = vrot.slane %v1055, %v1107
        %1110 = vbcast.lane.b32.xlu0 %v1108, 256
        %v1111 = vpop.permute.xlu0 %1110
        %vm1112 = vcmp.ne.s32.totalorder %v1062, 0
        %vm1113 = vcmp.ne.s32.totalorder %v1069, 0
        %vm1114 = vcmp.ne.s32.totalorder %v1076, 0
        %vm1115 = vcmp.ne.s32.totalorder %v1083, 0
        %vm1116 = vcmp.ne.s32.totalorder %v1090, 0
        %vm1117 = vcmp.ne.s32.totalorder %v1097, 0
        %vm1118 = vcmp.ne.s32.totalorder %v1104, 0
        %vm1119 = vcmp.ne.s32.totalorder %v1111, 0
        %vm1120 = vmand %vm1046, %vm1112
        %vm1121 = vmand %vm1047, %vm1113
        %vm1122 = vmand %vm1048, %vm1114
        %vm1123 = vmand %vm1049, %vm1115
        %vm1124 = vmand %vm1050, %vm1116
        %vm1125 = vmand %vm1051, %vm1117
        %vm1126 = vmand %vm1052, %vm1118
        %vm1127 = vmand %vm1053, %vm1119
        %v1128 = vsel %vm1120, 1, 0
        %v1129 = vsel %vm1121, 1, 0
        %v1130 = vsel %vm1122, 1, 0
        %v1131 = vsel %vm1123, 1, 0
        %v1132 = vsel %vm1124, 1, 0
        %v1133 = vsel %vm1125, 1, 0
        %v1134 = vsel %vm1126, 1, 0
        %v1135 = vsel %vm1127, 1, 0
        %1136 = vset.pattern.permute.xlu0 0
        %1137 = vperm.xlu0 %1136, %v1128
        %v1138 = vpop.permute.xlu0 %1137
        %1139 = vset.pattern.permute.xlu0 0
        %1140 = vperm.xlu0 %1139, %v1129
        %v1141 = vpop.permute.xlu0 %1140
        %1142 = vset.pattern.permute.xlu0 0
        %1143 = vperm.xlu0 %1142, %v1130
        %v1144 = vpop.permute.xlu0 %1143
        %1145 = vset.pattern.permute.xlu0 0
        %1146 = vperm.xlu0 %1145, %v1131
        %v1147 = vpop.permute.xlu0 %1146
        %1148 = vset.pattern.permute.xlu0 0
        %1149 = vperm.xlu0 %1148, %v1132
        %v1150 = vpop.permute.xlu0 %1149
        %1151 = vset.pattern.permute.xlu0 0
        %1152 = vperm.xlu0 %1151, %v1133
        %v1153 = vpop.permute.xlu0 %1152
        %1154 = vset.pattern.permute.xlu0 0
        %1155 = vperm.xlu0 %1154, %v1134
        %v1156 = vpop.permute.xlu0 %1155
        %1157 = vset.pattern.permute.xlu0 0
        %1158 = vperm.xlu0 %1157, %v1135
        %v1159 = vpop.permute.xlu0 %1158
        %v1160 = vlaneseq
        %v1161 = vand.u32 %v1160, 127
        %v1162 = vlaneseq
        %v1163 = vshrl.u32 %v1162, 7
        %v1164 = vsub.s32 %v1161, %v1163
        %v1165 = vrot.slane %v1138, %v1164
        %v1166 = vlaneseq
        %v1167 = vshrl.u32 %v1166, 7
        %v1168 = vsub.s32 %v1161, %v1167
        %v1169 = vrot.slane %v1141, %v1168
        %v1170 = vlaneseq
        %v1171 = vshrl.u32 %v1170, 7
        %v1172 = vsub.s32 %v1161, %v1171
        %v1173 = vrot.slane %v1144, %v1172
        %v1174 = vlaneseq
        %v1175 = vshrl.u32 %v1174, 7
        %v1176 = vsub.s32 %v1161, %v1175
        %v1177 = vrot.slane %v1147, %v1176
        %v1178 = vlaneseq
        %v1179 = vshrl.u32 %v1178, 7
        %v1180 = vsub.s32 %v1161, %v1179
        %v1181 = vrot.slane %v1150, %v1180
        %v1182 = vlaneseq
        %v1183 = vshrl.u32 %v1182, 7
        %v1184 = vsub.s32 %v1161, %v1183
        %v1185 = vrot.slane %v1153, %v1184
        %v1186 = vlaneseq
        %v1187 = vshrl.u32 %v1186, 7
        %v1188 = vsub.s32 %v1161, %v1187
        %v1189 = vrot.slane %v1156, %v1188
        %v1190 = vlaneseq
        %v1191 = vshrl.u32 %v1190, 7
        %v1192 = vsub.s32 %v1161, %v1191
        %v1193 = vrot.slane %v1159, %v1192
        %vm1194 = vcmask 1041409
        %v1195 = vsel %vm1194, %v1169, %v1165
        %vm1196 = vcmask 1042434
        %v1197 = vsel %vm1196, %v1173, %v1195
        %vm1198 = vcmask 1043459
        %v1199 = vsel %vm1198, %v1177, %v1197
        %vm1200 = vcmask 1044484
        %v1201 = vsel %vm1200, %v1181, %v1199
        %vm1202 = vcmask 1045509
        %v1203 = vsel %vm1202, %v1185, %v1201
        %vm1204 = vcmask 1046534
        %v1205 = vsel %vm1204, %v1189, %v1203
        %vm1206 = vcmask 1047559
        %v1207 = vsel %vm1206, %v1193, %v1205
        %vm1208 = vcmask 64512
        %1209 = vst.msk [vmem:[%s695] sm:$0xff] %vm1208, %v1207
        %v1210 = vpack.c.bf16 %v701, %v701
        %v1211 = vpack.c.bf16 %v702, %v702
        %v1212 = vpack.c.bf16 %v703, %v703
        %v1213 = vpack.c.bf16 %v704, %v704
        %v1214 = vpack.c.bf16 %v705, %v705
        %v1215 = vpack.c.bf16 %v706, %v706
        %v1216 = vpack.c.bf16 %v707, %v707
        %v1217 = vpack.c.bf16 %v708, %v708
        %v1219 = vsel %vm1208, %v1210, 0
        %v1222 = vsel %vm1208, %v1214, 0
        %1224 = vmatprep.subr.bf16.mxu0 0
        %1225 = vmatpush1.bf16.xpose.msra.mxu0 %v1222
        %1226 = vmatprep.subr.bf16.mxu0 0
        %1227 = vmatpush1.bf16.xpose.msra.mxu0 0
        %1228 = vmatprep.subr.bf16.mxu0 0
        %1229 = vmatpush1.bf16.xpose.msra.mxu0 0
        %1230 = vmatprep.subr.bf16.mxu0 0
        %1231 = vmatpush1.bf16.xpose.msra.mxu0 0
        %1232 = vmatprep.subr.bf16.mxu0 0
        %1233 = vmatpush1.bf16.xpose.msra.mxu0 0
        %1234 = vmatprep.subr.bf16.mxu0 0
        %1235 = vmatpush1.bf16.xpose.msra.mxu0 0
        %1236 = vmatprep.subr.bf16.mxu0 0
        %1237 = vmatpush1.bf16.xpose.msra.mxu0 0
        %1238 = vmatprep.subr.bf16.mxu0 0
        %1239 = vmatpush1.bf16.xpose.msra.mxu0 0
        %1240 = vmatprep.subr.bf16.mxu0 0
        %1241 = vmatpush1.bf16.xpose.msra.mxu0 0
        %1242 = vmatprep.subr.bf16.mxu0 0
        %1243 = vmatpush1.bf16.xpose.msra.mxu0 0
        %1244 = vmatprep.subr.bf16.mxu0 0
        %1245 = vmatpush1.bf16.xpose.msra.mxu0 0
        %1246 = vmatprep.subr.bf16.mxu0 0
        %1247 = vmatpush1.bf16.xpose.msra.mxu0 0
        %1248 = vmatprep.subr.bf16.mxu0 0
        %1249 = vmatpush1.bf16.xpose.msra.mxu0 0
        %1250 = vmatprep.subr.bf16.mxu0 0
        %1251 = vmatpush1.bf16.xpose.msra.mxu0 0
        %1252 = vmatprep.subr.bf16.mxu0 0
        %1253 = vmatpush1.bf16.xpose.msra.mxu0 0
        %1254 = vmatprep.subr.bf16.mxu0 0
        %1255 = vmatpush1.bf16.xpose.msra.mxu0 0
        %1256 = vmatprep.mubr.bf16.mxu0 0
        %1257 = vmatmul.mubr.bf16.gmra.mrb[0].mxu0 %v1219
        %v1258 = vpop.f32.mrb[0].mxu0
        %v1259 = vadd.f32 0.0, %v1258
        %v1260 = vpop.f32.mrb[0].mxu0
        %v1261 = vpop.f32.mrb[0].mxu0
        %v1262 = vpop.f32.mrb[0].mxu0
        %1263 = vdwg.mxu0
        %v1265 = vsel %vm1208, %v1211, 0
        %v1268 = vsel %vm1208, %v1215, 0
        %1270 = vmatprep.subr.bf16.mxu0 0
        %1271 = vmatpush1.bf16.xpose.msra.mxu0 %v1268
        %1272 = vmatprep.subr.bf16.mxu0 0
        %1273 = vmatpush1.bf16.xpose.msra.mxu0 0
        %1274 = vmatprep.subr.bf16.mxu0 0
        %1275 = vmatpush1.bf16.xpose.msra.mxu0 0
        %1276 = vmatprep.subr.bf16.mxu0 0
        %1277 = vmatpush1.bf16.xpose.msra.mxu0 0
        %1278 = vmatprep.subr.bf16.mxu0 0
        %1279 = vmatpush1.bf16.xpose.msra.mxu0 0
        %1280 = vmatprep.subr.bf16.mxu0 0
        %1281 = vmatpush1.bf16.xpose.msra.mxu0 0
        %1282 = vmatprep.subr.bf16.mxu0 0
        %1283 = vmatpush1.bf16.xpose.msra.mxu0 0
        %1284 = vmatprep.subr.bf16.mxu0 0
        %1285 = vmatpush1.bf16.xpose.msra.mxu0 0
        %1286 = vmatprep.subr.bf16.mxu0 0
        %1287 = vmatpush1.bf16.xpose.msra.mxu0 0
        %1288 = vmatprep.subr.bf16.mxu0 0
        %1289 = vmatpush1.bf16.xpose.msra.mxu0 0
        %1290 = vmatprep.subr.bf16.mxu0 0
        %1291 = vmatpush1.bf16.xpose.msra.mxu0 0
        %1292 = vmatprep.subr.bf16.mxu0 0
        %1293 = vmatpush1.bf16.xpose.msra.mxu0 0
        %1294 = vmatprep.subr.bf16.mxu0 0
        %1295 = vmatpush1.bf16.xpose.msra.mxu0 0
        %1296 = vmatprep.subr.bf16.mxu0 0
        %1297 = vmatpush1.bf16.xpose.msra.mxu0 0
        %1298 = vmatprep.subr.bf16.mxu0 0
        %1299 = vmatpush1.bf16.xpose.msra.mxu0 0
        %1300 = vmatprep.subr.bf16.mxu0 0
        %1301 = vmatpush1.bf16.xpose.msra.mxu0 0
        %1302 = vmatprep.mubr.bf16.mxu0 0
        %1303 = vmatmul.mubr.bf16.gmra.mrb[0].mxu0 %v1265
        %v1304 = vpop.f32.mrb[0].mxu0
        %v1305 = vadd.f32 0.0, %v1304
        %v1306 = vpop.f32.mrb[0].mxu0
        %v1307 = vpop.f32.mrb[0].mxu0
        %v1308 = vpop.f32.mrb[0].mxu0
        %1309 = vdwg.mxu0
        %v1311 = vsel %vm1208, %v1212, 0
        %v1314 = vsel %vm1208, %v1216, 0
        %1316 = vmatprep.subr.bf16.mxu0 0
        %1317 = vmatpush1.bf16.xpose.msra.mxu0 %v1314
        %1318 = vmatprep.subr.bf16.mxu0 0
        %1319 = vmatpush1.bf16.xpose.msra.mxu0 0
        %1320 = vmatprep.subr.bf16.mxu0 0
        %1321 = vmatpush1.bf16.xpose.msra.mxu0 0
        %1322 = vmatprep.subr.bf16.mxu0 0
        %1323 = vmatpush1.bf16.xpose.msra.mxu0 0
        %1324 = vmatprep.subr.bf16.mxu0 0
        %1325 = vmatpush1.bf16.xpose.msra.mxu0 0
        %1326 = vmatprep.subr.bf16.mxu0 0
        %1327 = vmatpush1.bf16.xpose.msra.mxu0 0
        %1328 = vmatprep.subr.bf16.mxu0 0
        %1329 = vmatpush1.bf16.xpose.msra.mxu0 0
        %1330 = vmatprep.subr.bf16.mxu0 0
        %1331 = vmatpush1.bf16.xpose.msra.mxu0 0
        %1332 = vmatprep.subr.bf16.mxu0 0
        %1333 = vmatpush1.bf16.xpose.msra.mxu0 0
        %1334 = vmatprep.subr.bf16.mxu0 0
        %1335 = vmatpush1.bf16.xpose.msra.mxu0 0
        %1336 = vmatprep.subr.bf16.mxu0 0
        %1337 = vmatpush1.bf16.xpose.msra.mxu0 0
        %1338 = vmatprep.subr.bf16.mxu0 0
        %1339 = vmatpush1.bf16.xpose.msra.mxu0 0
        %1340 = vmatprep.subr.bf16.mxu0 0
        %1341 = vmatpush1.bf16.xpose.msra.mxu0 0
        %1342 = vmatprep.subr.bf16.mxu0 0
        %1343 = vmatpush1.bf16.xpose.msra.mxu0 0
        %1344 = vmatprep.subr.bf16.mxu0 0
        %1345 = vmatpush1.bf16.xpose.msra.mxu0 0
        %1346 = vmatprep.subr.bf16.mxu0 0
        %1347 = vmatpush1.bf16.xpose.msra.mxu0 0
        %1348 = vmatprep.mubr.bf16.mxu0 0
        %1349 = vmatmul.mubr.bf16.gmra.mrb[0].mxu0 %v1311
        %v1350 = vpop.f32.mrb[0].mxu0
        %v1351 = vadd.f32 0.0, %v1350
        %v1352 = vpop.f32.mrb[0].mxu0
        %v1353 = vpop.f32.mrb[0].mxu0
        %v1354 = vpop.f32.mrb[0].mxu0
        %1355 = vdwg.mxu0
        %v1357 = vsel %vm1208, %v1213, 0
        %v1360 = vsel %vm1208, %v1217, 0
        %1362 = vmatprep.subr.bf16.mxu0 0
        %1363 = vmatpush1.bf16.xpose.msra.mxu0 %v1360
        %1364 = vmatprep.subr.bf16.mxu0 0
        %1365 = vmatpush1.bf16.xpose.msra.mxu0 0
        %1366 = vmatprep.subr.bf16.mxu0 0
        %1367 = vmatpush1.bf16.xpose.msra.mxu0 0
        %1368 = vmatprep.subr.bf16.mxu0 0
        %1369 = vmatpush1.bf16.xpose.msra.mxu0 0
        %1370 = vmatprep.subr.bf16.mxu0 0
        %1371 = vmatpush1.bf16.xpose.msra.mxu0 0
        %1372 = vmatprep.subr.bf16.mxu0 0
        %1373 = vmatpush1.bf16.xpose.msra.mxu0 0
        %1374 = vmatprep.subr.bf16.mxu0 0
        %1375 = vmatpush1.bf16.xpose.msra.mxu0 0
        %1376 = vmatprep.subr.bf16.mxu0 0
        %1377 = vmatpush1.bf16.xpose.msra.mxu0 0
        %1378 = vmatprep.subr.bf16.mxu0 0
        %1379 = vmatpush1.bf16.xpose.msra.mxu0 0
        %1380 = vmatprep.subr.bf16.mxu0 0
        %1381 = vmatpush1.bf16.xpose.msra.mxu0 0
        %1382 = vmatprep.subr.bf16.mxu0 0
        %1383 = vmatpush1.bf16.xpose.msra.mxu0 0
        %1384 = vmatprep.subr.bf16.mxu0 0
        %1385 = vmatpush1.bf16.xpose.msra.mxu0 0
        %1386 = vmatprep.subr.bf16.mxu0 0
        %1387 = vmatpush1.bf16.xpose.msra.mxu0 0
        %1388 = vmatprep.subr.bf16.mxu0 0
        %1389 = vmatpush1.bf16.xpose.msra.mxu0 0
        %1390 = vmatprep.subr.bf16.mxu0 0
        %1391 = vmatpush1.bf16.xpose.msra.mxu0 0
        %1392 = vmatprep.subr.bf16.mxu0 0
        %1393 = vmatpush1.bf16.xpose.msra.mxu0 0
        %1394 = vmatprep.mubr.bf16.mxu0 0
        %1395 = vmatmul.mubr.bf16.gmra.mrb[0].mxu0 %v1357
        %v1396 = vpop.f32.mrb[0].mxu0
        %v1397 = vadd.f32 0.0, %v1396
        %v1398 = vpop.f32.mrb[0].mxu0
        %v1399 = vpop.f32.mrb[0].mxu0
        %v1400 = vpop.f32.mrb[0].mxu0
        %1401 = vdwg.mxu0
        %v1402 = vmul.f32 %v1259, 0.35355338
        %v1403 = vmul.f32 %v1305, 0.35355338
        %v1404 = vmul.f32 %v1351, 0.35355338
        %v1405 = vmul.f32 %v1397, 0.35355338
        %vm1406 = vcmp.eq.s32.totalorder %v1128, 1
        %vm1407 = vcmp.eq.s32.totalorder %v1129, 1
        %vm1408 = vcmp.eq.s32.totalorder %v1130, 1
        %vm1409 = vcmp.eq.s32.totalorder %v1131, 1
        %vm1410 = vcmp.eq.s32.totalorder %v1132, 1
        %vm1411 = vcmp.eq.s32.totalorder %v1133, 1
        %vm1412 = vcmp.eq.s32.totalorder %v1134, 1
        %vm1413 = vcmp.eq.s32.totalorder %v1135, 1
        %v1418 = vlaneseq
        %v1419 = vshrl.u32 %v1418, 7
        %v1420 = vsub.s32 0, %v1419
        %v1421 = vrot.slane %v1402, %v1420
        %1423 = vbcast.lane.b32.xlu0 %v1421, 256
        %v1424 = vpop.permute.xlu0 %1423
        %v1425 = vlaneseq
        %v1426 = vshrl.u32 %v1425, 7
        %v1427 = vsub.s32 1, %v1426
        %v1428 = vrot.slane %v1402, %v1427
        %1430 = vbcast.lane.b32.xlu0 %v1428, 256
        %v1431 = vpop.permute.xlu0 %1430
        %v1432 = vlaneseq
        %v1433 = vshrl.u32 %v1432, 7
        %v1434 = vsub.s32 2, %v1433
        %v1435 = vrot.slane %v1402, %v1434
        %1437 = vbcast.lane.b32.xlu0 %v1435, 256
        %v1438 = vpop.permute.xlu0 %1437
        %v1439 = vlaneseq
        %v1440 = vshrl.u32 %v1439, 7
        %v1441 = vsub.s32 3, %v1440
        %v1442 = vrot.slane %v1402, %v1441
        %1444 = vbcast.lane.b32.xlu0 %v1442, 256
        %v1445 = vpop.permute.xlu0 %1444
        %v1446 = vlaneseq
        %v1447 = vshrl.u32 %v1446, 7
        %v1448 = vsub.s32 4, %v1447
        %v1449 = vrot.slane %v1402, %v1448
        %1451 = vbcast.lane.b32.xlu0 %v1449, 256
        %v1452 = vpop.permute.xlu0 %1451
        %v1453 = vlaneseq
        %v1454 = vshrl.u32 %v1453, 7
        %v1455 = vsub.s32 5, %v1454
        %v1456 = vrot.slane %v1402, %v1455
        %1458 = vbcast.lane.b32.xlu0 %v1456, 256
        %v1459 = vpop.permute.xlu0 %1458
        %v1460 = vlaneseq
        %v1461 = vshrl.u32 %v1460, 7
        %v1462 = vsub.s32 6, %v1461
        %v1463 = vrot.slane %v1402, %v1462
        %1465 = vbcast.lane.b32.xlu0 %v1463, 256
        %v1466 = vpop.permute.xlu0 %1465
        %v1467 = vlaneseq
        %v1468 = vshrl.u32 %v1467, 7
        %v1469 = vsub.s32 7, %v1468
        %v1470 = vrot.slane %v1402, %v1469
        %1472 = vbcast.lane.b32.xlu0 %v1470, 256
        %v1473 = vpop.permute.xlu0 %1472
        %v1474 = vlaneseq
        %v1475 = vshrl.u32 %v1474, 7
        %v1476 = vsub.s32 0, %v1475
        %v1477 = vrot.slane %v1403, %v1476
        %1479 = vbcast.lane.b32.xlu0 %v1477, 256
        %v1480 = vpop.permute.xlu0 %1479
        %v1481 = vlaneseq
        %v1482 = vshrl.u32 %v1481, 7
        %v1483 = vsub.s32 1, %v1482
        %v1484 = vrot.slane %v1403, %v1483
        %1486 = vbcast.lane.b32.xlu0 %v1484, 256
        %v1487 = vpop.permute.xlu0 %1486
        %v1488 = vlaneseq
        %v1489 = vshrl.u32 %v1488, 7
        %v1490 = vsub.s32 2, %v1489
        %v1491 = vrot.slane %v1403, %v1490
        %1493 = vbcast.lane.b32.xlu0 %v1491, 256
        %v1494 = vpop.permute.xlu0 %1493
        %v1495 = vlaneseq
        %v1496 = vshrl.u32 %v1495, 7
        %v1497 = vsub.s32 3, %v1496
        %v1498 = vrot.slane %v1403, %v1497
        %1500 = vbcast.lane.b32.xlu0 %v1498, 256
        %v1501 = vpop.permute.xlu0 %1500
        %v1502 = vlaneseq
        %v1503 = vshrl.u32 %v1502, 7
        %v1504 = vsub.s32 4, %v1503
        %v1505 = vrot.slane %v1403, %v1504
        %1507 = vbcast.lane.b32.xlu0 %v1505, 256
        %v1508 = vpop.permute.xlu0 %1507
        %v1509 = vlaneseq
        %v1510 = vshrl.u32 %v1509, 7
        %v1511 = vsub.s32 5, %v1510
        %v1512 = vrot.slane %v1403, %v1511
        %1514 = vbcast.lane.b32.xlu0 %v1512, 256
        %v1515 = vpop.permute.xlu0 %1514
        %v1516 = vlaneseq
        %v1517 = vshrl.u32 %v1516, 7
        %v1518 = vsub.s32 6, %v1517
        %v1519 = vrot.slane %v1403, %v1518
        %1521 = vbcast.lane.b32.xlu0 %v1519, 256
        %v1522 = vpop.permute.xlu0 %1521
        %v1523 = vlaneseq
        %v1524 = vshrl.u32 %v1523, 7
        %v1525 = vsub.s32 7, %v1524
        %v1526 = vrot.slane %v1403, %v1525
        %1528 = vbcast.lane.b32.xlu0 %v1526, 256
        %v1529 = vpop.permute.xlu0 %1528
        %v1530 = vlaneseq
        %v1531 = vshrl.u32 %v1530, 7
        %v1532 = vsub.s32 0, %v1531
        %v1533 = vrot.slane %v1404, %v1532
        %1535 = vbcast.lane.b32.xlu0 %v1533, 256
        %v1536 = vpop.permute.xlu0 %1535
        %v1537 = vlaneseq
        %v1538 = vshrl.u32 %v1537, 7
        %v1539 = vsub.s32 1, %v1538
        %v1540 = vrot.slane %v1404, %v1539
        %1542 = vbcast.lane.b32.xlu0 %v1540, 256
        %v1543 = vpop.permute.xlu0 %1542
        %v1544 = vlaneseq
        %v1545 = vshrl.u32 %v1544, 7
        %v1546 = vsub.s32 2, %v1545
        %v1547 = vrot.slane %v1404, %v1546
        %1549 = vbcast.lane.b32.xlu0 %v1547, 256
        %v1550 = vpop.permute.xlu0 %1549
        %v1551 = vlaneseq
        %v1552 = vshrl.u32 %v1551, 7
        %v1553 = vsub.s32 3, %v1552
        %v1554 = vrot.slane %v1404, %v1553
        %1556 = vbcast.lane.b32.xlu0 %v1554, 256
        %v1557 = vpop.permute.xlu0 %1556
        %v1558 = vlaneseq
        %v1559 = vshrl.u32 %v1558, 7
        %v1560 = vsub.s32 4, %v1559
        %v1561 = vrot.slane %v1404, %v1560
        %1563 = vbcast.lane.b32.xlu0 %v1561, 256
        %v1564 = vpop.permute.xlu0 %1563
        %v1565 = vlaneseq
        %v1566 = vshrl.u32 %v1565, 7
        %v1567 = vsub.s32 5, %v1566
        %v1568 = vrot.slane %v1404, %v1567
        %1570 = vbcast.lane.b32.xlu0 %v1568, 256
        %v1571 = vpop.permute.xlu0 %1570
        %v1572 = vlaneseq
        %v1573 = vshrl.u32 %v1572, 7
        %v1574 = vsub.s32 6, %v1573
        %v1575 = vrot.slane %v1404, %v1574
        %1577 = vbcast.lane.b32.xlu0 %v1575, 256
        %v1578 = vpop.permute.xlu0 %1577
        %v1579 = vlaneseq
        %v1580 = vshrl.u32 %v1579, 7
        %v1581 = vsub.s32 7, %v1580
        %v1582 = vrot.slane %v1404, %v1581
        %1584 = vbcast.lane.b32.xlu0 %v1582, 256
        %v1585 = vpop.permute.xlu0 %1584
        %v1586 = vlaneseq
        %v1587 = vshrl.u32 %v1586, 7
        %v1588 = vsub.s32 0, %v1587
        %v1589 = vrot.slane %v1405, %v1588
        %1591 = vbcast.lane.b32.xlu0 %v1589, 256
        %v1592 = vpop.permute.xlu0 %1591
        %v1593 = vlaneseq
        %v1594 = vshrl.u32 %v1593, 7
        %v1595 = vsub.s32 1, %v1594
        %v1596 = vrot.slane %v1405, %v1595
        %1598 = vbcast.lane.b32.xlu0 %v1596, 256
        %v1599 = vpop.permute.xlu0 %1598
        %v1600 = vlaneseq
        %v1601 = vshrl.u32 %v1600, 7
        %v1602 = vsub.s32 2, %v1601
        %v1603 = vrot.slane %v1405, %v1602
        %1605 = vbcast.lane.b32.xlu0 %v1603, 256
        %v1606 = vpop.permute.xlu0 %1605
        %v1607 = vlaneseq
        %v1608 = vshrl.u32 %v1607, 7
        %v1609 = vsub.s32 3, %v1608
        %v1610 = vrot.slane %v1405, %v1609
        %1612 = vbcast.lane.b32.xlu0 %v1610, 256
        %v1613 = vpop.permute.xlu0 %1612
        %v1614 = vlaneseq
        %v1615 = vshrl.u32 %v1614, 7
        %v1616 = vsub.s32 4, %v1615
        %v1617 = vrot.slane %v1405, %v1616
        %1619 = vbcast.lane.b32.xlu0 %v1617, 256
        %v1620 = vpop.permute.xlu0 %1619
        %v1621 = vlaneseq
        %v1622 = vshrl.u32 %v1621, 7
        %v1623 = vsub.s32 5, %v1622
        %v1624 = vrot.slane %v1405, %v1623
        %1626 = vbcast.lane.b32.xlu0 %v1624, 256
        %v1627 = vpop.permute.xlu0 %1626
        %v1628 = vlaneseq
        %v1629 = vshrl.u32 %v1628, 7
        %v1630 = vsub.s32 6, %v1629
        %v1631 = vrot.slane %v1405, %v1630
        %1633 = vbcast.lane.b32.xlu0 %v1631, 256
        %v1634 = vpop.permute.xlu0 %1633
        %v1635 = vlaneseq
        %v1636 = vshrl.u32 %v1635, 7
        %v1637 = vsub.s32 7, %v1636
        %v1638 = vrot.slane %v1405, %v1637
        %1640 = vbcast.lane.b32.xlu0 %v1638, 256
        %v1641 = vpop.permute.xlu0 %1640
        %v1674 = vsel %vm1406, %v1424, -1e+09
        %v1675 = vsel %vm1407, %v1431, -1e+09
        %v1676 = vsel %vm1408, %v1438, -1e+09
        %v1677 = vsel %vm1409, %v1445, -1e+09
        %v1678 = vsel %vm1410, %v1452, -1e+09
        %v1679 = vsel %vm1411, %v1459, -1e+09
        %v1680 = vsel %vm1412, %v1466, -1e+09
        %v1681 = vsel %vm1413, %v1473, -1e+09
        %v1682 = vsel %vm1406, %v1480, -1e+09
        %v1683 = vsel %vm1407, %v1487, -1e+09
        %v1684 = vsel %vm1408, %v1494, -1e+09
        %v1685 = vsel %vm1409, %v1501, -1e+09
        %v1686 = vsel %vm1410, %v1508, -1e+09
        %v1687 = vsel %vm1411, %v1515, -1e+09
        %v1688 = vsel %vm1412, %v1522, -1e+09
        %v1689 = vsel %vm1413, %v1529, -1e+09
        %v1690 = vsel %vm1406, %v1536, -1e+09
        %v1691 = vsel %vm1407, %v1543, -1e+09
        %v1692 = vsel %vm1408, %v1550, -1e+09
        %v1693 = vsel %vm1409, %v1557, -1e+09
        %v1694 = vsel %vm1410, %v1564, -1e+09
        %v1695 = vsel %vm1411, %v1571, -1e+09
        %v1696 = vsel %vm1412, %v1578, -1e+09
        %v1697 = vsel %vm1413, %v1585, -1e+09
        %v1698 = vsel %vm1406, %v1592, -1e+09
        %v1699 = vsel %vm1407, %v1599, -1e+09
        %v1700 = vsel %vm1408, %v1606, -1e+09
        %v1701 = vsel %vm1409, %v1613, -1e+09
        %v1702 = vsel %vm1410, %v1620, -1e+09
        %v1703 = vsel %vm1411, %v1627, -1e+09
        %v1704 = vsel %vm1412, %v1634, -1e+09
        %v1705 = vsel %vm1413, %v1641, -1e+09
        %1738 = vset.pattern.permute.xlu0 0
        %1739 = vperm.xlu0 %1738, %v1674
        %v1740 = vpop.permute.xlu0 %1739
        %1741 = vset.pattern.permute.xlu0 0
        %1742 = vperm.xlu0 %1741, %v1675
        %v1743 = vpop.permute.xlu0 %1742
        %1744 = vset.pattern.permute.xlu0 0
        %1745 = vperm.xlu0 %1744, %v1676
        %v1746 = vpop.permute.xlu0 %1745
        %1747 = vset.pattern.permute.xlu0 0
        %1748 = vperm.xlu0 %1747, %v1677
        %v1749 = vpop.permute.xlu0 %1748
        %1750 = vset.pattern.permute.xlu0 0
        %1751 = vperm.xlu0 %1750, %v1678
        %v1752 = vpop.permute.xlu0 %1751
        %1753 = vset.pattern.permute.xlu0 0
        %1754 = vperm.xlu0 %1753, %v1679
        %v1755 = vpop.permute.xlu0 %1754
        %1756 = vset.pattern.permute.xlu0 0
        %1757 = vperm.xlu0 %1756, %v1680
        %v1758 = vpop.permute.xlu0 %1757
        %1759 = vset.pattern.permute.xlu0 0
        %1760 = vperm.xlu0 %1759, %v1681
        %v1761 = vpop.permute.xlu0 %1760
        %1762 = vset.pattern.permute.xlu0 0
        %1763 = vperm.xlu0 %1762, %v1682
        %v1764 = vpop.permute.xlu0 %1763
        %1765 = vset.pattern.permute.xlu0 0
        %1766 = vperm.xlu0 %1765, %v1683
        %v1767 = vpop.permute.xlu0 %1766
        %1768 = vset.pattern.permute.xlu0 0
        %1769 = vperm.xlu0 %1768, %v1684
        %v1770 = vpop.permute.xlu0 %1769
        %1771 = vset.pattern.permute.xlu0 0
        %1772 = vperm.xlu0 %1771, %v1685
        %v1773 = vpop.permute.xlu0 %1772
        %1774 = vset.pattern.permute.xlu0 0
        %1775 = vperm.xlu0 %1774, %v1686
        %v1776 = vpop.permute.xlu0 %1775
        %1777 = vset.pattern.permute.xlu0 0
        %1778 = vperm.xlu0 %1777, %v1687
        %v1779 = vpop.permute.xlu0 %1778
        %1780 = vset.pattern.permute.xlu0 0
        %1781 = vperm.xlu0 %1780, %v1688
        %v1782 = vpop.permute.xlu0 %1781
        %1783 = vset.pattern.permute.xlu0 0
        %1784 = vperm.xlu0 %1783, %v1689
        %v1785 = vpop.permute.xlu0 %1784
        %1786 = vset.pattern.permute.xlu0 0
        %1787 = vperm.xlu0 %1786, %v1690
        %v1788 = vpop.permute.xlu0 %1787
        %1789 = vset.pattern.permute.xlu0 0
        %1790 = vperm.xlu0 %1789, %v1691
        %v1791 = vpop.permute.xlu0 %1790
        %1792 = vset.pattern.permute.xlu0 0
        %1793 = vperm.xlu0 %1792, %v1692
        %v1794 = vpop.permute.xlu0 %1793
        %1795 = vset.pattern.permute.xlu0 0
        %1796 = vperm.xlu0 %1795, %v1693
        %v1797 = vpop.permute.xlu0 %1796
        %1798 = vset.pattern.permute.xlu0 0
        %1799 = vperm.xlu0 %1798, %v1694
        %v1800 = vpop.permute.xlu0 %1799
        %1801 = vset.pattern.permute.xlu0 0
        %1802 = vperm.xlu0 %1801, %v1695
        %v1803 = vpop.permute.xlu0 %1802
        %1804 = vset.pattern.permute.xlu0 0
        %1805 = vperm.xlu0 %1804, %v1696
        %v1806 = vpop.permute.xlu0 %1805
        %1807 = vset.pattern.permute.xlu0 0
        %1808 = vperm.xlu0 %1807, %v1697
        %v1809 = vpop.permute.xlu0 %1808
        %1810 = vset.pattern.permute.xlu0 0
        %1811 = vperm.xlu0 %1810, %v1698
        %v1812 = vpop.permute.xlu0 %1811
        %1813 = vset.pattern.permute.xlu0 0
        %1814 = vperm.xlu0 %1813, %v1699
        %v1815 = vpop.permute.xlu0 %1814
        %1816 = vset.pattern.permute.xlu0 0
        %1817 = vperm.xlu0 %1816, %v1700
        %v1818 = vpop.permute.xlu0 %1817
        %1819 = vset.pattern.permute.xlu0 0
        %1820 = vperm.xlu0 %1819, %v1701
        %v1821 = vpop.permute.xlu0 %1820
        %1822 = vset.pattern.permute.xlu0 0
        %1823 = vperm.xlu0 %1822, %v1702
        %v1824 = vpop.permute.xlu0 %1823
        %1825 = vset.pattern.permute.xlu0 0
        %1826 = vperm.xlu0 %1825, %v1703
        %v1827 = vpop.permute.xlu0 %1826
        %1828 = vset.pattern.permute.xlu0 0
        %1829 = vperm.xlu0 %1828, %v1704
        %v1830 = vpop.permute.xlu0 %1829
        %1831 = vset.pattern.permute.xlu0 0
        %1832 = vperm.xlu0 %1831, %v1705
        %v1833 = vpop.permute.xlu0 %1832
        %v1834 = vlaneseq
        %v1835 = vshrl.u32 %v1834, 7
        %v1836 = vsub.s32 %v1161, %v1835
        %v1837 = vrot.slane %v1740, %v1836
        %v1838 = vlaneseq
        %v1839 = vshrl.u32 %v1838, 7
        %v1840 = vsub.s32 %v1161, %v1839
        %v1841 = vrot.slane %v1743, %v1840
        %v1842 = vlaneseq
        %v1843 = vshrl.u32 %v1842, 7
        %v1844 = vsub.s32 %v1161, %v1843
        %v1845 = vrot.slane %v1746, %v1844
        %v1846 = vlaneseq
        %v1847 = vshrl.u32 %v1846, 7
        %v1848 = vsub.s32 %v1161, %v1847
        %v1849 = vrot.slane %v1749, %v1848
        %v1850 = vlaneseq
        %v1851 = vshrl.u32 %v1850, 7
        %v1852 = vsub.s32 %v1161, %v1851
        %v1853 = vrot.slane %v1752, %v1852
        %v1854 = vlaneseq
        %v1855 = vshrl.u32 %v1854, 7
        %v1856 = vsub.s32 %v1161, %v1855
        %v1857 = vrot.slane %v1755, %v1856
        %v1858 = vlaneseq
        %v1859 = vshrl.u32 %v1858, 7
        %v1860 = vsub.s32 %v1161, %v1859
        %v1861 = vrot.slane %v1758, %v1860
        %v1862 = vlaneseq
        %v1863 = vshrl.u32 %v1862, 7
        %v1864 = vsub.s32 %v1161, %v1863
        %v1865 = vrot.slane %v1761, %v1864
        %v1866 = vlaneseq
        %v1867 = vshrl.u32 %v1866, 7
        %v1868 = vsub.s32 %v1161, %v1867
        %v1869 = vrot.slane %v1764, %v1868
        %v1870 = vlaneseq
        %v1871 = vshrl.u32 %v1870, 7
        %v1872 = vsub.s32 %v1161, %v1871
        %v1873 = vrot.slane %v1767, %v1872
        %v1874 = vlaneseq
        %v1875 = vshrl.u32 %v1874, 7
        %v1876 = vsub.s32 %v1161, %v1875
        %v1877 = vrot.slane %v1770, %v1876
        %v1878 = vlaneseq
        %v1879 = vshrl.u32 %v1878, 7
        %v1880 = vsub.s32 %v1161, %v1879
        %v1881 = vrot.slane %v1773, %v1880
        %v1882 = vlaneseq
        %v1883 = vshrl.u32 %v1882, 7
        %v1884 = vsub.s32 %v1161, %v1883
        %v1885 = vrot.slane %v1776, %v1884
        %v1886 = vlaneseq
        %v1887 = vshrl.u32 %v1886, 7
        %v1888 = vsub.s32 %v1161, %v1887
        %v1889 = vrot.slane %v1779, %v1888
        %v1890 = vlaneseq
        %v1891 = vshrl.u32 %v1890, 7
        %v1892 = vsub.s32 %v1161, %v1891
        %v1893 = vrot.slane %v1782, %v1892
        %v1894 = vlaneseq
        %v1895 = vshrl.u32 %v1894, 7
        %v1896 = vsub.s32 %v1161, %v1895
        %v1897 = vrot.slane %v1785, %v1896
        %v1898 = vlaneseq
        %v1899 = vshrl.u32 %v1898, 7
        %v1900 = vsub.s32 %v1161, %v1899
        %v1901 = vrot.slane %v1788, %v1900
        %v1902 = vlaneseq
        %v1903 = vshrl.u32 %v1902, 7
        %v1904 = vsub.s32 %v1161, %v1903
        %v1905 = vrot.slane %v1791, %v1904
        %v1906 = vlaneseq
        %v1907 = vshrl.u32 %v1906, 7
        %v1908 = vsub.s32 %v1161, %v1907
        %v1909 = vrot.slane %v1794, %v1908
        %v1910 = vlaneseq
        %v1911 = vshrl.u32 %v1910, 7
        %v1912 = vsub.s32 %v1161, %v1911
        %v1913 = vrot.slane %v1797, %v1912
        %v1914 = vlaneseq
        %v1915 = vshrl.u32 %v1914, 7
        %v1916 = vsub.s32 %v1161, %v1915
        %v1917 = vrot.slane %v1800, %v1916
        %v1918 = vlaneseq
        %v1919 = vshrl.u32 %v1918, 7
        %v1920 = vsub.s32 %v1161, %v1919
        %v1921 = vrot.slane %v1803, %v1920
        %v1922 = vlaneseq
        %v1923 = vshrl.u32 %v1922, 7
        %v1924 = vsub.s32 %v1161, %v1923
        %v1925 = vrot.slane %v1806, %v1924
        %v1926 = vlaneseq
        %v1927 = vshrl.u32 %v1926, 7
        %v1928 = vsub.s32 %v1161, %v1927
        %v1929 = vrot.slane %v1809, %v1928
        %v1930 = vlaneseq
        %v1931 = vshrl.u32 %v1930, 7
        %v1932 = vsub.s32 %v1161, %v1931
        %v1933 = vrot.slane %v1812, %v1932
        %v1934 = vlaneseq
        %v1935 = vshrl.u32 %v1934, 7
        %v1936 = vsub.s32 %v1161, %v1935
        %v1937 = vrot.slane %v1815, %v1936
        %v1938 = vlaneseq
        %v1939 = vshrl.u32 %v1938, 7
        %v1940 = vsub.s32 %v1161, %v1939
        %v1941 = vrot.slane %v1818, %v1940
        %v1942 = vlaneseq
        %v1943 = vshrl.u32 %v1942, 7
        %v1944 = vsub.s32 %v1161, %v1943
        %v1945 = vrot.slane %v1821, %v1944
        %v1946 = vlaneseq
        %v1947 = vshrl.u32 %v1946, 7
        %v1948 = vsub.s32 %v1161, %v1947
        %v1949 = vrot.slane %v1824, %v1948
        %v1950 = vlaneseq
        %v1951 = vshrl.u32 %v1950, 7
        %v1952 = vsub.s32 %v1161, %v1951
        %v1953 = vrot.slane %v1827, %v1952
        %v1954 = vlaneseq
        %v1955 = vshrl.u32 %v1954, 7
        %v1956 = vsub.s32 %v1161, %v1955
        %v1957 = vrot.slane %v1830, %v1956
        %v1958 = vlaneseq
        %v1959 = vshrl.u32 %v1958, 7
        %v1960 = vsub.s32 %v1161, %v1959
        %v1961 = vrot.slane %v1833, %v1960
        %v1962 = vsel %vm1194, %v1841, %v1837
        %v1963 = vsel %vm1196, %v1845, %v1962
        %v1964 = vsel %vm1198, %v1849, %v1963
        %v1965 = vsel %vm1200, %v1853, %v1964
        %v1966 = vsel %vm1202, %v1857, %v1965
        %v1967 = vsel %vm1204, %v1861, %v1966
        %v1968 = vsel %vm1206, %v1865, %v1967
        %v1969 = vsel %vm1194, %v1873, %v1869
        %v1970 = vsel %vm1196, %v1877, %v1969
        %v1971 = vsel %vm1198, %v1881, %v1970
        %v1972 = vsel %vm1200, %v1885, %v1971
        %v1973 = vsel %vm1202, %v1889, %v1972
        %v1974 = vsel %vm1204, %v1893, %v1973
        %v1975 = vsel %vm1206, %v1897, %v1974
        %v1976 = vsel %vm1194, %v1905, %v1901
        %v1977 = vsel %vm1196, %v1909, %v1976
        %v1978 = vsel %vm1198, %v1913, %v1977
        %v1979 = vsel %vm1200, %v1917, %v1978
        %v1980 = vsel %vm1202, %v1921, %v1979
        %v1981 = vsel %vm1204, %v1925, %v1980
        %v1982 = vsel %vm1206, %v1929, %v1981
        %v1983 = vsel %vm1194, %v1937, %v1933
        %v1984 = vsel %vm1196, %v1941, %v1983
        %v1985 = vsel %vm1198, %v1945, %v1984
        %v1986 = vsel %vm1200, %v1949, %v1985
        %v1987 = vsel %vm1202, %v1953, %v1986
        %v1988 = vsel %vm1204, %v1957, %v1987
        %v1989 = vsel %vm1206, %v1961, %v1988
        %v1994 = vsel %vm1208, %v1968, -inf
        %1995 = vmax.xlane.f32.xlu0 %v1994
        %v1996 = vpop.xlane.xlu0 %1995
        %v1997 = vsel %vm1208, %v1975, -inf
        %1998 = vmax.xlane.f32.xlu0 %v1997
        %v1999 = vpop.xlane.xlu0 %1998
        %v2000 = vsel %vm1208, %v1982, -inf
        %2001 = vmax.xlane.f32.xlu0 %v2000
        %v2002 = vpop.xlane.xlu0 %2001
        %v2003 = vsel %vm1208, %v1989, -inf
        %2004 = vmax.xlane.f32.xlu0 %v2003
        %v2005 = vpop.xlane.xlu0 %2004
        %v2010 = vlaneseq
        %v2011 = vshrl.u32 %v2010, 7
        %v2012 = vsub.s32 0, %v2011
        %v2013 = vrot.slane %v1996, %v2012
        %v2014 = vlaneseq
        %v2015 = vshrl.u32 %v2014, 7
        %v2016 = vsub.s32 1, %v2015
        %v2017 = vrot.slane %v1996, %v2016
        %v2018 = vlaneseq
        %v2019 = vshrl.u32 %v2018, 7
        %v2020 = vsub.s32 2, %v2019
        %v2021 = vrot.slane %v1996, %v2020
        %v2022 = vlaneseq
        %v2023 = vshrl.u32 %v2022, 7
        %v2024 = vsub.s32 3, %v2023
        %v2025 = vrot.slane %v1996, %v2024
        %v2026 = vlaneseq
        %v2027 = vshrl.u32 %v2026, 7
        %v2028 = vsub.s32 4, %v2027
        %v2029 = vrot.slane %v1996, %v2028
        %v2030 = vlaneseq
        %v2031 = vshrl.u32 %v2030, 7
        %v2032 = vsub.s32 5, %v2031
        %v2033 = vrot.slane %v1996, %v2032
        %v2034 = vlaneseq
        %v2035 = vshrl.u32 %v2034, 7
        %v2036 = vsub.s32 6, %v2035
        %v2037 = vrot.slane %v1996, %v2036
        %v2038 = vlaneseq
        %v2039 = vshrl.u32 %v2038, 7
        %v2040 = vsub.s32 7, %v2039
        %v2041 = vrot.slane %v1996, %v2040
        %v2042 = vlaneseq
        %v2043 = vshrl.u32 %v2042, 7
        %v2044 = vsub.s32 0, %v2043
        %v2045 = vrot.slane %v1999, %v2044
        %v2046 = vlaneseq
        %v2047 = vshrl.u32 %v2046, 7
        %v2048 = vsub.s32 1, %v2047
        %v2049 = vrot.slane %v1999, %v2048
        %v2050 = vlaneseq
        %v2051 = vshrl.u32 %v2050, 7
        %v2052 = vsub.s32 2, %v2051
        %v2053 = vrot.slane %v1999, %v2052
        %v2054 = vlaneseq
        %v2055 = vshrl.u32 %v2054, 7
        %v2056 = vsub.s32 3, %v2055
        %v2057 = vrot.slane %v1999, %v2056
        %v2058 = vlaneseq
        %v2059 = vshrl.u32 %v2058, 7
        %v2060 = vsub.s32 4, %v2059
        %v2061 = vrot.slane %v1999, %v2060
        %v2062 = vlaneseq
        %v2063 = vshrl.u32 %v2062, 7
        %v2064 = vsub.s32 5, %v2063
        %v2065 = vrot.slane %v1999, %v2064
        %v2066 = vlaneseq
        %v2067 = vshrl.u32 %v2066, 7
        %v2068 = vsub.s32 6, %v2067
        %v2069 = vrot.slane %v1999, %v2068
        %v2070 = vlaneseq
        %v2071 = vshrl.u32 %v2070, 7
        %v2072 = vsub.s32 7, %v2071
        %v2073 = vrot.slane %v1999, %v2072
        %v2074 = vlaneseq
        %v2075 = vshrl.u32 %v2074, 7
        %v2076 = vsub.s32 0, %v2075
        %v2077 = vrot.slane %v2002, %v2076
        %v2078 = vlaneseq
        %v2079 = vshrl.u32 %v2078, 7
        %v2080 = vsub.s32 1, %v2079
        %v2081 = vrot.slane %v2002, %v2080
        %v2082 = vlaneseq
        %v2083 = vshrl.u32 %v2082, 7
        %v2084 = vsub.s32 2, %v2083
        %v2085 = vrot.slane %v2002, %v2084
        %v2086 = vlaneseq
        %v2087 = vshrl.u32 %v2086, 7
        %v2088 = vsub.s32 3, %v2087
        %v2089 = vrot.slane %v2002, %v2088
        %v2090 = vlaneseq
        %v2091 = vshrl.u32 %v2090, 7
        %v2092 = vsub.s32 4, %v2091
        %v2093 = vrot.slane %v2002, %v2092
        %v2094 = vlaneseq
        %v2095 = vshrl.u32 %v2094, 7
        %v2096 = vsub.s32 5, %v2095
        %v2097 = vrot.slane %v2002, %v2096
        %v2098 = vlaneseq
        %v2099 = vshrl.u32 %v2098, 7
        %v2100 = vsub.s32 6, %v2099
        %v2101 = vrot.slane %v2002, %v2100
        %v2102 = vlaneseq
        %v2103 = vshrl.u32 %v2102, 7
        %v2104 = vsub.s32 7, %v2103
        %v2105 = vrot.slane %v2002, %v2104
        %v2106 = vlaneseq
        %v2107 = vshrl.u32 %v2106, 7
        %v2108 = vsub.s32 0, %v2107
        %v2109 = vrot.slane %v2005, %v2108
        %v2110 = vlaneseq
        %v2111 = vshrl.u32 %v2110, 7
        %v2112 = vsub.s32 1, %v2111
        %v2113 = vrot.slane %v2005, %v2112
        %v2114 = vlaneseq
        %v2115 = vshrl.u32 %v2114, 7
        %v2116 = vsub.s32 2, %v2115
        %v2117 = vrot.slane %v2005, %v2116
        %v2118 = vlaneseq
        %v2119 = vshrl.u32 %v2118, 7
        %v2120 = vsub.s32 3, %v2119
        %v2121 = vrot.slane %v2005, %v2120
        %v2122 = vlaneseq
        %v2123 = vshrl.u32 %v2122, 7
        %v2124 = vsub.s32 4, %v2123
        %v2125 = vrot.slane %v2005, %v2124
        %v2126 = vlaneseq
        %v2127 = vshrl.u32 %v2126, 7
        %v2128 = vsub.s32 5, %v2127
        %v2129 = vrot.slane %v2005, %v2128
        %v2130 = vlaneseq
        %v2131 = vshrl.u32 %v2130, 7
        %v2132 = vsub.s32 6, %v2131
        %v2133 = vrot.slane %v2005, %v2132
        %v2134 = vlaneseq
        %v2135 = vshrl.u32 %v2134, 7
        %v2136 = vsub.s32 7, %v2135
        %v2137 = vrot.slane %v2005, %v2136
        %v2170 = vsub.f32 %v1674, %v2013
        %v2171 = vsub.f32 %v1675, %v2017
        %v2172 = vsub.f32 %v1676, %v2021
        %v2173 = vsub.f32 %v1677, %v2025
        %v2174 = vsub.f32 %v1678, %v2029
        %v2175 = vsub.f32 %v1679, %v2033
        %v2176 = vsub.f32 %v1680, %v2037
        %v2177 = vsub.f32 %v1681, %v2041
        %v2178 = vsub.f32 %v1682, %v2045
        %v2179 = vsub.f32 %v1683, %v2049
        %v2180 = vsub.f32 %v1684, %v2053
        %v2181 = vsub.f32 %v1685, %v2057
        %v2182 = vsub.f32 %v1686, %v2061
        %v2183 = vsub.f32 %v1687, %v2065
        %v2184 = vsub.f32 %v1688, %v2069
        %v2185 = vsub.f32 %v1689, %v2073
        %v2186 = vsub.f32 %v1690, %v2077
        %v2187 = vsub.f32 %v1691, %v2081
        %v2188 = vsub.f32 %v1692, %v2085
        %v2189 = vsub.f32 %v1693, %v2089
        %v2190 = vsub.f32 %v1694, %v2093
        %v2191 = vsub.f32 %v1695, %v2097
        %v2192 = vsub.f32 %v1696, %v2101
        %v2193 = vsub.f32 %v1697, %v2105
        %v2194 = vsub.f32 %v1698, %v2109
        %v2195 = vsub.f32 %v1699, %v2113
        %v2196 = vsub.f32 %v1700, %v2117
        %v2197 = vsub.f32 %v1701, %v2121
        %v2198 = vsub.f32 %v1702, %v2125
        %v2199 = vsub.f32 %v1703, %v2129
        %v2200 = vsub.f32 %v1704, %v2133
        %v2201 = vsub.f32 %v1705, %v2137
        %v2202 = vmul.f32 %v2170, 1.442695
        %v2203 = vpow.pop %v2202
        %v2204 = vmul.f32 %v2171, 1.442695
        %v2205 = vpow.pop %v2204
        %v2206 = vmul.f32 %v2172, 1.442695
        %v2207 = vpow.pop %v2206
        %v2208 = vmul.f32 %v2173, 1.442695
        %v2209 = vpow.pop %v2208
        %v2210 = vmul.f32 %v2174, 1.442695
        %v2211 = vpow.pop %v2210
        %v2212 = vmul.f32 %v2175, 1.442695
        %v2213 = vpow.pop %v2212
        %v2214 = vmul.f32 %v2176, 1.442695
        %v2215 = vpow.pop %v2214
        %v2216 = vmul.f32 %v2177, 1.442695
        %v2217 = vpow.pop %v2216
        %v2218 = vmul.f32 %v2178, 1.442695
        %v2219 = vpow.pop %v2218
        %v2220 = vmul.f32 %v2179, 1.442695
        %v2221 = vpow.pop %v2220
        %v2222 = vmul.f32 %v2180, 1.442695
        %v2223 = vpow.pop %v2222
        %v2224 = vmul.f32 %v2181, 1.442695
        %v2225 = vpow.pop %v2224
        %v2226 = vmul.f32 %v2182, 1.442695
        %v2227 = vpow.pop %v2226
        %v2228 = vmul.f32 %v2183, 1.442695
        %v2229 = vpow.pop %v2228
        %v2230 = vmul.f32 %v2184, 1.442695
        %v2231 = vpow.pop %v2230
        %v2232 = vmul.f32 %v2185, 1.442695
        %v2233 = vpow.pop %v2232
        %v2234 = vmul.f32 %v2186, 1.442695
        %v2235 = vpow.pop %v2234
        %v2236 = vmul.f32 %v2187, 1.442695
        %v2237 = vpow.pop %v2236
        %v2238 = vmul.f32 %v2188, 1.442695
        %v2239 = vpow.pop %v2238
        %v2240 = vmul.f32 %v2189, 1.442695
        %v2241 = vpow.pop %v2240
        %v2242 = vmul.f32 %v2190, 1.442695
        %v2243 = vpow.pop %v2242
        %v2244 = vmul.f32 %v2191, 1.442695
        %v2245 = vpow.pop %v2244
        %v2246 = vmul.f32 %v2192, 1.442695
        %v2247 = vpow.pop %v2246
        %v2248 = vmul.f32 %v2193, 1.442695
        %v2249 = vpow.pop %v2248
        %v2250 = vmul.f32 %v2194, 1.442695
        %v2251 = vpow.pop %v2250
        %v2252 = vmul.f32 %v2195, 1.442695
        %v2253 = vpow.pop %v2252
        %v2254 = vmul.f32 %v2196, 1.442695
        %v2255 = vpow.pop %v2254
        %v2256 = vmul.f32 %v2197, 1.442695
        %v2257 = vpow.pop %v2256
        %v2258 = vmul.f32 %v2198, 1.442695
        %v2259 = vpow.pop %v2258
        %v2260 = vmul.f32 %v2199, 1.442695
        %v2261 = vpow.pop %v2260
        %v2262 = vmul.f32 %v2200, 1.442695
        %v2263 = vpow.pop %v2262
        %v2264 = vmul.f32 %v2201, 1.442695
        %v2265 = vpow.pop %v2264
        %2298 = vset.pattern.permute.xlu0 0
        %2299 = vperm.xlu0 %2298, %v2203
        %v2300 = vpop.permute.xlu0 %2299
        %2301 = vset.pattern.permute.xlu0 0
        %2302 = vperm.xlu0 %2301, %v2205
        %v2303 = vpop.permute.xlu0 %2302
        %2304 = vset.pattern.permute.xlu0 0
        %2305 = vperm.xlu0 %2304, %v2207
        %v2306 = vpop.permute.xlu0 %2305
        %2307 = vset.pattern.permute.xlu0 0
        %2308 = vperm.xlu0 %2307, %v2209
        %v2309 = vpop.permute.xlu0 %2308
        %2310 = vset.pattern.permute.xlu0 0
        %2311 = vperm.xlu0 %2310, %v2211
        %v2312 = vpop.permute.xlu0 %2311
        %2313 = vset.pattern.permute.xlu0 0
        %2314 = vperm.xlu0 %2313, %v2213
        %v2315 = vpop.permute.xlu0 %2314
        %2316 = vset.pattern.permute.xlu0 0
        %2317 = vperm.xlu0 %2316, %v2215
        %v2318 = vpop.permute.xlu0 %2317
        %2319 = vset.pattern.permute.xlu0 0
        %2320 = vperm.xlu0 %2319, %v2217
        %v2321 = vpop.permute.xlu0 %2320
        %2322 = vset.pattern.permute.xlu0 0
        %2323 = vperm.xlu0 %2322, %v2219
        %v2324 = vpop.permute.xlu0 %2323
        %2325 = vset.pattern.permute.xlu0 0
        %2326 = vperm.xlu0 %2325, %v2221
        %v2327 = vpop.permute.xlu0 %2326
        %2328 = vset.pattern.permute.xlu0 0
        %2329 = vperm.xlu0 %2328, %v2223
        %v2330 = vpop.permute.xlu0 %2329
        %2331 = vset.pattern.permute.xlu0 0
        %2332 = vperm.xlu0 %2331, %v2225
        %v2333 = vpop.permute.xlu0 %2332
        %2334 = vset.pattern.permute.xlu0 0
        %2335 = vperm.xlu0 %2334, %v2227
        %v2336 = vpop.permute.xlu0 %2335
        %2337 = vset.pattern.permute.xlu0 0
        %2338 = vperm.xlu0 %2337, %v2229
        %v2339 = vpop.permute.xlu0 %2338
        %2340 = vset.pattern.permute.xlu0 0
        %2341 = vperm.xlu0 %2340, %v2231
        %v2342 = vpop.permute.xlu0 %2341
        %2343 = vset.pattern.permute.xlu0 0
        %2344 = vperm.xlu0 %2343, %v2233
        %v2345 = vpop.permute.xlu0 %2344
        %2346 = vset.pattern.permute.xlu0 0
        %2347 = vperm.xlu0 %2346, %v2235
        %v2348 = vpop.permute.xlu0 %2347
        %2349 = vset.pattern.permute.xlu0 0
        %2350 = vperm.xlu0 %2349, %v2237
        %v2351 = vpop.permute.xlu0 %2350
        %2352 = vset.pattern.permute.xlu0 0
        %2353 = vperm.xlu0 %2352, %v2239
        %v2354 = vpop.permute.xlu0 %2353
        %2355 = vset.pattern.permute.xlu0 0
        %2356 = vperm.xlu0 %2355, %v2241
        %v2357 = vpop.permute.xlu0 %2356
        %2358 = vset.pattern.permute.xlu0 0
        %2359 = vperm.xlu0 %2358, %v2243
        %v2360 = vpop.permute.xlu0 %2359
        %2361 = vset.pattern.permute.xlu0 0
        %2362 = vperm.xlu0 %2361, %v2245
        %v2363 = vpop.permute.xlu0 %2362
        %2364 = vset.pattern.permute.xlu0 0
        %2365 = vperm.xlu0 %2364, %v2247
        %v2366 = vpop.permute.xlu0 %2365
        %2367 = vset.pattern.permute.xlu0 0
        %2368 = vperm.xlu0 %2367, %v2249
        %v2369 = vpop.permute.xlu0 %2368
        %2370 = vset.pattern.permute.xlu0 0
        %2371 = vperm.xlu0 %2370, %v2251
        %v2372 = vpop.permute.xlu0 %2371
        %2373 = vset.pattern.permute.xlu0 0
        %2374 = vperm.xlu0 %2373, %v2253
        %v2375 = vpop.permute.xlu0 %2374
        %2376 = vset.pattern.permute.xlu0 0
        %2377 = vperm.xlu0 %2376, %v2255
        %v2378 = vpop.permute.xlu0 %2377
        %2379 = vset.pattern.permute.xlu0 0
        %2380 = vperm.xlu0 %2379, %v2257
        %v2381 = vpop.permute.xlu0 %2380
        %2382 = vset.pattern.permute.xlu0 0
        %2383 = vperm.xlu0 %2382, %v2259
        %v2384 = vpop.permute.xlu0 %2383
        %2385 = vset.pattern.permute.xlu0 0
        %2386 = vperm.xlu0 %2385, %v2261
        %v2387 = vpop.permute.xlu0 %2386
        %2388 = vset.pattern.permute.xlu0 0
        %2389 = vperm.xlu0 %2388, %v2263
        %v2390 = vpop.permute.xlu0 %2389
        %2391 = vset.pattern.permute.xlu0 0
        %2392 = vperm.xlu0 %2391, %v2265
        %v2393 = vpop.permute.xlu0 %2392
        %v2394 = vlaneseq
        %v2395 = vshrl.u32 %v2394, 7
        %v2396 = vsub.s32 %v1161, %v2395
        %v2397 = vrot.slane %v2300, %v2396
        %v2398 = vlaneseq
        %v2399 = vshrl.u32 %v2398, 7
        %v2400 = vsub.s32 %v1161, %v2399
        %v2401 = vrot.slane %v2303, %v2400
        %v2402 = vlaneseq
        %v2403 = vshrl.u32 %v2402, 7
        %v2404 = vsub.s32 %v1161, %v2403
        %v2405 = vrot.slane %v2306, %v2404
        %v2406 = vlaneseq
        %v2407 = vshrl.u32 %v2406, 7
        %v2408 = vsub.s32 %v1161, %v2407
        %v2409 = vrot.slane %v2309, %v2408
        %v2410 = vlaneseq
        %v2411 = vshrl.u32 %v2410, 7
        %v2412 = vsub.s32 %v1161, %v2411
        %v2413 = vrot.slane %v2312, %v2412
        %v2414 = vlaneseq
        %v2415 = vshrl.u32 %v2414, 7
        %v2416 = vsub.s32 %v1161, %v2415
        %v2417 = vrot.slane %v2315, %v2416
        %v2418 = vlaneseq
        %v2419 = vshrl.u32 %v2418, 7
        %v2420 = vsub.s32 %v1161, %v2419
        %v2421 = vrot.slane %v2318, %v2420
        %v2422 = vlaneseq
        %v2423 = vshrl.u32 %v2422, 7
        %v2424 = vsub.s32 %v1161, %v2423
        %v2425 = vrot.slane %v2321, %v2424
        %v2426 = vlaneseq
        %v2427 = vshrl.u32 %v2426, 7
        %v2428 = vsub.s32 %v1161, %v2427
        %v2429 = vrot.slane %v2324, %v2428
        %v2430 = vlaneseq
        %v2431 = vshrl.u32 %v2430, 7
        %v2432 = vsub.s32 %v1161, %v2431
        %v2433 = vrot.slane %v2327, %v2432
        %v2434 = vlaneseq
        %v2435 = vshrl.u32 %v2434, 7
        %v2436 = vsub.s32 %v1161, %v2435
        %v2437 = vrot.slane %v2330, %v2436
        %v2438 = vlaneseq
        %v2439 = vshrl.u32 %v2438, 7
        %v2440 = vsub.s32 %v1161, %v2439
        %v2441 = vrot.slane %v2333, %v2440
        %v2442 = vlaneseq
        %v2443 = vshrl.u32 %v2442, 7
        %v2444 = vsub.s32 %v1161, %v2443
        %v2445 = vrot.slane %v2336, %v2444
        %v2446 = vlaneseq
        %v2447 = vshrl.u32 %v2446, 7
        %v2448 = vsub.s32 %v1161, %v2447
        %v2449 = vrot.slane %v2339, %v2448
        %v2450 = vlaneseq
        %v2451 = vshrl.u32 %v2450, 7
        %v2452 = vsub.s32 %v1161, %v2451
        %v2453 = vrot.slane %v2342, %v2452
        %v2454 = vlaneseq
        %v2455 = vshrl.u32 %v2454, 7
        %v2456 = vsub.s32 %v1161, %v2455
        %v2457 = vrot.slane %v2345, %v2456
        %v2458 = vlaneseq
        %v2459 = vshrl.u32 %v2458, 7
        %v2460 = vsub.s32 %v1161, %v2459
        %v2461 = vrot.slane %v2348, %v2460
        %v2462 = vlaneseq
        %v2463 = vshrl.u32 %v2462, 7
        %v2464 = vsub.s32 %v1161, %v2463
        %v2465 = vrot.slane %v2351, %v2464
        %v2466 = vlaneseq
        %v2467 = vshrl.u32 %v2466, 7
        %v2468 = vsub.s32 %v1161, %v2467
        %v2469 = vrot.slane %v2354, %v2468
        %v2470 = vlaneseq
        %v2471 = vshrl.u32 %v2470, 7
        %v2472 = vsub.s32 %v1161, %v2471
        %v2473 = vrot.slane %v2357, %v2472
        %v2474 = vlaneseq
        %v2475 = vshrl.u32 %v2474, 7
        %v2476 = vsub.s32 %v1161, %v2475
        %v2477 = vrot.slane %v2360, %v2476
        %v2478 = vlaneseq
        %v2479 = vshrl.u32 %v2478, 7
        %v2480 = vsub.s32 %v1161, %v2479
        %v2481 = vrot.slane %v2363, %v2480
        %v2482 = vlaneseq
        %v2483 = vshrl.u32 %v2482, 7
        %v2484 = vsub.s32 %v1161, %v2483
        %v2485 = vrot.slane %v2366, %v2484
        %v2486 = vlaneseq
        %v2487 = vshrl.u32 %v2486, 7
        %v2488 = vsub.s32 %v1161, %v2487
        %v2489 = vrot.slane %v2369, %v2488
        %v2490 = vlaneseq
        %v2491 = vshrl.u32 %v2490, 7
        %v2492 = vsub.s32 %v1161, %v2491
        %v2493 = vrot.slane %v2372, %v2492
        %v2494 = vlaneseq
        %v2495 = vshrl.u32 %v2494, 7
        %v2496 = vsub.s32 %v1161, %v2495
        %v2497 = vrot.slane %v2375, %v2496
        %v2498 = vlaneseq
        %v2499 = vshrl.u32 %v2498, 7
        %v2500 = vsub.s32 %v1161, %v2499
        %v2501 = vrot.slane %v2378, %v2500
        %v2502 = vlaneseq
        %v2503 = vshrl.u32 %v2502, 7
        %v2504 = vsub.s32 %v1161, %v2503
        %v2505 = vrot.slane %v2381, %v2504
        %v2506 = vlaneseq
        %v2507 = vshrl.u32 %v2506, 7
        %v2508 = vsub.s32 %v1161, %v2507
        %v2509 = vrot.slane %v2384, %v2508
        %v2510 = vlaneseq
        %v2511 = vshrl.u32 %v2510, 7
        %v2512 = vsub.s32 %v1161, %v2511
        %v2513 = vrot.slane %v2387, %v2512
        %v2514 = vlaneseq
        %v2515 = vshrl.u32 %v2514, 7
        %v2516 = vsub.s32 %v1161, %v2515
        %v2517 = vrot.slane %v2390, %v2516
        %v2518 = vlaneseq
        %v2519 = vshrl.u32 %v2518, 7
        %v2520 = vsub.s32 %v1161, %v2519
        %v2521 = vrot.slane %v2393, %v2520
        %v2522 = vsel %vm1194, %v2401, %v2397
        %v2523 = vsel %vm1196, %v2405, %v2522
        %v2524 = vsel %vm1198, %v2409, %v2523
        %v2525 = vsel %vm1200, %v2413, %v2524
        %v2526 = vsel %vm1202, %v2417, %v2525
        %v2527 = vsel %vm1204, %v2421, %v2526
        %v2528 = vsel %vm1206, %v2425, %v2527
        %v2529 = vsel %vm1194, %v2433, %v2429
        %v2530 = vsel %vm1196, %v2437, %v2529
        %v2531 = vsel %vm1198, %v2441, %v2530
        %v2532 = vsel %vm1200, %v2445, %v2531
        %v2533 = vsel %vm1202, %v2449, %v2532
        %v2534 = vsel %vm1204, %v2453, %v2533
        %v2535 = vsel %vm1206, %v2457, %v2534
        %v2536 = vsel %vm1194, %v2465, %v2461
        %v2537 = vsel %vm1196, %v2469, %v2536
        %v2538 = vsel %vm1198, %v2473, %v2537
        %v2539 = vsel %vm1200, %v2477, %v2538
        %v2540 = vsel %vm1202, %v2481, %v2539
        %v2541 = vsel %vm1204, %v2485, %v2540
        %v2542 = vsel %vm1206, %v2489, %v2541
        %v2543 = vsel %vm1194, %v2497, %v2493
        %v2544 = vsel %vm1196, %v2501, %v2543
        %v2545 = vsel %vm1198, %v2505, %v2544
        %v2546 = vsel %vm1200, %v2509, %v2545
        %v2547 = vsel %vm1202, %v2513, %v2546
        %v2548 = vsel %vm1204, %v2517, %v2547
        %v2549 = vsel %vm1206, %v2521, %v2548
        %v2554 = vsel %vm1208, %v2528, 0.0
        %2555 = vadd.xlane.f32.xlu0 %v2554
        %v2556 = vpop.xlane.xlu0 %2555
        %v2557 = vsel %vm1208, %v2535, 0.0
        %2558 = vadd.xlane.f32.xlu0 %v2557
        %v2559 = vpop.xlane.xlu0 %2558
        %v2560 = vsel %vm1208, %v2542, 0.0
        %2561 = vadd.xlane.f32.xlu0 %v2560
        %v2562 = vpop.xlane.xlu0 %2561
        %v2563 = vsel %vm1208, %v2549, 0.0
        %2564 = vadd.xlane.f32.xlu0 %v2563
        %v2565 = vpop.xlane.xlu0 %2564
        %v2566 = vrcp.pop %v2556
        %v2567 = vrcp.pop %v2559
        %v2568 = vrcp.pop %v2562
        %v2569 = vrcp.pop %v2565
        %v2574 = vlaneseq
        %v2575 = vshrl.u32 %v2574, 7
        %v2576 = vsub.s32 0, %v2575
        %v2577 = vrot.slane %v2566, %v2576
        %v2578 = vlaneseq
        %v2579 = vshrl.u32 %v2578, 7
        %v2580 = vsub.s32 1, %v2579
        %v2581 = vrot.slane %v2566, %v2580
        %v2582 = vlaneseq
        %v2583 = vshrl.u32 %v2582, 7
        %v2584 = vsub.s32 2, %v2583
        %v2585 = vrot.slane %v2566, %v2584
        %v2586 = vlaneseq
        %v2587 = vshrl.u32 %v2586, 7
        %v2588 = vsub.s32 3, %v2587
        %v2589 = vrot.slane %v2566, %v2588
        %v2590 = vlaneseq
        %v2591 = vshrl.u32 %v2590, 7
        %v2592 = vsub.s32 4, %v2591
        %v2593 = vrot.slane %v2566, %v2592
        %v2594 = vlaneseq
        %v2595 = vshrl.u32 %v2594, 7
        %v2596 = vsub.s32 5, %v2595
        %v2597 = vrot.slane %v2566, %v2596
        %v2598 = vlaneseq
        %v2599 = vshrl.u32 %v2598, 7
        %v2600 = vsub.s32 6, %v2599
        %v2601 = vrot.slane %v2566, %v2600
        %v2602 = vlaneseq
        %v2603 = vshrl.u32 %v2602, 7
        %v2604 = vsub.s32 7, %v2603
        %v2605 = vrot.slane %v2566, %v2604
        %v2606 = vlaneseq
        %v2607 = vshrl.u32 %v2606, 7
        %v2608 = vsub.s32 0, %v2607
        %v2609 = vrot.slane %v2567, %v2608
        %v2610 = vlaneseq
        %v2611 = vshrl.u32 %v2610, 7
        %v2612 = vsub.s32 1, %v2611
        %v2613 = vrot.slane %v2567, %v2612
        %v2614 = vlaneseq
        %v2615 = vshrl.u32 %v2614, 7
        %v2616 = vsub.s32 2, %v2615
        %v2617 = vrot.slane %v2567, %v2616
        %v2618 = vlaneseq
        %v2619 = vshrl.u32 %v2618, 7
        %v2620 = vsub.s32 3, %v2619
        %v2621 = vrot.slane %v2567, %v2620
        %v2622 = vlaneseq
        %v2623 = vshrl.u32 %v2622, 7
        %v2624 = vsub.s32 4, %v2623
        %v2625 = vrot.slane %v2567, %v2624
        %v2626 = vlaneseq
        %v2627 = vshrl.u32 %v2626, 7
        %v2628 = vsub.s32 5, %v2627
        %v2629 = vrot.slane %v2567, %v2628
        %v2630 = vlaneseq
        %v2631 = vshrl.u32 %v2630, 7
        %v2632 = vsub.s32 6, %v2631
        %v2633 = vrot.slane %v2567, %v2632
        %v2634 = vlaneseq
        %v2635 = vshrl.u32 %v2634, 7
        %v2636 = vsub.s32 7, %v2635
        %v2637 = vrot.slane %v2567, %v2636
        %v2638 = vlaneseq
        %v2639 = vshrl.u32 %v2638, 7
        %v2640 = vsub.s32 0, %v2639
        %v2641 = vrot.slane %v2568, %v2640
        %v2642 = vlaneseq
        %v2643 = vshrl.u32 %v2642, 7
        %v2644 = vsub.s32 1, %v2643
        %v2645 = vrot.slane %v2568, %v2644
        %v2646 = vlaneseq
        %v2647 = vshrl.u32 %v2646, 7
        %v2648 = vsub.s32 2, %v2647
        %v2649 = vrot.slane %v2568, %v2648
        %v2650 = vlaneseq
        %v2651 = vshrl.u32 %v2650, 7
        %v2652 = vsub.s32 3, %v2651
        %v2653 = vrot.slane %v2568, %v2652
        %v2654 = vlaneseq
        %v2655 = vshrl.u32 %v2654, 7
        %v2656 = vsub.s32 4, %v2655
        %v2657 = vrot.slane %v2568, %v2656
        %v2658 = vlaneseq
        %v2659 = vshrl.u32 %v2658, 7
        %v2660 = vsub.s32 5, %v2659
        %v2661 = vrot.slane %v2568, %v2660
        %v2662 = vlaneseq
        %v2663 = vshrl.u32 %v2662, 7
        %v2664 = vsub.s32 6, %v2663
        %v2665 = vrot.slane %v2568, %v2664
        %v2666 = vlaneseq
        %v2667 = vshrl.u32 %v2666, 7
        %v2668 = vsub.s32 7, %v2667
        %v2669 = vrot.slane %v2568, %v2668
        %v2670 = vlaneseq
        %v2671 = vshrl.u32 %v2670, 7
        %v2672 = vsub.s32 0, %v2671
        %v2673 = vrot.slane %v2569, %v2672
        %v2674 = vlaneseq
        %v2675 = vshrl.u32 %v2674, 7
        %v2676 = vsub.s32 1, %v2675
        %v2677 = vrot.slane %v2569, %v2676
        %v2678 = vlaneseq
        %v2679 = vshrl.u32 %v2678, 7
        %v2680 = vsub.s32 2, %v2679
        %v2681 = vrot.slane %v2569, %v2680
        %v2682 = vlaneseq
        %v2683 = vshrl.u32 %v2682, 7
        %v2684 = vsub.s32 3, %v2683
        %v2685 = vrot.slane %v2569, %v2684
        %v2686 = vlaneseq
        %v2687 = vshrl.u32 %v2686, 7
        %v2688 = vsub.s32 4, %v2687
        %v2689 = vrot.slane %v2569, %v2688
        %v2690 = vlaneseq
        %v2691 = vshrl.u32 %v2690, 7
        %v2692 = vsub.s32 5, %v2691
        %v2693 = vrot.slane %v2569, %v2692
        %v2694 = vlaneseq
        %v2695 = vshrl.u32 %v2694, 7
        %v2696 = vsub.s32 6, %v2695
        %v2697 = vrot.slane %v2569, %v2696
        %v2698 = vlaneseq
        %v2699 = vshrl.u32 %v2698, 7
        %v2700 = vsub.s32 7, %v2699
        %v2701 = vrot.slane %v2569, %v2700
        %v2734 = vmul.f32 %v2203, %v2577
        %v2735 = vmul.f32 %v2205, %v2581
        %v2736 = vmul.f32 %v2207, %v2585
        %v2737 = vmul.f32 %v2209, %v2589
        %v2738 = vmul.f32 %v2211, %v2593
        %v2739 = vmul.f32 %v2213, %v2597
        %v2740 = vmul.f32 %v2215, %v2601
        %v2741 = vmul.f32 %v2217, %v2605
        %v2742 = vmul.f32 %v2219, %v2609
        %v2743 = vmul.f32 %v2221, %v2613
        %v2744 = vmul.f32 %v2223, %v2617
        %v2745 = vmul.f32 %v2225, %v2621
        %v2746 = vmul.f32 %v2227, %v2625
        %v2747 = vmul.f32 %v2229, %v2629
        %v2748 = vmul.f32 %v2231, %v2633
        %v2749 = vmul.f32 %v2233, %v2637
        %v2750 = vmul.f32 %v2235, %v2641
        %v2751 = vmul.f32 %v2237, %v2645
        %v2752 = vmul.f32 %v2239, %v2649
        %v2753 = vmul.f32 %v2241, %v2653
        %v2754 = vmul.f32 %v2243, %v2657
        %v2755 = vmul.f32 %v2245, %v2661
        %v2756 = vmul.f32 %v2247, %v2665
        %v2757 = vmul.f32 %v2249, %v2669
        %v2758 = vmul.f32 %v2251, %v2673
        %v2759 = vmul.f32 %v2253, %v2677
        %v2760 = vmul.f32 %v2255, %v2681
        %v2761 = vmul.f32 %v2257, %v2685
        %v2762 = vmul.f32 %v2259, %v2689
        %v2763 = vmul.f32 %v2261, %v2693
        %v2764 = vmul.f32 %v2263, %v2697
        %v2765 = vmul.f32 %v2265, %v2701
        %2798 = vset.pattern.permute.xlu0 0
        %2799 = vperm.xlu0 %2798, %v2734
        %v2800 = vpop.permute.xlu0 %2799
        %2801 = vset.pattern.permute.xlu0 0
        %2802 = vperm.xlu0 %2801, %v2735
        %v2803 = vpop.permute.xlu0 %2802
        %2804 = vset.pattern.permute.xlu0 0
        %2805 = vperm.xlu0 %2804, %v2736
        %v2806 = vpop.permute.xlu0 %2805
        %2807 = vset.pattern.permute.xlu0 0
        %2808 = vperm.xlu0 %2807, %v2737
        %v2809 = vpop.permute.xlu0 %2808
        %2810 = vset.pattern.permute.xlu0 0
        %2811 = vperm.xlu0 %2810, %v2738
        %v2812 = vpop.permute.xlu0 %2811
        %2813 = vset.pattern.permute.xlu0 0
        %2814 = vperm.xlu0 %2813, %v2739
        %v2815 = vpop.permute.xlu0 %2814
        %2816 = vset.pattern.permute.xlu0 0
        %2817 = vperm.xlu0 %2816, %v2740
        %v2818 = vpop.permute.xlu0 %2817
        %2819 = vset.pattern.permute.xlu0 0
        %2820 = vperm.xlu0 %2819, %v2741
        %v2821 = vpop.permute.xlu0 %2820
        %2822 = vset.pattern.permute.xlu0 0
        %2823 = vperm.xlu0 %2822, %v2742
        %v2824 = vpop.permute.xlu0 %2823
        %2825 = vset.pattern.permute.xlu0 0
        %2826 = vperm.xlu0 %2825, %v2743
        %v2827 = vpop.permute.xlu0 %2826
        %2828 = vset.pattern.permute.xlu0 0
        %2829 = vperm.xlu0 %2828, %v2744
        %v2830 = vpop.permute.xlu0 %2829
        %2831 = vset.pattern.permute.xlu0 0
        %2832 = vperm.xlu0 %2831, %v2745
        %v2833 = vpop.permute.xlu0 %2832
        %2834 = vset.pattern.permute.xlu0 0
        %2835 = vperm.xlu0 %2834, %v2746
        %v2836 = vpop.permute.xlu0 %2835
        %2837 = vset.pattern.permute.xlu0 0
        %2838 = vperm.xlu0 %2837, %v2747
        %v2839 = vpop.permute.xlu0 %2838
        %2840 = vset.pattern.permute.xlu0 0
        %2841 = vperm.xlu0 %2840, %v2748
        %v2842 = vpop.permute.xlu0 %2841
        %2843 = vset.pattern.permute.xlu0 0
        %2844 = vperm.xlu0 %2843, %v2749
        %v2845 = vpop.permute.xlu0 %2844
        %2846 = vset.pattern.permute.xlu0 0
        %2847 = vperm.xlu0 %2846, %v2750
        %v2848 = vpop.permute.xlu0 %2847
        %2849 = vset.pattern.permute.xlu0 0
        %2850 = vperm.xlu0 %2849, %v2751
        %v2851 = vpop.permute.xlu0 %2850
        %2852 = vset.pattern.permute.xlu0 0
        %2853 = vperm.xlu0 %2852, %v2752
        %v2854 = vpop.permute.xlu0 %2853
        %2855 = vset.pattern.permute.xlu0 0
        %2856 = vperm.xlu0 %2855, %v2753
        %v2857 = vpop.permute.xlu0 %2856
        %2858 = vset.pattern.permute.xlu0 0
        %2859 = vperm.xlu0 %2858, %v2754
        %v2860 = vpop.permute.xlu0 %2859
        %2861 = vset.pattern.permute.xlu0 0
        %2862 = vperm.xlu0 %2861, %v2755
        %v2863 = vpop.permute.xlu0 %2862
        %2864 = vset.pattern.permute.xlu0 0
        %2865 = vperm.xlu0 %2864, %v2756
        %v2866 = vpop.permute.xlu0 %2865
        %2867 = vset.pattern.permute.xlu0 0
        %2868 = vperm.xlu0 %2867, %v2757
        %v2869 = vpop.permute.xlu0 %2868
        %2870 = vset.pattern.permute.xlu0 0
        %2871 = vperm.xlu0 %2870, %v2758
        %v2872 = vpop.permute.xlu0 %2871
        %2873 = vset.pattern.permute.xlu0 0
        %2874 = vperm.xlu0 %2873, %v2759
        %v2875 = vpop.permute.xlu0 %2874
        %2876 = vset.pattern.permute.xlu0 0
        %2877 = vperm.xlu0 %2876, %v2760
        %v2878 = vpop.permute.xlu0 %2877
        %2879 = vset.pattern.permute.xlu0 0
        %2880 = vperm.xlu0 %2879, %v2761
        %v2881 = vpop.permute.xlu0 %2880
        %2882 = vset.pattern.permute.xlu0 0
        %2883 = vperm.xlu0 %2882, %v2762
        %v2884 = vpop.permute.xlu0 %2883
        %2885 = vset.pattern.permute.xlu0 0
        %2886 = vperm.xlu0 %2885, %v2763
        %v2887 = vpop.permute.xlu0 %2886
        %2888 = vset.pattern.permute.xlu0 0
        %2889 = vperm.xlu0 %2888, %v2764
        %v2890 = vpop.permute.xlu0 %2889
        %2891 = vset.pattern.permute.xlu0 0
        %2892 = vperm.xlu0 %2891, %v2765
        %v2893 = vpop.permute.xlu0 %2892
        %v2894 = vlaneseq
        %v2895 = vshrl.u32 %v2894, 7
        %v2896 = vsub.s32 %v1161, %v2895
        %v2897 = vrot.slane %v2800, %v2896
        %v2898 = vlaneseq
        %v2899 = vshrl.u32 %v2898, 7
        %v2900 = vsub.s32 %v1161, %v2899
        %v2901 = vrot.slane %v2803, %v2900
        %v2902 = vlaneseq
        %v2903 = vshrl.u32 %v2902, 7
        %v2904 = vsub.s32 %v1161, %v2903
        %v2905 = vrot.slane %v2806, %v2904
        %v2906 = vlaneseq
        %v2907 = vshrl.u32 %v2906, 7
        %v2908 = vsub.s32 %v1161, %v2907
        %v2909 = vrot.slane %v2809, %v2908
        %v2910 = vlaneseq
        %v2911 = vshrl.u32 %v2910, 7
        %v2912 = vsub.s32 %v1161, %v2911
        %v2913 = vrot.slane %v2812, %v2912
        %v2914 = vlaneseq
        %v2915 = vshrl.u32 %v2914, 7
        %v2916 = vsub.s32 %v1161, %v2915
        %v2917 = vrot.slane %v2815, %v2916
        %v2918 = vlaneseq
        %v2919 = vshrl.u32 %v2918, 7
        %v2920 = vsub.s32 %v1161, %v2919
        %v2921 = vrot.slane %v2818, %v2920
        %v2922 = vlaneseq
        %v2923 = vshrl.u32 %v2922, 7
        %v2924 = vsub.s32 %v1161, %v2923
        %v2925 = vrot.slane %v2821, %v2924
        %v2926 = vlaneseq
        %v2927 = vshrl.u32 %v2926, 7
        %v2928 = vsub.s32 %v1161, %v2927
        %v2929 = vrot.slane %v2824, %v2928
        %v2930 = vlaneseq
        %v2931 = vshrl.u32 %v2930, 7
        %v2932 = vsub.s32 %v1161, %v2931
        %v2933 = vrot.slane %v2827, %v2932
        %v2934 = vlaneseq
        %v2935 = vshrl.u32 %v2934, 7
        %v2936 = vsub.s32 %v1161, %v2935
        %v2937 = vrot.slane %v2830, %v2936
        %v2938 = vlaneseq
        %v2939 = vshrl.u32 %v2938, 7
        %v2940 = vsub.s32 %v1161, %v2939
        %v2941 = vrot.slane %v2833, %v2940
        %v2942 = vlaneseq
        %v2943 = vshrl.u32 %v2942, 7
        %v2944 = vsub.s32 %v1161, %v2943
        %v2945 = vrot.slane %v2836, %v2944
        %v2946 = vlaneseq
        %v2947 = vshrl.u32 %v2946, 7
        %v2948 = vsub.s32 %v1161, %v2947
        %v2949 = vrot.slane %v2839, %v2948
        %v2950 = vlaneseq
        %v2951 = vshrl.u32 %v2950, 7
        %v2952 = vsub.s32 %v1161, %v2951
        %v2953 = vrot.slane %v2842, %v2952
        %v2954 = vlaneseq
        %v2955 = vshrl.u32 %v2954, 7
        %v2956 = vsub.s32 %v1161, %v2955
        %v2957 = vrot.slane %v2845, %v2956
        %v2958 = vlaneseq
        %v2959 = vshrl.u32 %v2958, 7
        %v2960 = vsub.s32 %v1161, %v2959
        %v2961 = vrot.slane %v2848, %v2960
        %v2962 = vlaneseq
        %v2963 = vshrl.u32 %v2962, 7
        %v2964 = vsub.s32 %v1161, %v2963
        %v2965 = vrot.slane %v2851, %v2964
        %v2966 = vlaneseq
        %v2967 = vshrl.u32 %v2966, 7
        %v2968 = vsub.s32 %v1161, %v2967
        %v2969 = vrot.slane %v2854, %v2968
        %v2970 = vlaneseq
        %v2971 = vshrl.u32 %v2970, 7
        %v2972 = vsub.s32 %v1161, %v2971
        %v2973 = vrot.slane %v2857, %v2972
        %v2974 = vlaneseq
        %v2975 = vshrl.u32 %v2974, 7
        %v2976 = vsub.s32 %v1161, %v2975
        %v2977 = vrot.slane %v2860, %v2976
        %v2978 = vlaneseq
        %v2979 = vshrl.u32 %v2978, 7
        %v2980 = vsub.s32 %v1161, %v2979
        %v2981 = vrot.slane %v2863, %v2980
        %v2982 = vlaneseq
        %v2983 = vshrl.u32 %v2982, 7
        %v2984 = vsub.s32 %v1161, %v2983
        %v2985 = vrot.slane %v2866, %v2984
        %v2986 = vlaneseq
        %v2987 = vshrl.u32 %v2986, 7
        %v2988 = vsub.s32 %v1161, %v2987
        %v2989 = vrot.slane %v2869, %v2988
        %v2990 = vlaneseq
        %v2991 = vshrl.u32 %v2990, 7
        %v2992 = vsub.s32 %v1161, %v2991
        %v2993 = vrot.slane %v2872, %v2992
        %v2994 = vlaneseq
        %v2995 = vshrl.u32 %v2994, 7
        %v2996 = vsub.s32 %v1161, %v2995
        %v2997 = vrot.slane %v2875, %v2996
        %v2998 = vlaneseq
        %v2999 = vshrl.u32 %v2998, 7
        %v3000 = vsub.s32 %v1161, %v2999
        %v3001 = vrot.slane %v2878, %v3000
        %v3002 = vlaneseq
        %v3003 = vshrl.u32 %v3002, 7
        %v3004 = vsub.s32 %v1161, %v3003
        %v3005 = vrot.slane %v2881, %v3004
        %v3006 = vlaneseq
        %v3007 = vshrl.u32 %v3006, 7
        %v3008 = vsub.s32 %v1161, %v3007
        %v3009 = vrot.slane %v2884, %v3008
        %v3010 = vlaneseq
        %v3011 = vshrl.u32 %v3010, 7
        %v3012 = vsub.s32 %v1161, %v3011
        %v3013 = vrot.slane %v2887, %v3012
        %v3014 = vlaneseq
        %v3015 = vshrl.u32 %v3014, 7
        %v3016 = vsub.s32 %v1161, %v3015
        %v3017 = vrot.slane %v2890, %v3016
        %v3018 = vlaneseq
        %v3019 = vshrl.u32 %v3018, 7
        %v3020 = vsub.s32 %v1161, %v3019
        %v3021 = vrot.slane %v2893, %v3020
        %v3022 = vsel %vm1194, %v2901, %v2897
        %v3023 = vsel %vm1196, %v2905, %v3022
        %v3024 = vsel %vm1198, %v2909, %v3023
        %v3025 = vsel %vm1200, %v2913, %v3024
        %v3026 = vsel %vm1202, %v2917, %v3025
        %v3027 = vsel %vm1204, %v2921, %v3026
        %v3028 = vsel %vm1206, %v2925, %v3027
        %v3029 = vsel %vm1194, %v2933, %v2929
        %v3030 = vsel %vm1196, %v2937, %v3029
        %v3031 = vsel %vm1198, %v2941, %v3030
        %v3032 = vsel %vm1200, %v2945, %v3031
        %v3033 = vsel %vm1202, %v2949, %v3032
        %v3034 = vsel %vm1204, %v2953, %v3033
        %v3035 = vsel %vm1206, %v2957, %v3034
        %v3036 = vsel %vm1194, %v2965, %v2961
        %v3037 = vsel %vm1196, %v2969, %v3036
        %v3038 = vsel %vm1198, %v2973, %v3037
        %v3039 = vsel %vm1200, %v2977, %v3038
        %v3040 = vsel %vm1202, %v2981, %v3039
        %v3041 = vsel %vm1204, %v2985, %v3040
        %v3042 = vsel %vm1206, %v2989, %v3041
        %v3043 = vsel %vm1194, %v2997, %v2993
        %v3044 = vsel %vm1196, %v3001, %v3043
        %v3045 = vsel %vm1198, %v3005, %v3044
        %v3046 = vsel %vm1200, %v3009, %v3045
        %v3047 = vsel %vm1202, %v3013, %v3046
        %v3048 = vsel %vm1204, %v3017, %v3047
        %v3049 = vsel %vm1206, %v3021, %v3048
        %3054 = vst.msk [vmem:[%s688] sm:$0xff] %vm1208, %v3028
        %3055 = vst.msk [vmem:[%s688 + $0x8] sm:$0xff] %vm1208, %v3035
        %3056 = vst.msk [vmem:[%s688 + $0x10] sm:$0xff] %vm1208, %v3042
        %3057 = vst.msk [vmem:[%s688 + $0x18] sm:$0xff] %vm1208, %v3049
        %v3058 = vpack.c.bf16 %v2734, %v2734
        %v3059 = vpack.c.bf16 %v2735, %v2735
        %v3060 = vpack.c.bf16 %v2736, %v2736
        %v3061 = vpack.c.bf16 %v2737, %v2737
        %v3062 = vpack.c.bf16 %v2738, %v2738
        %v3063 = vpack.c.bf16 %v2739, %v2739
        %v3064 = vpack.c.bf16 %v2740, %v2740
        %v3065 = vpack.c.bf16 %v2741, %v2741
        %v3066 = vpack.c.bf16 %v2742, %v2742
        %v3067 = vpack.c.bf16 %v2743, %v2743
        %v3068 = vpack.c.bf16 %v2744, %v2744
        %v3069 = vpack.c.bf16 %v2745, %v2745
        %v3070 = vpack.c.bf16 %v2746, %v2746
        %v3071 = vpack.c.bf16 %v2747, %v2747
        %v3072 = vpack.c.bf16 %v2748, %v2748
        %v3073 = vpack.c.bf16 %v2749, %v2749
        %v3074 = vpack.c.bf16 %v2750, %v2750
        %v3075 = vpack.c.bf16 %v2751, %v2751
        %v3076 = vpack.c.bf16 %v2752, %v2752
        %v3077 = vpack.c.bf16 %v2753, %v2753
        %v3078 = vpack.c.bf16 %v2754, %v2754
        %v3079 = vpack.c.bf16 %v2755, %v2755
        %v3080 = vpack.c.bf16 %v2756, %v2756
        %v3081 = vpack.c.bf16 %v2757, %v2757
        %v3082 = vpack.c.bf16 %v2758, %v2758
        %v3083 = vpack.c.bf16 %v2759, %v2759
        %v3084 = vpack.c.bf16 %v2760, %v2760
        %v3085 = vpack.c.bf16 %v2761, %v2761
        %v3086 = vpack.c.bf16 %v2762, %v2762
        %v3087 = vpack.c.bf16 %v2763, %v2763
        %v3088 = vpack.c.bf16 %v2764, %v2764
        %v3089 = vpack.c.bf16 %v2765, %v2765
        %v3090 = vpack.c.bf16 %v709, %v709
        %v3091 = vpack.c.bf16 %v710, %v710
        %v3092 = vpack.c.bf16 %v711, %v711
        %v3093 = vpack.c.bf16 %v712, %v712
        %v3102 = vunpack.c.l.b16 %v3058
        %v3103 = vunpack.c.l.b16 %v3059
        %v3104 = vunpack.c.l.b16 %v3060
        %v3105 = vunpack.c.l.b16 %v3061
        %v3106 = vunpack.c.l.b16 %v3062
        %v3107 = vunpack.c.l.b16 %v3063
        %v3108 = vunpack.c.l.b16 %v3064
        %v3109 = vunpack.c.l.b16 %v3065
        %3110 = vset.pattern.permute.xlu0 0
        %3111 = vperm.xlu0 %3110, %v3102
        %v3112 = vpop.permute.xlu0 %3111
        %3113 = vset.pattern.permute.xlu0 0
        %3114 = vperm.xlu0 %3113, %v3103
        %v3115 = vpop.permute.xlu0 %3114
        %3116 = vset.pattern.permute.xlu0 0
        %3117 = vperm.xlu0 %3116, %v3104
        %v3118 = vpop.permute.xlu0 %3117
        %3119 = vset.pattern.permute.xlu0 0
        %3120 = vperm.xlu0 %3119, %v3105
        %v3121 = vpop.permute.xlu0 %3120
        %3122 = vset.pattern.permute.xlu0 0
        %3123 = vperm.xlu0 %3122, %v3106
        %v3124 = vpop.permute.xlu0 %3123
        %3125 = vset.pattern.permute.xlu0 0
        %3126 = vperm.xlu0 %3125, %v3107
        %v3127 = vpop.permute.xlu0 %3126
        %3128 = vset.pattern.permute.xlu0 0
        %3129 = vperm.xlu0 %3128, %v3108
        %v3130 = vpop.permute.xlu0 %3129
        %3131 = vset.pattern.permute.xlu0 0
        %3132 = vperm.xlu0 %3131, %v3109
        %v3133 = vpop.permute.xlu0 %3132
        %v3134 = vlaneseq
        %v3135 = vshrl.u32 %v3134, 7
        %v3136 = vsub.s32 %v1161, %v3135
        %v3137 = vrot.slane %v3112, %v3136
        %v3138 = vlaneseq
        %v3139 = vshrl.u32 %v3138, 7
        %v3140 = vsub.s32 %v1161, %v3139
        %v3141 = vrot.slane %v3115, %v3140
        %v3142 = vlaneseq
        %v3143 = vshrl.u32 %v3142, 7
        %v3144 = vsub.s32 %v1161, %v3143
        %v3145 = vrot.slane %v3118, %v3144
        %v3146 = vlaneseq
        %v3147 = vshrl.u32 %v3146, 7
        %v3148 = vsub.s32 %v1161, %v3147
        %v3149 = vrot.slane %v3121, %v3148
        %v3150 = vlaneseq
        %v3151 = vshrl.u32 %v3150, 7
        %v3152 = vsub.s32 %v1161, %v3151
        %v3153 = vrot.slane %v3124, %v3152
        %v3154 = vlaneseq
        %v3155 = vshrl.u32 %v3154, 7
        %v3156 = vsub.s32 %v1161, %v3155
        %v3157 = vrot.slane %v3127, %v3156
        %v3158 = vlaneseq
        %v3159 = vshrl.u32 %v3158, 7
        %v3160 = vsub.s32 %v1161, %v3159
        %v3161 = vrot.slane %v3130, %v3160
        %v3162 = vlaneseq
        %v3163 = vshrl.u32 %v3162, 7
        %v3164 = vsub.s32 %v1161, %v3163
        %v3165 = vrot.slane %v3133, %v3164
        %v3166 = vsel %vm1194, %v3141, %v3137
        %v3167 = vsel %vm1196, %v3145, %v3166
        %v3168 = vsel %vm1198, %v3149, %v3167
        %v3169 = vsel %vm1200, %v3153, %v3168
        %v3170 = vsel %vm1202, %v3157, %v3169
        %v3171 = vsel %vm1204, %v3161, %v3170
        %v3172 = vsel %vm1206, %v3165, %v3171
        %v3173 = vpack.c.b16 %v3172, %v3172
        %v3175 = vsel %vm1208, %v3173, 0
        %vm3177 = vcmask 1043456
        %v3179 = vsel %vm3177, %v3090, 0
        %3181 = vmatprep.subr.bf16.mxu0 0
        %3182 = vmatpush1.bf16.msra.mxu0 %v3179
        %3183 = vmatprep.subr.bf16.mxu0 0
        %3184 = vmatpush1.bf16.msra.mxu0 0
        %3185 = vmatprep.subr.bf16.mxu0 0
        %3186 = vmatpush1.bf16.msra.mxu0 0
        %3187 = vmatprep.subr.bf16.mxu0 0
        %3188 = vmatpush1.bf16.msra.mxu0 0
        %3189 = vmatprep.subr.bf16.mxu0 0
        %3190 = vmatpush1.bf16.msra.mxu0 0
        %3191 = vmatprep.subr.bf16.mxu0 0
        %3192 = vmatpush1.bf16.msra.mxu0 0
        %3193 = vmatprep.subr.bf16.mxu0 0
        %3194 = vmatpush1.bf16.msra.mxu0 0
        %3195 = vmatprep.subr.bf16.mxu0 0
        %3196 = vmatpush1.bf16.msra.mxu0 0
        %3197 = vmatprep.subr.bf16.mxu0 0
        %3198 = vmatpush1.bf16.msra.mxu0 0
        %3199 = vmatprep.subr.bf16.mxu0 0
        %3200 = vmatpush1.bf16.msra.mxu0 0
        %3201 = vmatprep.subr.bf16.mxu0 0
        %3202 = vmatpush1.bf16.msra.mxu0 0
        %3203 = vmatprep.subr.bf16.mxu0 0
        %3204 = vmatpush1.bf16.msra.mxu0 0
        %3205 = vmatprep.subr.bf16.mxu0 0
        %3206 = vmatpush1.bf16.msra.mxu0 0
        %3207 = vmatprep.subr.bf16.mxu0 0
        %3208 = vmatpush1.bf16.msra.mxu0 0
        %3209 = vmatprep.subr.bf16.mxu0 0
        %3210 = vmatpush1.bf16.msra.mxu0 0
        %3211 = vmatprep.subr.bf16.mxu0 0
        %3212 = vmatpush1.bf16.msra.mxu0 0
        %3213 = vmatprep.mubr.bf16.mxu0 0
        %3214 = vmatmul.mubr.bf16.gmra.mrb[0].mxu0 %v3175
        %v3215 = vpop.f32.mrb[0].mxu0
        %v3216 = vadd.f32 0.0, %v3215
        %v3217 = vpop.f32.mrb[0].mxu0
        %v3218 = vpop.f32.mrb[0].mxu0
        %v3219 = vpop.f32.mrb[0].mxu0
        %3220 = vdwg.mxu0
        %v3229 = vunpack.c.l.b16 %v3066
        %v3230 = vunpack.c.l.b16 %v3067
        %v3231 = vunpack.c.l.b16 %v3068
        %v3232 = vunpack.c.l.b16 %v3069
        %v3233 = vunpack.c.l.b16 %v3070
        %v3234 = vunpack.c.l.b16 %v3071
        %v3235 = vunpack.c.l.b16 %v3072
        %v3236 = vunpack.c.l.b16 %v3073
        %3237 = vset.pattern.permute.xlu0 0
        %3238 = vperm.xlu0 %3237, %v3229
        %v3239 = vpop.permute.xlu0 %3238
        %3240 = vset.pattern.permute.xlu0 0
        %3241 = vperm.xlu0 %3240, %v3230
        %v3242 = vpop.permute.xlu0 %3241
        %3243 = vset.pattern.permute.xlu0 0
        %3244 = vperm.xlu0 %3243, %v3231
        %v3245 = vpop.permute.xlu0 %3244
        %3246 = vset.pattern.permute.xlu0 0
        %3247 = vperm.xlu0 %3246, %v3232
        %v3248 = vpop.permute.xlu0 %3247
        %3249 = vset.pattern.permute.xlu0 0
        %3250 = vperm.xlu0 %3249, %v3233
        %v3251 = vpop.permute.xlu0 %3250
        %3252 = vset.pattern.permute.xlu0 0
        %3253 = vperm.xlu0 %3252, %v3234
        %v3254 = vpop.permute.xlu0 %3253
        %3255 = vset.pattern.permute.xlu0 0
        %3256 = vperm.xlu0 %3255, %v3235
        %v3257 = vpop.permute.xlu0 %3256
        %3258 = vset.pattern.permute.xlu0 0
        %3259 = vperm.xlu0 %3258, %v3236
        %v3260 = vpop.permute.xlu0 %3259
        %v3261 = vlaneseq
        %v3262 = vshrl.u32 %v3261, 7
        %v3263 = vsub.s32 %v1161, %v3262
        %v3264 = vrot.slane %v3239, %v3263
        %v3265 = vlaneseq
        %v3266 = vshrl.u32 %v3265, 7
        %v3267 = vsub.s32 %v1161, %v3266
        %v3268 = vrot.slane %v3242, %v3267
        %v3269 = vlaneseq
        %v3270 = vshrl.u32 %v3269, 7
        %v3271 = vsub.s32 %v1161, %v3270
        %v3272 = vrot.slane %v3245, %v3271
        %v3273 = vlaneseq
        %v3274 = vshrl.u32 %v3273, 7
        %v3275 = vsub.s32 %v1161, %v3274
        %v3276 = vrot.slane %v3248, %v3275
        %v3277 = vlaneseq
        %v3278 = vshrl.u32 %v3277, 7
        %v3279 = vsub.s32 %v1161, %v3278
        %v3280 = vrot.slane %v3251, %v3279
        %v3281 = vlaneseq
        %v3282 = vshrl.u32 %v3281, 7
        %v3283 = vsub.s32 %v1161, %v3282
        %v3284 = vrot.slane %v3254, %v3283
        %v3285 = vlaneseq
        %v3286 = vshrl.u32 %v3285, 7
        %v3287 = vsub.s32 %v1161, %v3286
        %v3288 = vrot.slane %v3257, %v3287
        %v3289 = vlaneseq
        %v3290 = vshrl.u32 %v3289, 7
        %v3291 = vsub.s32 %v1161, %v3290
        %v3292 = vrot.slane %v3260, %v3291
        %v3293 = vsel %vm1194, %v3268, %v3264
        %v3294 = vsel %vm1196, %v3272, %v3293
        %v3295 = vsel %vm1198, %v3276, %v3294
        %v3296 = vsel %vm1200, %v3280, %v3295
        %v3297 = vsel %vm1202, %v3284, %v3296
        %v3298 = vsel %vm1204, %v3288, %v3297
        %v3299 = vsel %vm1206, %v3292, %v3298
        %v3300 = vpack.c.b16 %v3299, %v3299
        %v3302 = vsel %vm1208, %v3300, 0
        %v3305 = vsel %vm3177, %v3091, 0
        %3307 = vmatprep.subr.bf16.mxu0 0
        %3308 = vmatpush1.bf16.msra.mxu0 %v3305
        %3309 = vmatprep.subr.bf16.mxu0 0
        %3310 = vmatpush1.bf16.msra.mxu0 0
        %3311 = vmatprep.subr.bf16.mxu0 0
        %3312 = vmatpush1.bf16.msra.mxu0 0
        %3313 = vmatprep.subr.bf16.mxu0 0
        %3314 = vmatpush1.bf16.msra.mxu0 0
        %3315 = vmatprep.subr.bf16.mxu0 0
        %3316 = vmatpush1.bf16.msra.mxu0 0
        %3317 = vmatprep.subr.bf16.mxu0 0
        %3318 = vmatpush1.bf16.msra.mxu0 0
        %3319 = vmatprep.subr.bf16.mxu0 0
        %3320 = vmatpush1.bf16.msra.mxu0 0
        %3321 = vmatprep.subr.bf16.mxu0 0
        %3322 = vmatpush1.bf16.msra.mxu0 0
        %3323 = vmatprep.subr.bf16.mxu0 0
        %3324 = vmatpush1.bf16.msra.mxu0 0
        %3325 = vmatprep.subr.bf16.mxu0 0
        %3326 = vmatpush1.bf16.msra.mxu0 0
        %3327 = vmatprep.subr.bf16.mxu0 0
        %3328 = vmatpush1.bf16.msra.mxu0 0
        %3329 = vmatprep.subr.bf16.mxu0 0
        %3330 = vmatpush1.bf16.msra.mxu0 0
        %3331 = vmatprep.subr.bf16.mxu0 0
        %3332 = vmatpush1.bf16.msra.mxu0 0
        %3333 = vmatprep.subr.bf16.mxu0 0
        %3334 = vmatpush1.bf16.msra.mxu0 0
        %3335 = vmatprep.subr.bf16.mxu0 0
        %3336 = vmatpush1.bf16.msra.mxu0 0
        %3337 = vmatprep.subr.bf16.mxu0 0
        %3338 = vmatpush1.bf16.msra.mxu0 0
        %3339 = vmatprep.mubr.bf16.mxu0 0
        %3340 = vmatmul.mubr.bf16.gmra.mrb[0].mxu0 %v3302
        %v3341 = vpop.f32.mrb[0].mxu0
        %v3342 = vadd.f32 0.0, %v3341
        %v3343 = vpop.f32.mrb[0].mxu0
        %v3344 = vpop.f32.mrb[0].mxu0
        %v3345 = vpop.f32.mrb[0].mxu0
        %3346 = vdwg.mxu0
        %v3355 = vunpack.c.l.b16 %v3074
        %v3356 = vunpack.c.l.b16 %v3075
        %v3357 = vunpack.c.l.b16 %v3076
        %v3358 = vunpack.c.l.b16 %v3077
        %v3359 = vunpack.c.l.b16 %v3078
        %v3360 = vunpack.c.l.b16 %v3079
        %v3361 = vunpack.c.l.b16 %v3080
        %v3362 = vunpack.c.l.b16 %v3081
        %3363 = vset.pattern.permute.xlu0 0
        %3364 = vperm.xlu0 %3363, %v3355
        %v3365 = vpop.permute.xlu0 %3364
        %3366 = vset.pattern.permute.xlu0 0
        %3367 = vperm.xlu0 %3366, %v3356
        %v3368 = vpop.permute.xlu0 %3367
        %3369 = vset.pattern.permute.xlu0 0
        %3370 = vperm.xlu0 %3369, %v3357
        %v3371 = vpop.permute.xlu0 %3370
        %3372 = vset.pattern.permute.xlu0 0
        %3373 = vperm.xlu0 %3372, %v3358
        %v3374 = vpop.permute.xlu0 %3373
        %3375 = vset.pattern.permute.xlu0 0
        %3376 = vperm.xlu0 %3375, %v3359
        %v3377 = vpop.permute.xlu0 %3376
        %3378 = vset.pattern.permute.xlu0 0
        %3379 = vperm.xlu0 %3378, %v3360
        %v3380 = vpop.permute.xlu0 %3379
        %3381 = vset.pattern.permute.xlu0 0
        %3382 = vperm.xlu0 %3381, %v3361
        %v3383 = vpop.permute.xlu0 %3382
        %3384 = vset.pattern.permute.xlu0 0
        %3385 = vperm.xlu0 %3384, %v3362
        %v3386 = vpop.permute.xlu0 %3385
        %v3387 = vlaneseq
        %v3388 = vshrl.u32 %v3387, 7
        %v3389 = vsub.s32 %v1161, %v3388
        %v3390 = vrot.slane %v3365, %v3389
        %v3391 = vlaneseq
        %v3392 = vshrl.u32 %v3391, 7
        %v3393 = vsub.s32 %v1161, %v3392
        %v3394 = vrot.slane %v3368, %v3393
        %v3395 = vlaneseq
        %v3396 = vshrl.u32 %v3395, 7
        %v3397 = vsub.s32 %v1161, %v3396
        %v3398 = vrot.slane %v3371, %v3397
        %v3399 = vlaneseq
        %v3400 = vshrl.u32 %v3399, 7
        %v3401 = vsub.s32 %v1161, %v3400
        %v3402 = vrot.slane %v3374, %v3401
        %v3403 = vlaneseq
        %v3404 = vshrl.u32 %v3403, 7
        %v3405 = vsub.s32 %v1161, %v3404
        %v3406 = vrot.slane %v3377, %v3405
        %v3407 = vlaneseq
        %v3408 = vshrl.u32 %v3407, 7
        %v3409 = vsub.s32 %v1161, %v3408
        %v3410 = vrot.slane %v3380, %v3409
        %v3411 = vlaneseq
        %v3412 = vshrl.u32 %v3411, 7
        %v3413 = vsub.s32 %v1161, %v3412
        %v3414 = vrot.slane %v3383, %v3413
        %v3415 = vlaneseq
        %v3416 = vshrl.u32 %v3415, 7
        %v3417 = vsub.s32 %v1161, %v3416
        %v3418 = vrot.slane %v3386, %v3417
        %v3419 = vsel %vm1194, %v3394, %v3390
        %v3420 = vsel %vm1196, %v3398, %v3419
        %v3421 = vsel %vm1198, %v3402, %v3420
        %v3422 = vsel %vm1200, %v3406, %v3421
        %v3423 = vsel %vm1202, %v3410, %v3422
        %v3424 = vsel %vm1204, %v3414, %v3423
        %v3425 = vsel %vm1206, %v3418, %v3424
        %v3426 = vpack.c.b16 %v3425, %v3425
        %v3428 = vsel %vm1208, %v3426, 0
        %v3431 = vsel %vm3177, %v3092, 0
        %3433 = vmatprep.subr.bf16.mxu0 0
        %3434 = vmatpush1.bf16.msra.mxu0 %v3431
        %3435 = vmatprep.subr.bf16.mxu0 0
        %3436 = vmatpush1.bf16.msra.mxu0 0
        %3437 = vmatprep.subr.bf16.mxu0 0
        %3438 = vmatpush1.bf16.msra.mxu0 0
        %3439 = vmatprep.subr.bf16.mxu0 0
        %3440 = vmatpush1.bf16.msra.mxu0 0
        %3441 = vmatprep.subr.bf16.mxu0 0
        %3442 = vmatpush1.bf16.msra.mxu0 0
        %3443 = vmatprep.subr.bf16.mxu0 0
        %3444 = vmatpush1.bf16.msra.mxu0 0
        %3445 = vmatprep.subr.bf16.mxu0 0
        %3446 = vmatpush1.bf16.msra.mxu0 0
        %3447 = vmatprep.subr.bf16.mxu0 0
        %3448 = vmatpush1.bf16.msra.mxu0 0
        %3449 = vmatprep.subr.bf16.mxu0 0
        %3450 = vmatpush1.bf16.msra.mxu0 0
        %3451 = vmatprep.subr.bf16.mxu0 0
        %3452 = vmatpush1.bf16.msra.mxu0 0
        %3453 = vmatprep.subr.bf16.mxu0 0
        %3454 = vmatpush1.bf16.msra.mxu0 0
        %3455 = vmatprep.subr.bf16.mxu0 0
        %3456 = vmatpush1.bf16.msra.mxu0 0
        %3457 = vmatprep.subr.bf16.mxu0 0
        %3458 = vmatpush1.bf16.msra.mxu0 0
        %3459 = vmatprep.subr.bf16.mxu0 0
        %3460 = vmatpush1.bf16.msra.mxu0 0
        %3461 = vmatprep.subr.bf16.mxu0 0
        %3462 = vmatpush1.bf16.msra.mxu0 0
        %3463 = vmatprep.subr.bf16.mxu0 0
        %3464 = vmatpush1.bf16.msra.mxu0 0
        %3465 = vmatprep.mubr.bf16.mxu0 0
        %3466 = vmatmul.mubr.bf16.gmra.mrb[0].mxu0 %v3428
        %v3467 = vpop.f32.mrb[0].mxu0
        %v3468 = vadd.f32 0.0, %v3467
        %v3469 = vpop.f32.mrb[0].mxu0
        %v3470 = vpop.f32.mrb[0].mxu0
        %v3471 = vpop.f32.mrb[0].mxu0
        %3472 = vdwg.mxu0
        %v3481 = vunpack.c.l.b16 %v3082
        %v3482 = vunpack.c.l.b16 %v3083
        %v3483 = vunpack.c.l.b16 %v3084
        %v3484 = vunpack.c.l.b16 %v3085
        %v3485 = vunpack.c.l.b16 %v3086
        %v3486 = vunpack.c.l.b16 %v3087
        %v3487 = vunpack.c.l.b16 %v3088
        %v3488 = vunpack.c.l.b16 %v3089
        %3489 = vset.pattern.permute.xlu0 0
        %3490 = vperm.xlu0 %3489, %v3481
        %v3491 = vpop.permute.xlu0 %3490
        %3492 = vset.pattern.permute.xlu0 0
        %3493 = vperm.xlu0 %3492, %v3482
        %v3494 = vpop.permute.xlu0 %3493
        %3495 = vset.pattern.permute.xlu0 0
        %3496 = vperm.xlu0 %3495, %v3483
        %v3497 = vpop.permute.xlu0 %3496
        %3498 = vset.pattern.permute.xlu0 0
        %3499 = vperm.xlu0 %3498, %v3484
        %v3500 = vpop.permute.xlu0 %3499
        %3501 = vset.pattern.permute.xlu0 0
        %3502 = vperm.xlu0 %3501, %v3485
        %v3503 = vpop.permute.xlu0 %3502
        %3504 = vset.pattern.permute.xlu0 0
        %3505 = vperm.xlu0 %3504, %v3486
        %v3506 = vpop.permute.xlu0 %3505
        %3507 = vset.pattern.permute.xlu0 0
        %3508 = vperm.xlu0 %3507, %v3487
        %v3509 = vpop.permute.xlu0 %3508
        %3510 = vset.pattern.permute.xlu0 0
        %3511 = vperm.xlu0 %3510, %v3488
        %v3512 = vpop.permute.xlu0 %3511
        %v3513 = vlaneseq
        %v3514 = vshrl.u32 %v3513, 7
        %v3515 = vsub.s32 %v1161, %v3514
        %v3516 = vrot.slane %v3491, %v3515
        %v3517 = vlaneseq
        %v3518 = vshrl.u32 %v3517, 7
        %v3519 = vsub.s32 %v1161, %v3518
        %v3520 = vrot.slane %v3494, %v3519
        %v3521 = vlaneseq
        %v3522 = vshrl.u32 %v3521, 7
        %v3523 = vsub.s32 %v1161, %v3522
        %v3524 = vrot.slane %v3497, %v3523
        %v3525 = vlaneseq
        %v3526 = vshrl.u32 %v3525, 7
        %v3527 = vsub.s32 %v1161, %v3526
        %v3528 = vrot.slane %v3500, %v3527
        %v3529 = vlaneseq
        %v3530 = vshrl.u32 %v3529, 7
        %v3531 = vsub.s32 %v1161, %v3530
        %v3532 = vrot.slane %v3503, %v3531
        %v3533 = vlaneseq
        %v3534 = vshrl.u32 %v3533, 7
        %v3535 = vsub.s32 %v1161, %v3534
        %v3536 = vrot.slane %v3506, %v3535
        %v3537 = vlaneseq
        %v3538 = vshrl.u32 %v3537, 7
        %v3539 = vsub.s32 %v1161, %v3538
        %v3540 = vrot.slane %v3509, %v3539
        %v3541 = vlaneseq
        %v3542 = vshrl.u32 %v3541, 7
        %v3543 = vsub.s32 %v1161, %v3542
        %v3544 = vrot.slane %v3512, %v3543
        %v3545 = vsel %vm1194, %v3520, %v3516
        %v3546 = vsel %vm1196, %v3524, %v3545
        %v3547 = vsel %vm1198, %v3528, %v3546
        %v3548 = vsel %vm1200, %v3532, %v3547
        %v3549 = vsel %vm1202, %v3536, %v3548
        %v3550 = vsel %vm1204, %v3540, %v3549
        %v3551 = vsel %vm1206, %v3544, %v3550
        %v3552 = vpack.c.b16 %v3551, %v3551
        %v3554 = vsel %vm1208, %v3552, 0
        %v3557 = vsel %vm3177, %v3093, 0
        %3559 = vmatprep.subr.bf16.mxu0 0
        %3560 = vmatpush1.bf16.msra.mxu0 %v3557
        %3561 = vmatprep.subr.bf16.mxu0 0
        %3562 = vmatpush1.bf16.msra.mxu0 0
        %3563 = vmatprep.subr.bf16.mxu0 0
        %3564 = vmatpush1.bf16.msra.mxu0 0
        %3565 = vmatprep.subr.bf16.mxu0 0
        %3566 = vmatpush1.bf16.msra.mxu0 0
        %3567 = vmatprep.subr.bf16.mxu0 0
        %3568 = vmatpush1.bf16.msra.mxu0 0
        %3569 = vmatprep.subr.bf16.mxu0 0
        %3570 = vmatpush1.bf16.msra.mxu0 0
        %3571 = vmatprep.subr.bf16.mxu0 0
        %3572 = vmatpush1.bf16.msra.mxu0 0
        %3573 = vmatprep.subr.bf16.mxu0 0
        %3574 = vmatpush1.bf16.msra.mxu0 0
        %3575 = vmatprep.subr.bf16.mxu0 0
        %3576 = vmatpush1.bf16.msra.mxu0 0
        %3577 = vmatprep.subr.bf16.mxu0 0
        %3578 = vmatpush1.bf16.msra.mxu0 0
        %3579 = vmatprep.subr.bf16.mxu0 0
        %3580 = vmatpush1.bf16.msra.mxu0 0
        %3581 = vmatprep.subr.bf16.mxu0 0
        %3582 = vmatpush1.bf16.msra.mxu0 0
        %3583 = vmatprep.subr.bf16.mxu0 0
        %3584 = vmatpush1.bf16.msra.mxu0 0
        %3585 = vmatprep.subr.bf16.mxu0 0
        %3586 = vmatpush1.bf16.msra.mxu0 0
        %3587 = vmatprep.subr.bf16.mxu0 0
        %3588 = vmatpush1.bf16.msra.mxu0 0
        %3589 = vmatprep.subr.bf16.mxu0 0
        %3590 = vmatpush1.bf16.msra.mxu0 0
        %3591 = vmatprep.mubr.bf16.mxu0 0
        %3592 = vmatmul.mubr.bf16.gmra.mrb[0].mxu0 %v3554
        %v3593 = vpop.f32.mrb[0].mxu0
        %v3594 = vadd.f32 0.0, %v3593
        %v3595 = vpop.f32.mrb[0].mxu0
        %v3596 = vpop.f32.mrb[0].mxu0
        %v3597 = vpop.f32.mrb[0].mxu0
        %3598 = vdwg.mxu0
        %3599 = vst.msk [vmem:[%s681] sm:$0xff] %vm1208, %v3216
        %3600 = vst.msk [vmem:[%s681 + $0x8] sm:$0xff] %vm1208, %v3342
        %3601 = vst.msk [vmem:[%s681 + $0x10] sm:$0xff] %vm1208, %v3468
        %3602 = vst.msk [vmem:[%s681 + $0x18] sm:$0xff] %vm1208, %v3594
        %s3603 = sand.u32 %s332, 1
        %s3604 = scalar_lea.sflag [#allocation5], %s3603
        %s3605 = sand.u32 %s332, 1
        %s3606 = smul.addr %s3605, 32
        %s3607 = scalar_lea.vmem [#allocation15], %s3606
        %s3608 = sand.u32 %s43, 1
        %s3609 = scalar_lea.sflag [#allocation17], %s3608
        %s3610 = sand.u32 %s360, 1
        %s3611 = smul.addr %s3610, 32
        %s3612 = scalar_lea.vmem [#allocation16], %s3611
        %s3613 = sand.u32 %s43, 1
        %s3614 = scalar_lea.sflag [#allocation17], %s3613
        %s3615 = sand.u32 %s388, 1
        %s3616 = smul.addr %s3615, 8
        %s3617 = scalar_lea.vmem [#allocation18], %s3616
        // Predicated region
        $region93: #{tpu_custom_call.1} parent=63 // pred_check
          %p3618 = pneg %p342
        $region94: #{tpu_custom_call.1} parent=63 // pred_check_branch
          %3620 = sbr.rel (%p3618) target = $region96
        $region95: #{tpu_custom_call.1} parent=63 // pred_region
          %s3622 = ssub.s32 512, 512
          %3623 = vsyncadd %s3604, %s3622
          %s3624 = smul.addr %s47, 4
          %s3625 = sadd.s32 %s48, %s3624
          %s3626 = smul.addr %s3625, 128
          %s3627 = scalar_lea.hbm %s11, %s3626
          %s3628 = sshll.u32 %s3607, 4
          %s3629 = int_to_ptr.vmem [resolvable:$true] %s3628
          %3634 = dma.vmem_to_hbm [thread:$0]  %s3629, 512, %s3627, %s3604, 128, 128, 8
        $region96: #{tpu_custom_call.1} parent=63 // pred_fallthru
          _
        // Predicated region
        $region97: #{tpu_custom_call.1} parent=63 // pred_check
          %p3635 = pneg %p370
        $region98: #{tpu_custom_call.1} parent=63 // pred_check_branch
          %3637 = sbr.rel (%p3635) target = $region100
        $region99: #{tpu_custom_call.1} parent=63 // pred_region
          %s3639 = ssub.s32 512, 512
          %3640 = vsyncadd %s3609, %s3639
          %s3641 = smul.addr %s47, 4
          %s3642 = sadd.s32 %s48, %s3641
          %s3643 = smul.addr %s3642, 128
          %s3644 = scalar_lea.hbm %s12, %s3643
          %s3645 = sshll.u32 %s3612, 4
          %s3646 = int_to_ptr.vmem [resolvable:$true] %s3645
          %3651 = dma.vmem_to_hbm [thread:$0]  %s3646, 512, %s3644, %s3609, 128, 128, 8
        $region100: #{tpu_custom_call.1} parent=63 // pred_fallthru
          _
        // Predicated region
        $region101: #{tpu_custom_call.1} parent=63 // pred_check
          %p3652 = pneg %p398
        $region102: #{tpu_custom_call.1} parent=63 // pred_check_branch
          %3654 = sbr.rel (%p3652) target = $region104
        $region103: #{tpu_custom_call.1} parent=63 // pred_region
          %s3656 = ssub.s32 128, 128
          %3657 = vsyncadd %s3614, %s3656
          %s3658 = sadd.s32 %s48, %s47
          %s3659 = smul.addr %s3658, 128
          %s3660 = scalar_lea.hbm %s13, %s3659
          %s3662 = sshll.u32 %s3617, 4
          %s3663 = int_to_ptr.vmem [resolvable:$true] %s3662
          %3665 = dma.vmem_to_hbm [thread:$0]  %s3663, 128, %s3660, %s3614
        $region104: #{tpu_custom_call.1} parent=63 // pred_fallthru
          _
      $region64: #{tpu_custom_call.1} parent=5 // pred_fallthru
        _
      %p3666 = scmp.le.s32.totalorder 2, %s38
      // Predicated region
      $region105: #{tpu_custom_call.1} parent=5 // pred_check
        %p3667 = pneg %p3666
      $region106: #{tpu_custom_call.1} parent=5 // pred_check_branch
        %3669 = sbr.rel (%p3667) target = $region108
      $region107: #{tpu_custom_call.1} parent=5 // pred_region
        %s3670 = ssub.s32 %s38, 2
        // Predicated region
        $region109: #{tpu_custom_call.1} parent=107 // pred_check
          %p3671 = pneg %p348
        $region110: #{tpu_custom_call.1} parent=107 // pred_check_branch
          %3673 = sbr.rel (%p3671) target = $region112
        $region111: #{tpu_custom_call.1} parent=107 // pred_region
          %s3674 = sand.u32 %s333, 1
          %s3675 = scalar_lea.sflag [#allocation5], %s3674
          %s3676 = sand.u32 %s333, 1
          %s3677 = smul.addr %s3676, 32
          %s3678 = scalar_lea.vmem [#allocation15], %s3677
          %3679 = dma.done %s3675, 512
        $region112: #{tpu_custom_call.1} parent=107 // pred_fallthru
          _
        // Predicated region
        $region113: #{tpu_custom_call.1} parent=107 // pred_check
          %p3680 = pneg %p376
        $region114: #{tpu_custom_call.1} parent=107 // pred_check_branch
          %3682 = sbr.rel (%p3680) target = $region116
        $region115: #{tpu_custom_call.1} parent=107 // pred_region
          %s3683 = sand.u32 %s44, 1
          %s3684 = scalar_lea.sflag [#allocation17], %s3683
          %s3685 = sand.u32 %s361, 1
          %s3686 = smul.addr %s3685, 32
          %s3687 = scalar_lea.vmem [#allocation16], %s3686
          %3688 = dma.done %s3684, 512
        $region116: #{tpu_custom_call.1} parent=107 // pred_fallthru
          _
        // Predicated region
        $region117: #{tpu_custom_call.1} parent=107 // pred_check
          %p3689 = pneg %p404
        $region118: #{tpu_custom_call.1} parent=107 // pred_check_branch
          %3691 = sbr.rel (%p3689) target = $region120
        $region119: #{tpu_custom_call.1} parent=107 // pred_region
          %s3692 = sand.u32 %s44, 1
          %s3693 = scalar_lea.sflag [#allocation17], %s3692
          %s3694 = sand.u32 %s389, 1
          %s3695 = smul.addr %s3694, 8
          %s3696 = scalar_lea.vmem [#allocation18], %s3695
          %3697 = dma.done %s3693, 128
        $region120: #{tpu_custom_call.1} parent=107 // pred_fallthru
          _
      $region108: #{tpu_custom_call.1} parent=5 // pred_fallthru
        _
    $region6: #{tpu_custom_call.1} parent=1 // loop_footer
      %s42 = sadd.s32 1, %s38
    $region7: #{tpu_custom_call.1} parent=1 // loop_footer_branch
      %37 = sbr.rel target = $region3
    $region8: #{tpu_custom_call.1} parent=1 // loop_exit
      _
    %3698 = vsyncpa [#allocation4], 1
    %s3699 = scalar_lea.sflag [#allocation4], 1
    %3700 = vsyncpa %s3699, 1
    %3701 = vsyncpa [#allocation7], 1
    %s3702 = scalar_lea.sflag [#allocation7], 1
    %3703 = vsyncpa %s3702, 1
    %3704 = vsyncpa [#allocation10], 1
    %s3705 = scalar_lea.sflag [#allocation10], 1
    %3706 = vsyncpa %s3705, 1
    %3707 = vsyncpa [#allocation13], 1
    %3708 = vsyncpa [#allocation5], 1
    %s3709 = scalar_lea.sflag [#allocation5], 1
    %3710 = vsyncpa %s3709, 1
    %3711 = vsyncpa [#allocation17], 1
    %s3712 = scalar_lea.sflag [#allocation17], 1
    %3713 = vsyncpa %s3712, 1

</llo_original>
